<compile_context>
chip_gen: v7x
topology: tpu7x:2x2x1
jax: 0.10.0
libtpu: 0.0.40
codegen_flags: <defaults>
</compile_context>

<pallas_src>
import functools

import jax
import jax.numpy as jnp
from jax.experimental import pallas as pl
from jax.experimental.pallas import tpu as pltpu


# ----------------------------------------------------------------------------
# Fused kernel: projections -> per-head attention -> softmax -> gate -> LayerNorm
# Single grid-less invocation; all operands resident in VMEM.
# ----------------------------------------------------------------------------
def _mab_kernel(f1_ref, f2t_ref, wq_ref, bq_ref, w2_ref, b2_ref,
                bds_ref, sumk_ref, gamma_ref, beta_ref, o_ref,
                *, I, J, K, C, eps):
    f32 = jnp.float32

    # ---- Q projection (1/sqrt(head_dim) folded into wq/bq), broadcast over k
    q = jnp.dot(f1_ref[...], wq_ref[...], preferred_element_type=f32) + bq_ref[...]
    q_t = jnp.concatenate([q] * K, axis=1)                     # (I*J, K*C) lane-dense

    # ---- fused [K|V|E|G] projection of feat2 (rows are (k, j), k-major) ------
    kveg = jnp.dot(f2t_ref[...], w2_ref[...], preferred_element_type=f32) + b2_ref[...]

    # Relayout each (K*J, C) projection slice to lane-dense (J, K*C): row block k
    # (a whole sublane tile for J==8) becomes lane block k.  Only vreg-aligned
    # sublane slices + lane concatenation; no sublane->lane reshape/shuffle.
    def lane_dense(col):
        return jnp.concatenate(
            [kveg[k * J:(k + 1) * J, col * C:(col + 1) * C] for k in range(K)],
            axis=1)                                            # (J, K*C)

    kp = lane_dense(0)     # K
    vp = lane_dense(1)     # V
    ec = lane_dense(2)     # E  (head->channel broadcast folded into w2 columns)
    gc = lane_dense(3)     # G  (head->channel broadcast folded into w2 columns)

    # broadcast the (J, K*C) slabs over i (row index of q_t is i*J + j)
    kp_b = jnp.concatenate([kp] * I, axis=0)                   # (I*J, K*C)
    vp_b = jnp.concatenate([vp] * I, axis=0)
    ec_b = jnp.concatenate([ec] * I, axis=0)
    gc_b = jnp.concatenate([gc] * I, axis=0)

    # ---- attention scores, lane dense ----------------------------------------
    # p[(i,j),(k,c)] = Q[i,j,c] * K[j,k,c]
    p = q_t * kp_b
    # per-head contraction as ONE full-width MXU matmul (contraction = K*C):
    # hc[(i,j),(k,c)] = sum_{c': head(c')==head(c)} p[(i,j),(k,c')] + E[j,k,head(c)]
    hc = jnp.dot(p, bds_ref[...], preferred_element_type=f32) + ec_b

    # ---- softmax over k (k lives in the lane axis, so wrap-around lane rolls
    # only ever mix different k of the SAME channel -> exactly the reduction we
    # want; works for any K, over-coverage is harmless for max) ----------------
    m = hc
    step = 1
    while step < K:                                            # ceil(log2(K)) XLU rolls
        m = jnp.maximum(m, pltpu.roll(m, step * C, axis=1))
        step *= 2
    e = jnp.exp(hc - m)                                        # full-width EUP
    den = jnp.dot(e, sumk_ref[...], preferred_element_type=f32)   # (I*J, C) sum over k
    r = pl.reciprocal(den, approx=True)                        # EUP vrcp
    inv = r * (2.0 - den * r)                                  # one Newton step (~f32 exact)
    inv_t = jnp.concatenate([inv] * K, axis=1)                 # broadcast back over k

    gates = 0.5 * (jnp.tanh(0.5 * gc_b) + 1.0)                 # sigmoid, single EUP op
    a = e * inv_t * gates                                      # softmax(H) * sigmoid(G)

    # ---- Va[(i,j),c] = sum_k A[(i,j),(k,c)] * V[j,k,c] : second MXU k-reduction
    va = jnp.dot(a * vp_b, sumk_ref[...], preferred_element_type=f32)  # (I*J, C)

    # ---- LayerNorm over channels (biased variance, eps=1e-3) ------------------
    mean = jnp.mean(va, axis=1, keepdims=True)
    var = jnp.mean((va - mean) ** 2, axis=1, keepdims=True)
    y = (va - mean) * jax.lax.rsqrt(var + eps) * gamma_ref[...] + beta_ref[...]
    o_ref[...] = y.astype(o_ref.dtype)


# ----------------------------------------------------------------------------
# Call-invariant weight fusion, hoisted out of the hot path (built ONCE).
# ----------------------------------------------------------------------------
def make_fused_params(params, num_heads, k_len):
    """k_len is feat2.shape[1] (attention length K); the constant reduction
    matrices depend on it."""
    C = params["wq"].shape[0]
    h = num_heads
    d = C // h
    scale = float(d) ** -0.5
    head_of_c = jnp.arange(C) % h                 # torch head split: head(c) = c % h

    wq_s = params["wq"] * scale                   # fold 1/sqrt(head_dim) into Q proj
    bq_s = (params["bq"] * scale).reshape(1, C)

    # fold the head->channel broadcast of E/G into their weight columns
    we_c = params["we"][:, head_of_c]
    be_c = params["be"][head_of_c]
    wg_c = params["wg"][:, head_of_c]
    bg_c = params["bg"][head_of_c]

    # one lane-full (C, 4C) weight for the feat2-side projections [K|V|Ec|Gc]
    w2 = jnp.concatenate([params["wk"], params["wv"], we_c, wg_c], axis=1)
    b2 = jnp.concatenate([params["bk"], params["bv"], be_c, bg_c]).reshape(1, 4 * C)

    # same[c',c] = 1 iff head(c')==head(c); block-diagonal over the K lane blocks
    same = (head_of_c[:, None] == head_of_c[None, :]).astype(jnp.float32)
    bd_same = jnp.kron(jnp.eye(k_len, dtype=jnp.float32), same)    # (K*C, K*C)
    # sumk[(k,c'), c] = 1 iff c'==c : sums each channel over the K lane blocks
    sumk = jnp.tile(jnp.eye(C, dtype=jnp.float32), (k_len, 1))     # (K*C, C)

    return {"wq_s": wq_s, "bq_s": bq_s, "w2": w2, "b2": b2,
            "bd_same": bd_same, "sumk": sumk,
            "gamma": params["ln_gamma"].reshape(1, C),
            "beta": params["ln_beta"].reshape(1, C)}


def many_body_attn(feat1, feat2, fused, *, check_nan=False):
    I, J, C = feat1.shape
    J2, K, C2 = feat2.shape
    assert J == J2 and C == C2
    assert fused["sumk"].shape == (K * C, C), "fused params built for a different K/C"

    f1 = feat1.reshape(I * J, C)                       # rows (i, j)
    f2t = feat2.transpose(1, 0, 2).reshape(K * J, C)   # rows (k, j), k-major

    kern = functools.partial(_mab_kernel, I=I, J=J, K=K, C=C, eps=1e-3)
    out_flat = pl.pallas_call(
        kern,
        out_shape=jax.ShapeDtypeStruct((I * J, C), jnp.float32),
    )(f1, f2t, fused["wq_s"], fused["bq_s"], fused["w2"], fused["b2"],
      fused["bd_same"], fused["sumk"], fused["gamma"], fused["beta"])

    out = out_flat.reshape(I, J, C)                    # == torch .flatten(start_dim=2)

    if check_nan:
        # TODO(synk): torch raises eagerly inside forward(); this host-side check
        # only works outside jit (a traced bool raises ConcretizationTypeError).
        if bool(jnp.isnan(out).any()):
            raise ValueError("after n_n_layernorm Va_in contains nan")
    return out


# ----------------------------------------------------------------------------
# Pure-JAX reference (mirror of the PyTorch forward) for validation.
# ----------------------------------------------------------------------------
def reference(feat1, feat2, params, num_heads):
    I, J, C = feat1.shape
    _, K, _ = feat2.shape
    h = num_heads
    d = C // h
    Q = feat1 @ params["wq"] + params["bq"]
    Kp = feat2 @ params["wk"] + params["bk"]
    Vp = feat2 @ params["wv"] + params["bv"]
    E = feat2 @ params["we"] + params["be"]
    G = feat2 @ params["wg"] + params["bg"]
    Q = Q.reshape(I, J, d, h) * (d ** -0.5)
    Kp = Kp.reshape(J, K, d, h)
    Vp = Vp.reshape(J, K, d, h)
    H = jnp.einsum("ijdh,jkdh->ijkh", Q, Kp) + E
    A = jax.nn.softmax(H, axis=2) * jax.nn.sigmoid(G)
    Va = jnp.einsum("ijkh,jkdh->ijdh", A, Vp).reshape(I, J, C)
    mean = Va.mean(-1, keepdims=True)
    var = ((Va - mean) ** 2).mean(-1, keepdims=True)
    return (Va - mean) / jnp.sqrt(var + 1e-3) * params["ln_gamma"] + params["ln_beta"]


def _xavier(key, fan_in, fan_out, shape):
    lim = (6.0 / (fan_in + fan_out)) ** 0.5
    return jax.random.uniform(key, shape, jnp.float32, -lim, lim)


if __name__ == "__main__":
    # Make the pure-JAX reference use true f32 matmuls so the comparison below
    # measures kernel correctness, not XLA's default low-precision matmul path.
    jax.config.update("jax_default_matmul_precision", "highest")

    # hidden_channels=32, num_heads=4 -> head_dim=8
    C, NH = 32, 4
    I, J, K = 4, 8, 8

    key = jax.random.PRNGKey(0)
    k_f1, k_f2, k_wq, k_wkv, k_weg = jax.random.split(key, 5)

    feat1 = jax.random.normal(k_f1, (I, J, C), jnp.float32)
    feat2 = jax.random.normal(k_f2, (J, K, C), jnp.float32)

    # Deterministic synthetic parameters (xavier-uniform weights, zero biases,
    # LayerNorm gamma=1 / beta=0) -- matches reset_parameters() semantics.
    wq = _xavier(k_wq, C, C, (C, C))
    wkv = _xavier(k_wkv, C, 2 * C, (C, 2 * C))
    weg = _xavier(k_weg, C, 2 * NH, (C, 2 * NH))
    params = {
        "wq": wq, "bq": jnp.zeros((C,), jnp.float32),
        "wk": wkv[:, :C], "bk": jnp.zeros((C,), jnp.float32),
        "wv": wkv[:, C:], "bv": jnp.zeros((C,), jnp.float32),
        "we": weg[:, :NH], "be": jnp.zeros((NH,), jnp.float32),
        "wg": weg[:, NH:], "bg": jnp.zeros((NH,), jnp.float32),
        "ln_gamma": jnp.ones((C,), jnp.float32),
        "ln_beta": jnp.zeros((C,), jnp.float32),
    }

    # Hoisted out of the per-call path: built once, reused for every forward.
    fused = make_fused_params(params, NH, K)

    fwd = jax.jit(many_body_attn)
    out = jax.block_until_ready(fwd(feat1, feat2, fused))

    ref = jax.block_until_ready(reference(feat1, feat2, params, NH))
    assert out.shape == (I, J, C), out.shape
    err = float(jnp.max(jnp.abs(out - ref)))
    # Generous bound: numeric differences are ~1e-6 level; any layout/indexing
    # bug would produce O(1) errors.
    assert err < 1e-3, "mismatch vs reference: max abs err = %e" % err

    print("KERNEL_OK")
</pallas_src>

<mosaic_0001>
module attributes {stable_mosaic.version = 11 : i64} {
  func.func @_mab_kernel(%arg0: memref<32x32xf32, #tpu.memory_space<vmem>>, %arg1: memref<64x32xf32, #tpu.memory_space<vmem>>, %arg2: memref<32x32xf32, #tpu.memory_space<vmem>>, %arg3: memref<1x32xf32, #tpu.memory_space<vmem>>, %arg4: memref<32x128xf32, #tpu.memory_space<vmem>>, %arg5: memref<1x128xf32, #tpu.memory_space<vmem>>, %arg6: memref<256x256xf32, #tpu.memory_space<vmem>>, %arg7: memref<256x32xf32, #tpu.memory_space<vmem>>, %arg8: memref<1x32xf32, #tpu.memory_space<vmem>>, %arg9: memref<1x32xf32, #tpu.memory_space<vmem>>, %arg10: memref<32x32xf32, #tpu.memory_space<vmem>>) attributes {dimension_semantics = [], scalar_prefetch = 0 : i64, scratch_operands = 0 : i64, tpu.core_type = #tpu.core_type<tc>} {
    %c0 = arith.constant 0 : index
    %c0_0 = arith.constant 0 : index
    %0 = vector.load %arg0[%c0, %c0_0] : memref<32x32xf32, #tpu.memory_space<vmem>>, vector<32x32xf32>
    %c0_1 = arith.constant 0 : index
    %c0_2 = arith.constant 0 : index
    %1 = vector.load %arg2[%c0_1, %c0_2] : memref<32x32xf32, #tpu.memory_space<vmem>>, vector<32x32xf32>
    %cst = arith.constant dense<0.000000e+00> : vector<32x32xf32>
    %2 = tpu.matmul %0, %1, %cst {dimension_numbers = #tpu.dot_dimension_numbers<[1], [0], [0], [1], [0, 0, 1, 1], [], []>, precision = #tpu.contract_precision<fp32>} : vector<32x32xf32>, vector<32x32xf32>, vector<32x32xf32> -> vector<32x32xf32>
    %c0_3 = arith.constant 0 : index
    %c0_4 = arith.constant 0 : index
    %3 = vector.load %arg3[%c0_3, %c0_4] : memref<1x32xf32, #tpu.memory_space<vmem>>, vector<1x32xf32>
    %4 = vector.broadcast %3 : vector<1x32xf32> to vector<32x32xf32>
    %5 = arith.addf %2, %4 : vector<32x32xf32>
    %6 = tpu.concatenate %5, %5, %5, %5, %5, %5, %5, %5 in 1 : vector<32x32xf32>, vector<32x32xf32>, vector<32x32xf32>, vector<32x32xf32>, vector<32x32xf32>, vector<32x32xf32>, vector<32x32xf32>, vector<32x32xf32> -> vector<32x256xf32>
    %c0_5 = arith.constant 0 : index
    %c0_6 = arith.constant 0 : index
    %7 = vector.load %arg1[%c0_5, %c0_6] : memref<64x32xf32, #tpu.memory_space<vmem>>, vector<64x32xf32>
    %c0_7 = arith.constant 0 : index
    %c0_8 = arith.constant 0 : index
    %8 = vector.load %arg4[%c0_7, %c0_8] : memref<32x128xf32, #tpu.memory_space<vmem>>, vector<32x128xf32>
    %cst_9 = arith.constant dense<0.000000e+00> : vector<64x128xf32>
    %9 = tpu.matmul %7, %8, %cst_9 {dimension_numbers = #tpu.dot_dimension_numbers<[1], [0], [0], [1], [0, 0, 1, 1], [], []>, precision = #tpu.contract_precision<fp32>} : vector<64x32xf32>, vector<32x128xf32>, vector<64x128xf32> -> vector<64x128xf32>
    %c0_10 = arith.constant 0 : index
    %c0_11 = arith.constant 0 : index
    %10 = vector.load %arg5[%c0_10, %c0_11] : memref<1x128xf32, #tpu.memory_space<vmem>>, vector<1x128xf32>
    %11 = vector.broadcast %10 : vector<1x128xf32> to vector<64x128xf32>
    %12 = arith.addf %9, %11 : vector<64x128xf32>
    %13 = vector.extract_strided_slice %12 {offsets = [0, 0], sizes = [8, 32], strides = [1, 1]} : vector<64x128xf32> to vector<8x32xf32>
    %14 = vector.extract_strided_slice %12 {offsets = [8, 0], sizes = [8, 32], strides = [1, 1]} : vector<64x128xf32> to vector<8x32xf32>
    %15 = vector.extract_strided_slice %12 {offsets = [16, 0], sizes = [8, 32], strides = [1, 1]} : vector<64x128xf32> to vector<8x32xf32>
    %16 = vector.extract_strided_slice %12 {offsets = [24, 0], sizes = [8, 32], strides = [1, 1]} : vector<64x128xf32> to vector<8x32xf32>
    %17 = vector.extract_strided_slice %12 {offsets = [32, 0], sizes = [8, 32], strides = [1, 1]} : vector<64x128xf32> to vector<8x32xf32>
    %18 = vector.extract_strided_slice %12 {offsets = [40, 0], sizes = [8, 32], strides = [1, 1]} : vector<64x128xf32> to vector<8x32xf32>
    %19 = vector.extract_strided_slice %12 {offsets = [48, 0], sizes = [8, 32], strides = [1, 1]} : vector<64x128xf32> to vector<8x32xf32>
    %20 = vector.extract_strided_slice %12 {offsets = [56, 0], sizes = [8, 32], strides = [1, 1]} : vector<64x128xf32> to vector<8x32xf32>
    %21 = tpu.concatenate %13, %14, %15, %16, %17, %18, %19, %20 in 1 : vector<8x32xf32>, vector<8x32xf32>, vector<8x32xf32>, vector<8x32xf32>, vector<8x32xf32>, vector<8x32xf32>, vector<8x32xf32>, vector<8x32xf32> -> vector<8x256xf32>
    %22 = vector.extract_strided_slice %12 {offsets = [0, 32], sizes = [8, 32], strides = [1, 1]} : vector<64x128xf32> to vector<8x32xf32>
    %23 = vector.extract_strided_slice %12 {offsets = [8, 32], sizes = [8, 32], strides = [1, 1]} : vector<64x128xf32> to vector<8x32xf32>
    %24 = vector.extract_strided_slice %12 {offsets = [16, 32], sizes = [8, 32], strides = [1, 1]} : vector<64x128xf32> to vector<8x32xf32>
    %25 = vector.extract_strided_slice %12 {offsets = [24, 32], sizes = [8, 32], strides = [1, 1]} : vector<64x128xf32> to vector<8x32xf32>
    %26 = vector.extract_strided_slice %12 {offsets = [32, 32], sizes = [8, 32], strides = [1, 1]} : vector<64x128xf32> to vector<8x32xf32>
    %27 = vector.extract_strided_slice %12 {offsets = [40, 32], sizes = [8, 32], strides = [1, 1]} : vector<64x128xf32> to vector<8x32xf32>
    %28 = vector.extract_strided_slice %12 {offsets = [48, 32], sizes = [8, 32], strides = [1, 1]} : vector<64x128xf32> to vector<8x32xf32>
    %29 = vector.extract_strided_slice %12 {offsets = [56, 32], sizes = [8, 32], strides = [1, 1]} : vector<64x128xf32> to vector<8x32xf32>
    %30 = tpu.concatenate %22, %23, %24, %25, %26, %27, %28, %29 in 1 : vector<8x32xf32>, vector<8x32xf32>, vector<8x32xf32>, vector<8x32xf32>, vector<8x32xf32>, vector<8x32xf32>, vector<8x32xf32>, vector<8x32xf32> -> vector<8x256xf32>
    %31 = vector.extract_strided_slice %12 {offsets = [0, 64], sizes = [8, 32], strides = [1, 1]} : vector<64x128xf32> to vector<8x32xf32>
    %32 = vector.extract_strided_slice %12 {offsets = [8, 64], sizes = [8, 32], strides = [1, 1]} : vector<64x128xf32> to vector<8x32xf32>
    %33 = vector.extract_strided_slice %12 {offsets = [16, 64], sizes = [8, 32], strides = [1, 1]} : vector<64x128xf32> to vector<8x32xf32>
    %34 = vector.extract_strided_slice %12 {offsets = [24, 64], sizes = [8, 32], strides = [1, 1]} : vector<64x128xf32> to vector<8x32xf32>
    %35 = vector.extract_strided_slice %12 {offsets = [32, 64], sizes = [8, 32], strides = [1, 1]} : vector<64x128xf32> to vector<8x32xf32>
    %36 = vector.extract_strided_slice %12 {offsets = [40, 64], sizes = [8, 32], strides = [1, 1]} : vector<64x128xf32> to vector<8x32xf32>
    %37 = vector.extract_strided_slice %12 {offsets = [48, 64], sizes = [8, 32], strides = [1, 1]} : vector<64x128xf32> to vector<8x32xf32>
    %38 = vector.extract_strided_slice %12 {offsets = [56, 64], sizes = [8, 32], strides = [1, 1]} : vector<64x128xf32> to vector<8x32xf32>
    %39 = tpu.concatenate %31, %32, %33, %34, %35, %36, %37, %38 in 1 : vector<8x32xf32>, vector<8x32xf32>, vector<8x32xf32>, vector<8x32xf32>, vector<8x32xf32>, vector<8x32xf32>, vector<8x32xf32>, vector<8x32xf32> -> vector<8x256xf32>
    %40 = vector.extract_strided_slice %12 {offsets = [0, 96], sizes = [8, 32], strides = [1, 1]} : vector<64x128xf32> to vector<8x32xf32>
    %41 = vector.extract_strided_slice %12 {offsets = [8, 96], sizes = [8, 32], strides = [1, 1]} : vector<64x128xf32> to vector<8x32xf32>
    %42 = vector.extract_strided_slice %12 {offsets = [16, 96], sizes = [8, 32], strides = [1, 1]} : vector<64x128xf32> to vector<8x32xf32>
    %43 = vector.extract_strided_slice %12 {offsets = [24, 96], sizes = [8, 32], strides = [1, 1]} : vector<64x128xf32> to vector<8x32xf32>
    %44 = vector.extract_strided_slice %12 {offsets = [32, 96], sizes = [8, 32], strides = [1, 1]} : vector<64x128xf32> to vector<8x32xf32>
    %45 = vector.extract_strided_slice %12 {offsets = [40, 96], sizes = [8, 32], strides = [1, 1]} : vector<64x128xf32> to vector<8x32xf32>
    %46 = vector.extract_strided_slice %12 {offsets = [48, 96], sizes = [8, 32], strides = [1, 1]} : vector<64x128xf32> to vector<8x32xf32>
    %47 = vector.extract_strided_slice %12 {offsets = [56, 96], sizes = [8, 32], strides = [1, 1]} : vector<64x128xf32> to vector<8x32xf32>
    %48 = tpu.concatenate %40, %41, %42, %43, %44, %45, %46, %47 in 1 : vector<8x32xf32>, vector<8x32xf32>, vector<8x32xf32>, vector<8x32xf32>, vector<8x32xf32>, vector<8x32xf32>, vector<8x32xf32>, vector<8x32xf32> -> vector<8x256xf32>
    %49 = tpu.concatenate %21, %21, %21, %21 in 0 : vector<8x256xf32>, vector<8x256xf32>, vector<8x256xf32>, vector<8x256xf32> -> vector<32x256xf32>
    %50 = tpu.concatenate %30, %30, %30, %30 in 0 : vector<8x256xf32>, vector<8x256xf32>, vector<8x256xf32>, vector<8x256xf32> -> vector<32x256xf32>
    %51 = tpu.concatenate %39, %39, %39, %39 in 0 : vector<8x256xf32>, vector<8x256xf32>, vector<8x256xf32>, vector<8x256xf32> -> vector<32x256xf32>
    %52 = tpu.concatenate %48, %48, %48, %48 in 0 : vector<8x256xf32>, vector<8x256xf32>, vector<8x256xf32>, vector<8x256xf32> -> vector<32x256xf32>
    %53 = arith.mulf %6, %49 : vector<32x256xf32>
    %c0_12 = arith.constant 0 : index
    %c0_13 = arith.constant 0 : index
    %54 = vector.load %arg6[%c0_12, %c0_13] : memref<256x256xf32, #tpu.memory_space<vmem>>, vector<256x256xf32>
    %cst_14 = arith.constant dense<0.000000e+00> : vector<32x256xf32>
    %55 = tpu.matmul %53, %54, %cst_14 {dimension_numbers = #tpu.dot_dimension_numbers<[1], [0], [0], [1], [0, 0, 1, 1], [], []>, precision = #tpu.contract_precision<fp32>} : vector<32x256xf32>, vector<256x256xf32>, vector<32x256xf32> -> vector<32x256xf32>
    %56 = arith.addf %55, %51 : vector<32x256xf32>
    %c32_i32 = arith.constant 32 : i32
    %57 = tpu.dynamic_rotate %56 by %c32_i32 dim 1 : vector<32x256xf32>, i32 -> vector<32x256xf32>
    %58 = arith.maximumf %56, %57 : vector<32x256xf32>
    %c64_i32 = arith.constant 64 : i32
    %59 = tpu.dynamic_rotate %58 by %c64_i32 dim 1 : vector<32x256xf32>, i32 -> vector<32x256xf32>
    %60 = arith.maximumf %58, %59 : vector<32x256xf32>
    %c128_i32 = arith.constant 128 : i32
    %61 = tpu.dynamic_rotate %60 by %c128_i32 dim 1 : vector<32x256xf32>, i32 -> vector<32x256xf32>
    %62 = arith.maximumf %60, %61 : vector<32x256xf32>
    %63 = arith.subf %56, %62 : vector<32x256xf32>
    %64 = math.exp %63 : vector<32x256xf32>
    %c0_15 = arith.constant 0 : index
    %c0_16 = arith.constant 0 : index
    %65 = vector.load %arg7[%c0_15, %c0_16] : memref<256x32xf32, #tpu.memory_space<vmem>>, vector<256x32xf32>
    %cst_17 = arith.constant dense<0.000000e+00> : vector<32x32xf32>
    %66 = tpu.matmul %64, %65, %cst_17 {dimension_numbers = #tpu.dot_dimension_numbers<[1], [0], [0], [1], [0, 0, 1, 1], [], []>, precision = #tpu.contract_precision<fp32>} : vector<32x256xf32>, vector<256x32xf32>, vector<32x32xf32> -> vector<32x32xf32>
    %67 = tpu.reciprocal %66 {approx = true} : vector<32x32xf32> -> vector<32x32xf32>
    %68 = arith.mulf %66, %67 : vector<32x32xf32>
    %cst_18 = arith.constant 2.000000e+00 : f32
    %69 = vector.broadcast %cst_18 : f32 to vector<32x32xf32>
    %70 = arith.subf %69, %68 : vector<32x32xf32>
    %71 = arith.mulf %67, %70 : vector<32x32xf32>
    %72 = tpu.concatenate %71, %71, %71, %71, %71, %71, %71, %71 in 1 : vector<32x32xf32>, vector<32x32xf32>, vector<32x32xf32>, vector<32x32xf32>, vector<32x32xf32>, vector<32x32xf32>, vector<32x32xf32>, vector<32x32xf32> -> vector<32x256xf32>
    %cst_19 = arith.constant 5.000000e-01 : f32
    %73 = vector.broadcast %cst_19 : f32 to vector<32x256xf32>
    %74 = arith.mulf %73, %52 : vector<32x256xf32>
    %75 = math.tanh %74 : vector<32x256xf32>
    %cst_20 = arith.constant 1.000000e+00 : f32
    %76 = vector.broadcast %cst_20 : f32 to vector<32x256xf32>
    %77 = arith.addf %75, %76 : vector<32x256xf32>
    %cst_21 = arith.constant 5.000000e-01 : f32
    %78 = vector.broadcast %cst_21 : f32 to vector<32x256xf32>
    %79 = arith.mulf %78, %77 : vector<32x256xf32>
    %80 = arith.mulf %64, %72 : vector<32x256xf32>
    %81 = arith.mulf %80, %79 : vector<32x256xf32>
    %82 = arith.mulf %81, %50 : vector<32x256xf32>
    %c0_22 = arith.constant 0 : index
    %c0_23 = arith.constant 0 : index
    %83 = vector.load %arg7[%c0_22, %c0_23] : memref<256x32xf32, #tpu.memory_space<vmem>>, vector<256x32xf32>
    %cst_24 = arith.constant dense<0.000000e+00> : vector<32x32xf32>
    %84 = tpu.matmul %82, %83, %cst_24 {dimension_numbers = #tpu.dot_dimension_numbers<[1], [0], [0], [1], [0, 0, 1, 1], [], []>, precision = #tpu.contract_precision<fp32>} : vector<32x256xf32>, vector<256x32xf32>, vector<32x32xf32> -> vector<32x32xf32>
    %cst_25 = arith.constant dense<0.000000e+00> : vector<32xf32>
    %85 = vector.multi_reduction <add>, %84, %cst_25 [1] : vector<32x32xf32> to vector<32xf32>
    %86 = vector.shape_cast %85 : vector<32xf32> to vector<32x1xf32>
    %cst_26 = arith.constant 3.200000e+01 : f32
    %87 = vector.broadcast %cst_26 : f32 to vector<32x1xf32>
    %88 = arith.divf %86, %87 : vector<32x1xf32>
    %89 = vector.broadcast %88 : vector<32x1xf32> to vector<32x32xf32>
    %90 = arith.subf %84, %89 : vector<32x32xf32>
    %91 = arith.mulf %90, %90 : vector<32x32xf32>
    %cst_27 = arith.constant dense<0.000000e+00> : vector<32xf32>
    %92 = vector.multi_reduction <add>, %91, %cst_27 [1] : vector<32x32xf32> to vector<32xf32>
    %93 = vector.shape_cast %92 : vector<32xf32> to vector<32x1xf32>
    %cst_28 = arith.constant 3.200000e+01 : f32
    %94 = vector.broadcast %cst_28 : f32 to vector<32x1xf32>
    %95 = arith.divf %93, %94 : vector<32x1xf32>
    %96 = vector.broadcast %88 : vector<32x1xf32> to vector<32x32xf32>
    %97 = arith.subf %84, %96 : vector<32x32xf32>
    %cst_29 = arith.constant 1.000000e-03 : f32
    %98 = vector.broadcast %cst_29 : f32 to vector<32x1xf32>
    %99 = arith.addf %95, %98 : vector<32x1xf32>
    %100 = math.rsqrt %99 : vector<32x1xf32>
    %101 = vector.broadcast %100 : vector<32x1xf32> to vector<32x32xf32>
    %102 = arith.mulf %97, %101 : vector<32x32xf32>
    %c0_30 = arith.constant 0 : index
    %c0_31 = arith.constant 0 : index
    %103 = vector.load %arg8[%c0_30, %c0_31] : memref<1x32xf32, #tpu.memory_space<vmem>>, vector<1x32xf32>
    %104 = vector.broadcast %103 : vector<1x32xf32> to vector<32x32xf32>
    %105 = arith.mulf %102, %104 : vector<32x32xf32>
    %c0_32 = arith.constant 0 : index
    %c0_33 = arith.constant 0 : index
    %106 = vector.load %arg9[%c0_32, %c0_33] : memref<1x32xf32, #tpu.memory_space<vmem>>, vector<1x32xf32>
    %107 = vector.broadcast %106 : vector<1x32xf32> to vector<32x32xf32>
    %108 = arith.addf %105, %107 : vector<32x32xf32>
    %c0_34 = arith.constant 0 : index
    %c0_35 = arith.constant 0 : index
    %109 = vector.load %arg10[%c0_34, %c0_35] : memref<32x32xf32, #tpu.memory_space<vmem>>, vector<32x32xf32>
    tpu.vector_store %arg10[%c0_34, %c0_35], %108 {strides = array<i32>} : memref<32x32xf32, #tpu.memory_space<vmem>>, vector<32x32xf32>,
    return
  }
}

</mosaic_0001>

<llo_original>
// kernel: many_body_attn.1
$region0: #{many_body_attn.1}
  #allocation0 [shape = 'u32[]', space=smem, size = 0x4, offset = 0x4, fixed_abs, tag = 'smem constant byte address 0x4 - core index']
  #allocation1 [shape = 'u32[144,128]{1,0:T(1,128)}', space=vmem, size = 0x12000, scoped, tag = 'internal scratch']
  %s0 = inlined_call_operand.vmem [shape: f32[32,32], index: 0, kind: input, shape index: {}]
  %s1 = inlined_call_operand.vmem [shape: f32[64,32], index: 1, kind: input, shape index: {}]
  %s2 = inlined_call_operand.vmem [shape: f32[32,32], index: 2, kind: input, shape index: {}]
  %s3 = inlined_call_operand.vmem [shape: f32[1,32], index: 3, kind: input, shape index: {}]
  %s4 = inlined_call_operand.vmem [shape: f32[32,128], index: 4, kind: input, shape index: {}]
  %s5 = inlined_call_operand.vmem [shape: f32[1,128], index: 5, kind: input, shape index: {}]
  %s6 = inlined_call_operand.hbm [shape: f32[256,256], index: 6, kind: input, shape index: {}]
  %s7 = inlined_call_operand.vmem [shape: f32[256,32], index: 7, kind: input, shape index: {}]
  %s8 = inlined_call_operand.vmem [shape: f32[1,32], index: 8, kind: input, shape index: {}]
  %s9 = inlined_call_operand.vmem [shape: f32[1,32], index: 9, kind: input, shape index: {}]
  %s10 = inlined_call_operand.hbm [shape: f32[32,32], index: 10, kind: output, shape index: {}]
  %s11 = sld [smem:[#allocation0]]
  $region54: #{many_body_attn.1} parent=0
    _
  %s13 = ssub.s32 1, %s11
  %s14 = scalar_select 0, %s13, %s11
  $region1: #{many_body_attn.1} parent=0
    #allocation2 [shape = 'u8[262144]{0}', space=vmem, size = 0x40000, scoped, tag = 'input window, operand 6, single buffered']
    #allocation3 [shape = 's32[1]{0}', space=sflag, size = 0x4, scoped, tag = 'scoped memory for many_body_attn.1']
    #allocation4 [shape = 's32[1]{0}', space=sflag, size = 0x4, scoped, tag = 'scoped memory for many_body_attn.1']
    #allocation5 [shape = 'u8[16384]{0}', space=vmem, size = 0x4000, scoped, tag = 'output window, operand 0, single buffered']
    %15 = vsyncpa [#allocation3], 0
    %16 = vsyncpa [#allocation4], 0
    // Predicated region
    $region2: #{many_body_attn.1} parent=1 // pred_check
      _
    $region3: #{many_body_attn.1} parent=1 // pred_check_branch
      %18 = sbr.rel (0) target = $region5
    $region4: #{many_body_attn.1} parent=1 // pred_region
      _
    $region5: #{many_body_attn.1} parent=1 // pred_fallthru
      _
    // Predicated region
    $region6: #{many_body_attn.1} parent=1 // pred_check
      _
    $region7: #{many_body_attn.1} parent=1 // pred_check_branch
      %20 = sbr.rel (0) target = $region9
    $region8: #{many_body_attn.1} parent=1 // pred_region
      _
    $region9: #{many_body_attn.1} parent=1 // pred_fallthru
      _
    // Predicated region
    $region10: #{many_body_attn.1} parent=1 // pred_check
      _
    $region11: #{many_body_attn.1} parent=1 // pred_check_branch
      %22 = sbr.rel (0) target = $region13
    $region12: #{many_body_attn.1} parent=1 // pred_region
      _
    $region13: #{many_body_attn.1} parent=1 // pred_fallthru
      _
    // Predicated region
    $region14: #{many_body_attn.1} parent=1 // pred_check
      _
    $region15: #{many_body_attn.1} parent=1 // pred_check_branch
      %24 = sbr.rel (0) target = $region17
    $region16: #{many_body_attn.1} parent=1 // pred_region
      _
    $region17: #{many_body_attn.1} parent=1 // pred_fallthru
      _
    // Predicated region
    $region18: #{many_body_attn.1} parent=1 // pred_check
      _
    $region19: #{many_body_attn.1} parent=1 // pred_check_branch
      %26 = sbr.rel (0) target = $region21
    $region20: #{many_body_attn.1} parent=1 // pred_region
      _
    $region21: #{many_body_attn.1} parent=1 // pred_fallthru
      _
    // Predicated region
    $region22: #{many_body_attn.1} parent=1 // pred_check
      _
    $region23: #{many_body_attn.1} parent=1 // pred_check_branch
      %28 = sbr.rel (0) target = $region25
    $region24: #{many_body_attn.1} parent=1 // pred_region
      _
    $region25: #{many_body_attn.1} parent=1 // pred_fallthru
      _
    // Predicated region
    $region26: #{many_body_attn.1} parent=1 // pred_check
      _
    $region27: #{many_body_attn.1} parent=1 // pred_check_branch
      %30 = sbr.rel (0) target = $region29
    $region28: #{many_body_attn.1} parent=1 // pred_region
      %s32 = ssub.s32 8192, 8192
      %33 = vsyncadd [#allocation3], %s32
      %s34 = sshll.u32 [#allocation2], 4
      %s35 = int_to_ptr.vmem [resolvable:$true] %s34
      %40 = dma.hbm_to_vmem [thread:$0]  %s6, 8192, %s35, [#allocation3], 256, 256, 16
    $region29: #{many_body_attn.1} parent=1 // pred_fallthru
      _
    // Predicated region
    $region30: #{many_body_attn.1} parent=1 // pred_check
      _
    $region31: #{many_body_attn.1} parent=1 // pred_check_branch
      %42 = sbr.rel (0) target = $region33
    $region32: #{many_body_attn.1} parent=1 // pred_region
      _
    $region33: #{many_body_attn.1} parent=1 // pred_fallthru
      _
    // Predicated region
    $region34: #{many_body_attn.1} parent=1 // pred_check
      _
    $region35: #{many_body_attn.1} parent=1 // pred_check_branch
      %44 = sbr.rel (0) target = $region37
    $region36: #{many_body_attn.1} parent=1 // pred_region
      _
    $region37: #{many_body_attn.1} parent=1 // pred_fallthru
      _
    // Predicated region
    $region38: #{many_body_attn.1} parent=1 // pred_check
      _
    $region39: #{many_body_attn.1} parent=1 // pred_check_branch
      %46 = sbr.rel (0) target = $region41
    $region40: #{many_body_attn.1} parent=1 // pred_region
      _
    $region41: #{many_body_attn.1} parent=1 // pred_fallthru
      _
    // Predicated region
    $region42: #{many_body_attn.1} parent=1 // pred_check
      _
    $region43: #{many_body_attn.1} parent=1 // pred_check_branch
      %48 = sbr.rel (0) target = $region45
    $region44: #{many_body_attn.1} parent=1 // pred_region
      %49 = dma.done [#allocation3], 8192
    $region45: #{many_body_attn.1} parent=1 // pred_fallthru
      _
    %v50 = vld [vmem:[%s0] sm:$0xff]
    %v51 = vld [vmem:[%s0 + $0x8] sm:$0xff]
    %v52 = vld [vmem:[%s0 + $0x10] sm:$0xff]
    %v53 = vld [vmem:[%s0 + $0x18] sm:$0xff]
    %v54 = vld [vmem:[%s2] sm:$0xff]
    %v55 = vld [vmem:[%s2 + $0x8] sm:$0xff]
    %v56 = vld [vmem:[%s2 + $0x10] sm:$0xff]
    %v57 = vld [vmem:[%s2 + $0x18] sm:$0xff]
    %v58 = vld [vmem:[%s3] sm:$0x1]
    %v60 = vlaneseq
    %v61 = vshrl.u32 %v60, 7
    %v62 = vsub.s32 0, %v61
    %v63 = vrot.slane %v58, %v62
    %vm65 = vcmask 261120
    %v67 = vsel %vm65, %v50, 0
    %v70 = vsel %vm65, %v51, 0
    %v73 = vsel %vm65, %v52, 0
    %v76 = vsel %vm65, %v53, 0
    %78 = vmatprep.subr.mxu0 0.0
    %v79 = vand.u32 %v54, 4294901760
    %80 = vmatpush1.msra.mxu0 %v79
    %81 = vmatprep.subr.mxu0 0.0
    %v82 = vand.u32 %v55, 4294901760
    %83 = vmatpush1.msra.mxu0 %v82
    %84 = vmatprep.subr.mxu0 0.0
    %v85 = vand.u32 %v56, 4294901760
    %86 = vmatpush1.msra.mxu0 %v85
    %87 = vmatprep.subr.mxu0 0.0
    %v88 = vand.u32 %v57, 4294901760
    %89 = vmatpush1.msra.mxu0 %v88
    %90 = vmatprep.subr.mxu0 0.0
    %91 = vmatpush1.msra.mxu0 0.0
    %92 = vmatprep.subr.mxu0 0.0
    %93 = vmatpush1.msra.mxu0 0.0
    %94 = vmatprep.subr.mxu0 0.0
    %95 = vmatpush1.msra.mxu0 0.0
    %96 = vmatprep.subr.mxu0 0.0
    %97 = vmatpush1.msra.mxu0 0.0
    %98 = vmatprep.subr.mxu0 0.0
    %99 = vmatpush1.msra.mxu0 0.0
    %100 = vmatprep.subr.mxu0 0.0
    %101 = vmatpush1.msra.mxu0 0.0
    %102 = vmatprep.subr.mxu0 0.0
    %103 = vmatpush1.msra.mxu0 0.0
    %104 = vmatprep.subr.mxu0 0.0
    %105 = vmatpush1.msra.mxu0 0.0
    %106 = vmatprep.subr.mxu0 0.0
    %107 = vmatpush1.msra.mxu0 0.0
    %108 = vmatprep.subr.mxu0 0.0
    %109 = vmatpush1.msra.mxu0 0.0
    %110 = vmatprep.subr.mxu0 0.0
    %111 = vmatpush1.msra.mxu0 0.0
    %112 = vmatprep.subr.mxu0 0.0
    %113 = vmatpush1.msra.mxu0 0.0
    %114 = vmatprep.subr.mxu0 0.0
    %115 = vmatpush1.msra.mxu0 0.0
    %116 = vmatprep.subr.mxu0 0.0
    %117 = vmatpush1.msra.mxu0 0.0
    %118 = vmatprep.subr.mxu0 0.0
    %119 = vmatpush1.msra.mxu0 0.0
    %120 = vmatprep.subr.mxu0 0.0
    %121 = vmatpush1.msra.mxu0 0.0
    %122 = vmatprep.subr.mxu0 0.0
    %123 = vmatpush1.msra.mxu0 0.0
    %124 = vmatprep.subr.mxu0 0.0
    %125 = vmatpush1.msra.mxu0 0.0
    %126 = vmatprep.subr.mxu0 0.0
    %127 = vmatpush1.msra.mxu0 0.0
    %128 = vmatprep.subr.mxu0 0.0
    %129 = vmatpush1.msra.mxu0 0.0
    %130 = vmatprep.subr.mxu0 0.0
    %131 = vmatpush1.msra.mxu0 0.0
    %132 = vmatprep.subr.mxu0 0.0
    %133 = vmatpush1.msra.mxu0 0.0
    %134 = vmatprep.subr.mxu0 0.0
    %135 = vmatpush1.msra.mxu0 0.0
    %136 = vmatprep.subr.mxu0 0.0
    %137 = vmatpush1.msra.mxu0 0.0
    %138 = vmatprep.subr.mxu0 0.0
    %139 = vmatpush1.msra.mxu0 0.0
    %140 = vmatprep.subr.mxu0 0.0
    %141 = vmatpush1.msra.mxu0 0.0
    %142 = vmatprep.subr.mxu0 0.0
    %143 = vmatpush1.msra.mxu0 0.0
    %144 = vmatprep.subr.mxu0 0.0
    %145 = vmatpush1.msra.mxu0 0.0
    %146 = vmatprep.mubr.f32.mxu0 0.0
    %v147 = vand.u32 %v67, 4294901760
    %v148 = vsub.f32 %v67, %v147
    %v149 = vand.u32 %v148, 4294901760
    %v150 = vsub.f32 %v148, %v149
    %v151 = vand.u32 %v150, 4294901760
    %152 = vmatmul.mubr.f32.gmra.mrb[0].mxu0 %v151
    %v153 = vpop.f32.mrb[0].mxu0
    %v154 = vadd.f32 %v63, %v153
    %v155 = vpop.f32.mrb[0].mxu0
    %156 = vmatprep.mubr.f32.mxu0 0.0
    %v157 = vand.u32 %v70, 4294901760
    %v158 = vsub.f32 %v70, %v157
    %v159 = vand.u32 %v158, 4294901760
    %v160 = vsub.f32 %v158, %v159
    %v161 = vand.u32 %v160, 4294901760
    %162 = vmatmul.mubr.f32.gmra.mrb[0].mxu0 %v161
    %v163 = vpop.f32.mrb[0].mxu0
    %v164 = vadd.f32 %v63, %v163
    %v165 = vpop.f32.mrb[0].mxu0
    %166 = vmatprep.mubr.f32.mxu0 0.0
    %v167 = vand.u32 %v73, 4294901760
    %v168 = vsub.f32 %v73, %v167
    %v169 = vand.u32 %v168, 4294901760
    %v170 = vsub.f32 %v168, %v169
    %v171 = vand.u32 %v170, 4294901760
    %172 = vmatmul.mubr.f32.gmra.mrb[0].mxu0 %v171
    %v173 = vpop.f32.mrb[0].mxu0
    %v174 = vadd.f32 %v63, %v173
    %v175 = vpop.f32.mrb[0].mxu0
    %176 = vmatprep.mubr.f32.mxu0 0.0
    %v177 = vand.u32 %v76, 4294901760
    %v178 = vsub.f32 %v76, %v177
    %v179 = vand.u32 %v178, 4294901760
    %v180 = vsub.f32 %v178, %v179
    %v181 = vand.u32 %v180, 4294901760
    %182 = vmatmul.mubr.f32.gmra.mrb[0].mxu0 %v181
    %v183 = vpop.f32.mrb[0].mxu0
    %v184 = vadd.f32 %v63, %v183
    %v185 = vpop.f32.mrb[0].mxu0
    %186 = vdwg.mxu0
    %187 = vmatprep.subr.mxu0 0.0
    %v188 = vand.u32 %v54, 4294901760
    %v189 = vsub.f32 %v54, %v188
    %v190 = vand.u32 %v189, 4294901760
    %v191 = vsub.f32 %v189, %v190
    %v192 = vand.u32 %v191, 4294901760
    %193 = vmatpush1.msra.mxu0 %v192
    %194 = vmatprep.subr.mxu0 0.0
    %v195 = vand.u32 %v55, 4294901760
    %v196 = vsub.f32 %v55, %v195
    %v197 = vand.u32 %v196, 4294901760
    %v198 = vsub.f32 %v196, %v197
    %v199 = vand.u32 %v198, 4294901760
    %200 = vmatpush1.msra.mxu0 %v199
    %201 = vmatprep.subr.mxu0 0.0
    %v202 = vand.u32 %v56, 4294901760
    %v203 = vsub.f32 %v56, %v202
    %v204 = vand.u32 %v203, 4294901760
    %v205 = vsub.f32 %v203, %v204
    %v206 = vand.u32 %v205, 4294901760
    %207 = vmatpush1.msra.mxu0 %v206
    %208 = vmatprep.subr.mxu0 0.0
    %v209 = vand.u32 %v57, 4294901760
    %v210 = vsub.f32 %v57, %v209
    %v211 = vand.u32 %v210, 4294901760
    %v212 = vsub.f32 %v210, %v211
    %v213 = vand.u32 %v212, 4294901760
    %214 = vmatpush1.msra.mxu0 %v213
    %215 = vmatprep.subr.mxu0 0.0
    %216 = vmatpush1.msra.mxu0 0.0
    %217 = vmatprep.subr.mxu0 0.0
    %218 = vmatpush1.msra.mxu0 0.0
    %219 = vmatprep.subr.mxu0 0.0
    %220 = vmatpush1.msra.mxu0 0.0
    %221 = vmatprep.subr.mxu0 0.0
    %222 = vmatpush1.msra.mxu0 0.0
    %223 = vmatprep.subr.mxu0 0.0
    %224 = vmatpush1.msra.mxu0 0.0
    %225 = vmatprep.subr.mxu0 0.0
    %226 = vmatpush1.msra.mxu0 0.0
    %227 = vmatprep.subr.mxu0 0.0
    %228 = vmatpush1.msra.mxu0 0.0
    %229 = vmatprep.subr.mxu0 0.0
    %230 = vmatpush1.msra.mxu0 0.0
    %231 = vmatprep.subr.mxu0 0.0
    %232 = vmatpush1.msra.mxu0 0.0
    %233 = vmatprep.subr.mxu0 0.0
    %234 = vmatpush1.msra.mxu0 0.0
    %235 = vmatprep.subr.mxu0 0.0
    %236 = vmatpush1.msra.mxu0 0.0
    %237 = vmatprep.subr.mxu0 0.0
    %238 = vmatpush1.msra.mxu0 0.0
    %239 = vmatprep.subr.mxu0 0.0
    %240 = vmatpush1.msra.mxu0 0.0
    %241 = vmatprep.subr.mxu0 0.0
    %242 = vmatpush1.msra.mxu0 0.0
    %243 = vmatprep.subr.mxu0 0.0
    %244 = vmatpush1.msra.mxu0 0.0
    %245 = vmatprep.subr.mxu0 0.0
    %246 = vmatpush1.msra.mxu0 0.0
    %247 = vmatprep.subr.mxu0 0.0
    %248 = vmatpush1.msra.mxu0 0.0
    %249 = vmatprep.subr.mxu0 0.0
    %250 = vmatpush1.msra.mxu0 0.0
    %251 = vmatprep.subr.mxu0 0.0
    %252 = vmatpush1.msra.mxu0 0.0
    %253 = vmatprep.subr.mxu0 0.0
    %254 = vmatpush1.msra.mxu0 0.0
    %255 = vmatprep.subr.mxu0 0.0
    %256 = vmatpush1.msra.mxu0 0.0
    %257 = vmatprep.subr.mxu0 0.0
    %258 = vmatpush1.msra.mxu0 0.0
    %259 = vmatprep.subr.mxu0 0.0
    %260 = vmatpush1.msra.mxu0 0.0
    %261 = vmatprep.subr.mxu0 0.0
    %262 = vmatpush1.msra.mxu0 0.0
    %263 = vmatprep.subr.mxu0 0.0
    %264 = vmatpush1.msra.mxu0 0.0
    %265 = vmatprep.subr.mxu0 0.0
    %266 = vmatpush1.msra.mxu0 0.0
    %267 = vmatprep.subr.mxu0 0.0
    %268 = vmatpush1.msra.mxu0 0.0
    %269 = vmatprep.subr.mxu0 0.0
    %270 = vmatpush1.msra.mxu0 0.0
    %271 = vmatprep.mubr.f32.mxu0 0.0
    %v272 = vand.u32 %v67, 4294901760
    %273 = vmatmul.mubr.f32.gmra.mrb[0].mxu0 %v272
    %v274 = vpop.f32.mrb[0].mxu0
    %v275 = vadd.f32 %v154, %v274
    %v276 = vpop.f32.mrb[0].mxu0
    %277 = vmatprep.mubr.f32.mxu0 0.0
    %v278 = vand.u32 %v70, 4294901760
    %279 = vmatmul.mubr.f32.gmra.mrb[0].mxu0 %v278
    %v280 = vpop.f32.mrb[0].mxu0
    %v281 = vadd.f32 %v164, %v280
    %v282 = vpop.f32.mrb[0].mxu0
    %283 = vmatprep.mubr.f32.mxu0 0.0
    %v284 = vand.u32 %v73, 4294901760
    %285 = vmatmul.mubr.f32.gmra.mrb[0].mxu0 %v284
    %v286 = vpop.f32.mrb[0].mxu0
    %v287 = vadd.f32 %v174, %v286
    %v288 = vpop.f32.mrb[0].mxu0
    %289 = vmatprep.mubr.f32.mxu0 0.0
    %v290 = vand.u32 %v76, 4294901760
    %291 = vmatmul.mubr.f32.gmra.mrb[0].mxu0 %v290
    %v292 = vpop.f32.mrb[0].mxu0
    %v293 = vadd.f32 %v184, %v292
    %v294 = vpop.f32.mrb[0].mxu0
    %295 = vdwg.mxu0
    %296 = vmatprep.subr.mxu0 0.0
    %v297 = vand.u32 %v54, 4294901760
    %v298 = vsub.f32 %v54, %v297
    %299 = vmatpush1.msra.mxu0 %v298
    %300 = vmatprep.subr.mxu0 0.0
    %v301 = vand.u32 %v55, 4294901760
    %v302 = vsub.f32 %v55, %v301
    %303 = vmatpush1.msra.mxu0 %v302
    %304 = vmatprep.subr.mxu0 0.0
    %v305 = vand.u32 %v56, 4294901760
    %v306 = vsub.f32 %v56, %v305
    %307 = vmatpush1.msra.mxu0 %v306
    %308 = vmatprep.subr.mxu0 0.0
    %v309 = vand.u32 %v57, 4294901760
    %v310 = vsub.f32 %v57, %v309
    %311 = vmatpush1.msra.mxu0 %v310
    %312 = vmatprep.subr.mxu0 0.0
    %313 = vmatpush1.msra.mxu0 0.0
    %314 = vmatprep.subr.mxu0 0.0
    %315 = vmatpush1.msra.mxu0 0.0
    %316 = vmatprep.subr.mxu0 0.0
    %317 = vmatpush1.msra.mxu0 0.0
    %318 = vmatprep.subr.mxu0 0.0
    %319 = vmatpush1.msra.mxu0 0.0
    %320 = vmatprep.subr.mxu0 0.0
    %321 = vmatpush1.msra.mxu0 0.0
    %322 = vmatprep.subr.mxu0 0.0
    %323 = vmatpush1.msra.mxu0 0.0
    %324 = vmatprep.subr.mxu0 0.0
    %325 = vmatpush1.msra.mxu0 0.0
    %326 = vmatprep.subr.mxu0 0.0
    %327 = vmatpush1.msra.mxu0 0.0
    %328 = vmatprep.subr.mxu0 0.0
    %329 = vmatpush1.msra.mxu0 0.0
    %330 = vmatprep.subr.mxu0 0.0
    %331 = vmatpush1.msra.mxu0 0.0
    %332 = vmatprep.subr.mxu0 0.0
    %333 = vmatpush1.msra.mxu0 0.0
    %334 = vmatprep.subr.mxu0 0.0
    %335 = vmatpush1.msra.mxu0 0.0
    %336 = vmatprep.subr.mxu0 0.0
    %337 = vmatpush1.msra.mxu0 0.0
    %338 = vmatprep.subr.mxu0 0.0
    %339 = vmatpush1.msra.mxu0 0.0
    %340 = vmatprep.subr.mxu0 0.0
    %341 = vmatpush1.msra.mxu0 0.0
    %342 = vmatprep.subr.mxu0 0.0
    %343 = vmatpush1.msra.mxu0 0.0
    %344 = vmatprep.subr.mxu0 0.0
    %345 = vmatpush1.msra.mxu0 0.0
    %346 = vmatprep.subr.mxu0 0.0
    %347 = vmatpush1.msra.mxu0 0.0
    %348 = vmatprep.subr.mxu0 0.0
    %349 = vmatpush1.msra.mxu0 0.0
    %350 = vmatprep.subr.mxu0 0.0
    %351 = vmatpush1.msra.mxu0 0.0
    %352 = vmatprep.subr.mxu0 0.0
    %353 = vmatpush1.msra.mxu0 0.0
    %354 = vmatprep.subr.mxu0 0.0
    %355 = vmatpush1.msra.mxu0 0.0
    %356 = vmatprep.subr.mxu0 0.0
    %357 = vmatpush1.msra.mxu0 0.0
    %358 = vmatprep.subr.mxu0 0.0
    %359 = vmatpush1.msra.mxu0 0.0
    %360 = vmatprep.subr.mxu0 0.0
    %361 = vmatpush1.msra.mxu0 0.0
    %362 = vmatprep.subr.mxu0 0.0
    %363 = vmatpush1.msra.mxu0 0.0
    %364 = vmatprep.subr.mxu0 0.0
    %365 = vmatpush1.msra.mxu0 0.0
    %366 = vmatprep.subr.mxu0 0.0
    %367 = vmatpush1.msra.mxu0 0.0
    %368 = vmatprep.mubr.f32.mxu0 0.0
    %v369 = vand.u32 %v67, 4294901760
    %v370 = vsub.f32 %v67, %v369
    %371 = vmatmul.mubr.f32.gmra.mrb[0].mxu0 %v370
    %v372 = vpop.f32.mrb[0].mxu0
    %v373 = vadd.f32 %v275, %v372
    %v374 = vpop.f32.mrb[0].mxu0
    %375 = vmatprep.mubr.f32.mxu0 0.0
    %v376 = vand.u32 %v70, 4294901760
    %v377 = vsub.f32 %v70, %v376
    %378 = vmatmul.mubr.f32.gmra.mrb[0].mxu0 %v377
    %v379 = vpop.f32.mrb[0].mxu0
    %v380 = vadd.f32 %v281, %v379
    %v381 = vpop.f32.mrb[0].mxu0
    %382 = vmatprep.mubr.f32.mxu0 0.0
    %v383 = vand.u32 %v73, 4294901760
    %v384 = vsub.f32 %v73, %v383
    %385 = vmatmul.mubr.f32.gmra.mrb[0].mxu0 %v384
    %v386 = vpop.f32.mrb[0].mxu0
    %v387 = vadd.f32 %v287, %v386
    %v388 = vpop.f32.mrb[0].mxu0
    %389 = vmatprep.mubr.f32.mxu0 0.0
    %v390 = vand.u32 %v76, 4294901760
    %v391 = vsub.f32 %v76, %v390
    %392 = vmatmul.mubr.f32.gmra.mrb[0].mxu0 %v391
    %v393 = vpop.f32.mrb[0].mxu0
    %v394 = vadd.f32 %v293, %v393
    %v395 = vpop.f32.mrb[0].mxu0
    %396 = vdwg.mxu0
    %397 = vmatprep.subr.mxu0 0.0
    %v398 = vand.u32 %v54, 4294901760
    %399 = vmatpush1.msra.mxu0 %v398
    %400 = vmatprep.subr.mxu0 0.0
    %v401 = vand.u32 %v55, 4294901760
    %402 = vmatpush1.msra.mxu0 %v401
    %403 = vmatprep.subr.mxu0 0.0
    %v404 = vand.u32 %v56, 4294901760
    %405 = vmatpush1.msra.mxu0 %v404
    %406 = vmatprep.subr.mxu0 0.0
    %v407 = vand.u32 %v57, 4294901760
    %408 = vmatpush1.msra.mxu0 %v407
    %409 = vmatprep.subr.mxu0 0.0
    %410 = vmatpush1.msra.mxu0 0.0
    %411 = vmatprep.subr.mxu0 0.0
    %412 = vmatpush1.msra.mxu0 0.0
    %413 = vmatprep.subr.mxu0 0.0
    %414 = vmatpush1.msra.mxu0 0.0
    %415 = vmatprep.subr.mxu0 0.0
    %416 = vmatpush1.msra.mxu0 0.0
    %417 = vmatprep.subr.mxu0 0.0
    %418 = vmatpush1.msra.mxu0 0.0
    %419 = vmatprep.subr.mxu0 0.0
    %420 = vmatpush1.msra.mxu0 0.0
    %421 = vmatprep.subr.mxu0 0.0
    %422 = vmatpush1.msra.mxu0 0.0
    %423 = vmatprep.subr.mxu0 0.0
    %424 = vmatpush1.msra.mxu0 0.0
    %425 = vmatprep.subr.mxu0 0.0
    %426 = vmatpush1.msra.mxu0 0.0
    %427 = vmatprep.subr.mxu0 0.0
    %428 = vmatpush1.msra.mxu0 0.0
    %429 = vmatprep.subr.mxu0 0.0
    %430 = vmatpush1.msra.mxu0 0.0
    %431 = vmatprep.subr.mxu0 0.0
    %432 = vmatpush1.msra.mxu0 0.0
    %433 = vmatprep.subr.mxu0 0.0
    %434 = vmatpush1.msra.mxu0 0.0
    %435 = vmatprep.subr.mxu0 0.0
    %436 = vmatpush1.msra.mxu0 0.0
    %437 = vmatprep.subr.mxu0 0.0
    %438 = vmatpush1.msra.mxu0 0.0
    %439 = vmatprep.subr.mxu0 0.0
    %440 = vmatpush1.msra.mxu0 0.0
    %441 = vmatprep.subr.mxu0 0.0
    %442 = vmatpush1.msra.mxu0 0.0
    %443 = vmatprep.subr.mxu0 0.0
    %444 = vmatpush1.msra.mxu0 0.0
    %445 = vmatprep.subr.mxu0 0.0
    %446 = vmatpush1.msra.mxu0 0.0
    %447 = vmatprep.subr.mxu0 0.0
    %448 = vmatpush1.msra.mxu0 0.0
    %449 = vmatprep.subr.mxu0 0.0
    %450 = vmatpush1.msra.mxu0 0.0
    %451 = vmatprep.subr.mxu0 0.0
    %452 = vmatpush1.msra.mxu0 0.0
    %453 = vmatprep.subr.mxu0 0.0
    %454 = vmatpush1.msra.mxu0 0.0
    %455 = vmatprep.subr.mxu0 0.0
    %456 = vmatpush1.msra.mxu0 0.0
    %457 = vmatprep.subr.mxu0 0.0
    %458 = vmatpush1.msra.mxu0 0.0
    %459 = vmatprep.subr.mxu0 0.0
    %460 = vmatpush1.msra.mxu0 0.0
    %461 = vmatprep.subr.mxu0 0.0
    %462 = vmatpush1.msra.mxu0 0.0
    %463 = vmatprep.subr.mxu0 0.0
    %464 = vmatpush1.msra.mxu0 0.0
    %465 = vmatprep.mubr.f32.mxu0 0.0
    %v466 = vand.u32 %v67, 4294901760
    %v467 = vsub.f32 %v67, %v466
    %v468 = vand.u32 %v467, 4294901760
    %469 = vmatmul.mubr.f32.gmra.mrb[0].mxu0 %v468
    %v470 = vpop.f32.mrb[0].mxu0
    %v471 = vadd.f32 %v373, %v470
    %v472 = vpop.f32.mrb[0].mxu0
    %473 = vmatprep.mubr.f32.mxu0 0.0
    %v474 = vand.u32 %v70, 4294901760
    %v475 = vsub.f32 %v70, %v474
    %v476 = vand.u32 %v475, 4294901760
    %477 = vmatmul.mubr.f32.gmra.mrb[0].mxu0 %v476
    %v478 = vpop.f32.mrb[0].mxu0
    %v479 = vadd.f32 %v380, %v478
    %v480 = vpop.f32.mrb[0].mxu0
    %481 = vmatprep.mubr.f32.mxu0 0.0
    %v482 = vand.u32 %v73, 4294901760
    %v483 = vsub.f32 %v73, %v482
    %v484 = vand.u32 %v483, 4294901760
    %485 = vmatmul.mubr.f32.gmra.mrb[0].mxu0 %v484
    %v486 = vpop.f32.mrb[0].mxu0
    %v487 = vadd.f32 %v387, %v486
    %v488 = vpop.f32.mrb[0].mxu0
    %489 = vmatprep.mubr.f32.mxu0 0.0
    %v490 = vand.u32 %v76, 4294901760
    %v491 = vsub.f32 %v76, %v490
    %v492 = vand.u32 %v491, 4294901760
    %493 = vmatmul.mubr.f32.gmra.mrb[0].mxu0 %v492
    %v494 = vpop.f32.mrb[0].mxu0
    %v495 = vadd.f32 %v394, %v494
    %v496 = vpop.f32.mrb[0].mxu0
    %497 = vdwg.mxu0
    %498 = vmatprep.subr.mxu0 0.0
    %v499 = vand.u32 %v54, 4294901760
    %v500 = vsub.f32 %v54, %v499
    %v501 = vand.u32 %v500, 4294901760
    %502 = vmatpush1.msra.mxu0 %v501
    %503 = vmatprep.subr.mxu0 0.0
    %v504 = vand.u32 %v55, 4294901760
    %v505 = vsub.f32 %v55, %v504
    %v506 = vand.u32 %v505, 4294901760
    %507 = vmatpush1.msra.mxu0 %v506
    %508 = vmatprep.subr.mxu0 0.0
    %v509 = vand.u32 %v56, 4294901760
    %v510 = vsub.f32 %v56, %v509
    %v511 = vand.u32 %v510, 4294901760
    %512 = vmatpush1.msra.mxu0 %v511
    %513 = vmatprep.subr.mxu0 0.0
    %v514 = vand.u32 %v57, 4294901760
    %v515 = vsub.f32 %v57, %v514
    %v516 = vand.u32 %v515, 4294901760
    %517 = vmatpush1.msra.mxu0 %v516
    %518 = vmatprep.subr.mxu0 0.0
    %519 = vmatpush1.msra.mxu0 0.0
    %520 = vmatprep.subr.mxu0 0.0
    %521 = vmatpush1.msra.mxu0 0.0
    %522 = vmatprep.subr.mxu0 0.0
    %523 = vmatpush1.msra.mxu0 0.0
    %524 = vmatprep.subr.mxu0 0.0
    %525 = vmatpush1.msra.mxu0 0.0
    %526 = vmatprep.subr.mxu0 0.0
    %527 = vmatpush1.msra.mxu0 0.0
    %528 = vmatprep.subr.mxu0 0.0
    %529 = vmatpush1.msra.mxu0 0.0
    %530 = vmatprep.subr.mxu0 0.0
    %531 = vmatpush1.msra.mxu0 0.0
    %532 = vmatprep.subr.mxu0 0.0
    %533 = vmatpush1.msra.mxu0 0.0
    %534 = vmatprep.subr.mxu0 0.0
    %535 = vmatpush1.msra.mxu0 0.0
    %536 = vmatprep.subr.mxu0 0.0
    %537 = vmatpush1.msra.mxu0 0.0
    %538 = vmatprep.subr.mxu0 0.0
    %539 = vmatpush1.msra.mxu0 0.0
    %540 = vmatprep.subr.mxu0 0.0
    %541 = vmatpush1.msra.mxu0 0.0
    %542 = vmatprep.subr.mxu0 0.0
    %543 = vmatpush1.msra.mxu0 0.0
    %544 = vmatprep.subr.mxu0 0.0
    %545 = vmatpush1.msra.mxu0 0.0
    %546 = vmatprep.subr.mxu0 0.0
    %547 = vmatpush1.msra.mxu0 0.0
    %548 = vmatprep.subr.mxu0 0.0
    %549 = vmatpush1.msra.mxu0 0.0
    %550 = vmatprep.subr.mxu0 0.0
    %551 = vmatpush1.msra.mxu0 0.0
    %552 = vmatprep.subr.mxu0 0.0
    %553 = vmatpush1.msra.mxu0 0.0
    %554 = vmatprep.subr.mxu0 0.0
    %555 = vmatpush1.msra.mxu0 0.0
    %556 = vmatprep.subr.mxu0 0.0
    %557 = vmatpush1.msra.mxu0 0.0
    %558 = vmatprep.subr.mxu0 0.0
    %559 = vmatpush1.msra.mxu0 0.0
    %560 = vmatprep.subr.mxu0 0.0
    %561 = vmatpush1.msra.mxu0 0.0
    %562 = vmatprep.subr.mxu0 0.0
    %563 = vmatpush1.msra.mxu0 0.0
    %564 = vmatprep.subr.mxu0 0.0
    %565 = vmatpush1.msra.mxu0 0.0
    %566 = vmatprep.subr.mxu0 0.0
    %567 = vmatpush1.msra.mxu0 0.0
    %568 = vmatprep.subr.mxu0 0.0
    %569 = vmatpush1.msra.mxu0 0.0
    %570 = vmatprep.subr.mxu0 0.0
    %571 = vmatpush1.msra.mxu0 0.0
    %572 = vmatprep.subr.mxu0 0.0
    %573 = vmatpush1.msra.mxu0 0.0
    %574 = vmatprep.mubr.f32.mxu0 0.0
    %v575 = vand.u32 %v67, 4294901760
    %576 = vmatmul.mubr.f32.gmra.mrb[0].mxu0 %v575
    %v577 = vpop.f32.mrb[0].mxu0
    %v578 = vadd.f32 %v471, %v577
    %v579 = vpop.f32.mrb[0].mxu0
    %580 = vmatprep.mubr.f32.mxu0 0.0
    %v581 = vand.u32 %v70, 4294901760
    %582 = vmatmul.mubr.f32.gmra.mrb[0].mxu0 %v581
    %v583 = vpop.f32.mrb[0].mxu0
    %v584 = vadd.f32 %v479, %v583
    %v585 = vpop.f32.mrb[0].mxu0
    %586 = vmatprep.mubr.f32.mxu0 0.0
    %v587 = vand.u32 %v73, 4294901760
    %588 = vmatmul.mubr.f32.gmra.mrb[0].mxu0 %v587
    %v589 = vpop.f32.mrb[0].mxu0
    %v590 = vadd.f32 %v487, %v589
    %v591 = vpop.f32.mrb[0].mxu0
    %592 = vmatprep.mubr.f32.mxu0 0.0
    %v593 = vand.u32 %v76, 4294901760
    %594 = vmatmul.mubr.f32.gmra.mrb[0].mxu0 %v593
    %v595 = vpop.f32.mrb[0].mxu0
    %v596 = vadd.f32 %v495, %v595
    %v597 = vpop.f32.mrb[0].mxu0
    %598 = vdwg.mxu0
    %599 = vmatprep.subr.mxu0 0.0
    %v600 = vand.u32 %v54, 4294901760
    %601 = vmatpush1.msra.mxu0 %v600
    %602 = vmatprep.subr.mxu0 0.0
    %v603 = vand.u32 %v55, 4294901760
    %604 = vmatpush1.msra.mxu0 %v603
    %605 = vmatprep.subr.mxu0 0.0
    %v606 = vand.u32 %v56, 4294901760
    %607 = vmatpush1.msra.mxu0 %v606
    %608 = vmatprep.subr.mxu0 0.0
    %v609 = vand.u32 %v57, 4294901760
    %610 = vmatpush1.msra.mxu0 %v609
    %611 = vmatprep.subr.mxu0 0.0
    %612 = vmatpush1.msra.mxu0 0.0
    %613 = vmatprep.subr.mxu0 0.0
    %614 = vmatpush1.msra.mxu0 0.0
    %615 = vmatprep.subr.mxu0 0.0
    %616 = vmatpush1.msra.mxu0 0.0
    %617 = vmatprep.subr.mxu0 0.0
    %618 = vmatpush1.msra.mxu0 0.0
    %619 = vmatprep.subr.mxu0 0.0
    %620 = vmatpush1.msra.mxu0 0.0
    %621 = vmatprep.subr.mxu0 0.0
    %622 = vmatpush1.msra.mxu0 0.0
    %623 = vmatprep.subr.mxu0 0.0
    %624 = vmatpush1.msra.mxu0 0.0
    %625 = vmatprep.subr.mxu0 0.0
    %626 = vmatpush1.msra.mxu0 0.0
    %627 = vmatprep.subr.mxu0 0.0
    %628 = vmatpush1.msra.mxu0 0.0
    %629 = vmatprep.subr.mxu0 0.0
    %630 = vmatpush1.msra.mxu0 0.0
    %631 = vmatprep.subr.mxu0 0.0
    %632 = vmatpush1.msra.mxu0 0.0
    %633 = vmatprep.subr.mxu0 0.0
    %634 = vmatpush1.msra.mxu0 0.0
    %635 = vmatprep.subr.mxu0 0.0
    %636 = vmatpush1.msra.mxu0 0.0
    %637 = vmatprep.subr.mxu0 0.0
    %638 = vmatpush1.msra.mxu0 0.0
    %639 = vmatprep.subr.mxu0 0.0
    %640 = vmatpush1.msra.mxu0 0.0
    %641 = vmatprep.subr.mxu0 0.0
    %642 = vmatpush1.msra.mxu0 0.0
    %643 = vmatprep.subr.mxu0 0.0
    %644 = vmatpush1.msra.mxu0 0.0
    %645 = vmatprep.subr.mxu0 0.0
    %646 = vmatpush1.msra.mxu0 0.0
    %647 = vmatprep.subr.mxu0 0.0
    %648 = vmatpush1.msra.mxu0 0.0
    %649 = vmatprep.subr.mxu0 0.0
    %650 = vmatpush1.msra.mxu0 0.0
    %651 = vmatprep.subr.mxu0 0.0
    %652 = vmatpush1.msra.mxu0 0.0
    %653 = vmatprep.subr.mxu0 0.0
    %654 = vmatpush1.msra.mxu0 0.0
    %655 = vmatprep.subr.mxu0 0.0
    %656 = vmatpush1.msra.mxu0 0.0
    %657 = vmatprep.subr.mxu0 0.0
    %658 = vmatpush1.msra.mxu0 0.0
    %659 = vmatprep.subr.mxu0 0.0
    %660 = vmatpush1.msra.mxu0 0.0
    %661 = vmatprep.subr.mxu0 0.0
    %662 = vmatpush1.msra.mxu0 0.0
    %663 = vmatprep.subr.mxu0 0.0
    %664 = vmatpush1.msra.mxu0 0.0
    %665 = vmatprep.subr.mxu0 0.0
    %666 = vmatpush1.msra.mxu0 0.0
    %667 = vmatprep.mubr.f32.mxu0 0.0
    %v668 = vand.u32 %v67, 4294901760
    %669 = vmatmul.mubr.f32.gmra.mrb[0].mxu0 %v668
    %v670 = vpop.f32.mrb[0].mxu0
    %v671 = vadd.f32 %v578, %v670
    %v672 = vpop.f32.mrb[0].mxu0
    %673 = vmatprep.mubr.f32.mxu0 0.0
    %v674 = vand.u32 %v70, 4294901760
    %675 = vmatmul.mubr.f32.gmra.mrb[0].mxu0 %v674
    %v676 = vpop.f32.mrb[0].mxu0
    %v677 = vadd.f32 %v584, %v676
    %v678 = vpop.f32.mrb[0].mxu0
    %679 = vmatprep.mubr.f32.mxu0 0.0
    %v680 = vand.u32 %v73, 4294901760
    %681 = vmatmul.mubr.f32.gmra.mrb[0].mxu0 %v680
    %v682 = vpop.f32.mrb[0].mxu0
    %v683 = vadd.f32 %v590, %v682
    %v684 = vpop.f32.mrb[0].mxu0
    %685 = vmatprep.mubr.f32.mxu0 0.0
    %v686 = vand.u32 %v76, 4294901760
    %687 = vmatmul.mubr.f32.gmra.mrb[0].mxu0 %v686
    %v688 = vpop.f32.mrb[0].mxu0
    %v689 = vadd.f32 %v596, %v688
    %v690 = vpop.f32.mrb[0].mxu0
    %691 = vdwg.mxu0
    %696 = vrot.lane.b32.xlu0 %v671, 32
    %v697 = vpop.permute.xlu0 %696
    %698 = vrot.lane.b32.xlu0 %v677, 32
    %v699 = vpop.permute.xlu0 %698
    %700 = vrot.lane.b32.xlu0 %v683, 32
    %v701 = vpop.permute.xlu0 %700
    %702 = vrot.lane.b32.xlu0 %v689, 32
    %v703 = vpop.permute.xlu0 %702
    %708 = vrot.lane.b32.xlu0 %v671, 64
    %v709 = vpop.permute.xlu0 %708
    %710 = vrot.lane.b32.xlu0 %v677, 64
    %v711 = vpop.permute.xlu0 %710
    %712 = vrot.lane.b32.xlu0 %v683, 64
    %v713 = vpop.permute.xlu0 %712
    %714 = vrot.lane.b32.xlu0 %v689, 64
    %v715 = vpop.permute.xlu0 %714
    %720 = vrot.lane.b32.xlu0 %v671, 96
    %v721 = vpop.permute.xlu0 %720
    %722 = vrot.lane.b32.xlu0 %v677, 96
    %v723 = vpop.permute.xlu0 %722
    %724 = vrot.lane.b32.xlu0 %v683, 96
    %v725 = vpop.permute.xlu0 %724
    %726 = vrot.lane.b32.xlu0 %v689, 96
    %v727 = vpop.permute.xlu0 %726
    %v732 = vsel %vm65, %v671, %v697
    %v733 = vsel %vm65, %v677, %v699
    %v734 = vsel %vm65, %v683, %v701
    %v735 = vsel %vm65, %v689, %v703
    %vm736 = vcmask 523264
    %v737 = vsel %vm736, %v732, %v709
    %v738 = vsel %vm736, %v733, %v711
    %v739 = vsel %vm736, %v734, %v713
    %v740 = vsel %vm736, %v735, %v715
    %vm741 = vcmask 785408
    %v742 = vsel %vm741, %v737, %v721
    %v743 = vsel %vm741, %v738, %v723
    %v744 = vsel %vm741, %v739, %v725
    %v745 = vsel %vm741, %v740, %v727
    %v746 = vld [vmem:[%s1] sm:$0xff]
    %v747 = vld [vmem:[%s1 + $0x8] sm:$0xff]
    %v748 = vld [vmem:[%s1 + $0x10] sm:$0xff]
    %v749 = vld [vmem:[%s1 + $0x18] sm:$0xff]
    %v750 = vld [vmem:[%s1 + $0x20] sm:$0xff]
    %v751 = vld [vmem:[%s1 + $0x28] sm:$0xff]
    %v752 = vld [vmem:[%s1 + $0x30] sm:$0xff]
    %v753 = vld [vmem:[%s1 + $0x38] sm:$0xff]
    %v754 = vld [vmem:[%s4] sm:$0xff]
    %v755 = vld [vmem:[%s4 + $0x8] sm:$0xff]
    %v756 = vld [vmem:[%s4 + $0x10] sm:$0xff]
    %v757 = vld [vmem:[%s4 + $0x18] sm:$0xff]
    %v758 = vld [vmem:[%s5] sm:$0x1]
    %v760 = vlaneseq
    %v761 = vshrl.u32 %v760, 7
    %v762 = vsub.s32 0, %v761
    %v763 = vrot.slane %v758, %v762
    %v766 = vsel %vm65, %v746, 0
    %v769 = vsel %vm65, %v747, 0
    %v772 = vsel %vm65, %v748, 0
    %v775 = vsel %vm65, %v749, 0
    %v778 = vsel %vm65, %v750, 0
    %v781 = vsel %vm65, %v751, 0
    %v784 = vsel %vm65, %v752, 0
    %v787 = vsel %vm65, %v753, 0
    %789 = vmatprep.subr.mxu0 0.0
    %v790 = vand.u32 %v754, 4294901760
    %791 = vmatpush1.msra.mxu0 %v790
    %792 = vmatprep.subr.mxu0 0.0
    %v793 = vand.u32 %v755, 4294901760
    %794 = vmatpush1.msra.mxu0 %v793
    %795 = vmatprep.subr.mxu0 0.0
    %v796 = vand.u32 %v756, 4294901760
    %797 = vmatpush1.msra.mxu0 %v796
    %798 = vmatprep.subr.mxu0 0.0
    %v799 = vand.u32 %v757, 4294901760
    %800 = vmatpush1.msra.mxu0 %v799
    %801 = vmatprep.subr.mxu0 0.0
    %802 = vmatpush1.msra.mxu0 0.0
    %803 = vmatprep.subr.mxu0 0.0
    %804 = vmatpush1.msra.mxu0 0.0
    %805 = vmatprep.subr.mxu0 0.0
    %806 = vmatpush1.msra.mxu0 0.0
    %807 = vmatprep.subr.mxu0 0.0
    %808 = vmatpush1.msra.mxu0 0.0
    %809 = vmatprep.subr.mxu0 0.0
    %810 = vmatpush1.msra.mxu0 0.0
    %811 = vmatprep.subr.mxu0 0.0
    %812 = vmatpush1.msra.mxu0 0.0
    %813 = vmatprep.subr.mxu0 0.0
    %814 = vmatpush1.msra.mxu0 0.0
    %815 = vmatprep.subr.mxu0 0.0
    %816 = vmatpush1.msra.mxu0 0.0
    %817 = vmatprep.subr.mxu0 0.0
    %818 = vmatpush1.msra.mxu0 0.0
    %819 = vmatprep.subr.mxu0 0.0
    %820 = vmatpush1.msra.mxu0 0.0
    %821 = vmatprep.subr.mxu0 0.0
    %822 = vmatpush1.msra.mxu0 0.0
    %823 = vmatprep.subr.mxu0 0.0
    %824 = vmatpush1.msra.mxu0 0.0
    %825 = vmatprep.subr.mxu0 0.0
    %826 = vmatpush1.msra.mxu0 0.0
    %827 = vmatprep.subr.mxu0 0.0
    %828 = vmatpush1.msra.mxu0 0.0
    %829 = vmatprep.subr.mxu0 0.0
    %830 = vmatpush1.msra.mxu0 0.0
    %831 = vmatprep.subr.mxu0 0.0
    %832 = vmatpush1.msra.mxu0 0.0
    %833 = vmatprep.subr.mxu0 0.0
    %834 = vmatpush1.msra.mxu0 0.0
    %835 = vmatprep.subr.mxu0 0.0
    %836 = vmatpush1.msra.mxu0 0.0
    %837 = vmatprep.subr.mxu0 0.0
    %838 = vmatpush1.msra.mxu0 0.0
    %839 = vmatprep.subr.mxu0 0.0
    %840 = vmatpush1.msra.mxu0 0.0
    %841 = vmatprep.subr.mxu0 0.0
    %842 = vmatpush1.msra.mxu0 0.0
    %843 = vmatprep.subr.mxu0 0.0
    %844 = vmatpush1.msra.mxu0 0.0
    %845 = vmatprep.subr.mxu0 0.0
    %846 = vmatpush1.msra.mxu0 0.0
    %847 = vmatprep.subr.mxu0 0.0
    %848 = vmatpush1.msra.mxu0 0.0
    %849 = vmatprep.subr.mxu0 0.0
    %850 = vmatpush1.msra.mxu0 0.0
    %851 = vmatprep.subr.mxu0 0.0
    %852 = vmatpush1.msra.mxu0 0.0
    %853 = vmatprep.subr.mxu0 0.0
    %854 = vmatpush1.msra.mxu0 0.0
    %855 = vmatprep.subr.mxu0 0.0
    %856 = vmatpush1.msra.mxu0 0.0
    %857 = vmatprep.mubr.f32.mxu0 0.0
    %v858 = vand.u32 %v766, 4294901760
    %v859 = vsub.f32 %v766, %v858
    %v860 = vand.u32 %v859, 4294901760
    %v861 = vsub.f32 %v859, %v860
    %v862 = vand.u32 %v861, 4294901760
    %863 = vmatmul.mubr.f32.gmra.mrb[0].mxu0 %v862
    %v864 = vpop.f32.mrb[0].mxu0
    %v865 = vadd.f32 %v763, %v864
    %v866 = vpop.f32.mrb[0].mxu0
    %867 = vmatprep.mubr.f32.mxu0 0.0
    %v868 = vand.u32 %v769, 4294901760
    %v869 = vsub.f32 %v769, %v868
    %v870 = vand.u32 %v869, 4294901760
    %v871 = vsub.f32 %v869, %v870
    %v872 = vand.u32 %v871, 4294901760
    %873 = vmatmul.mubr.f32.gmra.mrb[0].mxu0 %v872
    %v874 = vpop.f32.mrb[0].mxu0
    %v875 = vadd.f32 %v763, %v874
    %v876 = vpop.f32.mrb[0].mxu0
    %877 = vmatprep.mubr.f32.mxu0 0.0
    %v878 = vand.u32 %v772, 4294901760
    %v879 = vsub.f32 %v772, %v878
    %v880 = vand.u32 %v879, 4294901760
    %v881 = vsub.f32 %v879, %v880
    %v882 = vand.u32 %v881, 4294901760
    %883 = vmatmul.mubr.f32.gmra.mrb[0].mxu0 %v882
    %v884 = vpop.f32.mrb[0].mxu0
    %v885 = vadd.f32 %v763, %v884
    %v886 = vpop.f32.mrb[0].mxu0
    %887 = vmatprep.mubr.f32.mxu0 0.0
    %v888 = vand.u32 %v775, 4294901760
    %v889 = vsub.f32 %v775, %v888
    %v890 = vand.u32 %v889, 4294901760
    %v891 = vsub.f32 %v889, %v890
    %v892 = vand.u32 %v891, 4294901760
    %893 = vmatmul.mubr.f32.gmra.mrb[0].mxu0 %v892
    %v894 = vpop.f32.mrb[0].mxu0
    %v895 = vadd.f32 %v763, %v894
    %v896 = vpop.f32.mrb[0].mxu0
    %897 = vmatprep.mubr.f32.mxu0 0.0
    %v898 = vand.u32 %v778, 4294901760
    %v899 = vsub.f32 %v778, %v898
    %v900 = vand.u32 %v899, 4294901760
    %v901 = vsub.f32 %v899, %v900
    %v902 = vand.u32 %v901, 4294901760
    %903 = vmatmul.mubr.f32.gmra.mrb[0].mxu0 %v902
    %v904 = vpop.f32.mrb[0].mxu0
    %v905 = vadd.f32 %v763, %v904
    %v906 = vpop.f32.mrb[0].mxu0
    %907 = vmatprep.mubr.f32.mxu0 0.0
    %v908 = vand.u32 %v781, 4294901760
    %v909 = vsub.f32 %v781, %v908
    %v910 = vand.u32 %v909, 4294901760
    %v911 = vsub.f32 %v909, %v910
    %v912 = vand.u32 %v911, 4294901760
    %913 = vmatmul.mubr.f32.gmra.mrb[0].mxu0 %v912
    %v914 = vpop.f32.mrb[0].mxu0
    %v915 = vadd.f32 %v763, %v914
    %v916 = vpop.f32.mrb[0].mxu0
    %917 = vmatprep.mubr.f32.mxu0 0.0
    %v918 = vand.u32 %v784, 4294901760
    %v919 = vsub.f32 %v784, %v918
    %v920 = vand.u32 %v919, 4294901760
    %v921 = vsub.f32 %v919, %v920
    %v922 = vand.u32 %v921, 4294901760
    %923 = vmatmul.mubr.f32.gmra.mrb[0].mxu0 %v922
    %v924 = vpop.f32.mrb[0].mxu0
    %v925 = vadd.f32 %v763, %v924
    %v926 = vpop.f32.mrb[0].mxu0
    %927 = vmatprep.mubr.f32.mxu0 0.0
    %v928 = vand.u32 %v787, 4294901760
    %v929 = vsub.f32 %v787, %v928
    %v930 = vand.u32 %v929, 4294901760
    %v931 = vsub.f32 %v929, %v930
    %v932 = vand.u32 %v931, 4294901760
    %933 = vmatmul.mubr.f32.gmra.mrb[0].mxu0 %v932
    %v934 = vpop.f32.mrb[0].mxu0
    %v935 = vadd.f32 %v763, %v934
    %v936 = vpop.f32.mrb[0].mxu0
    %937 = vdwg.mxu0
    %938 = vmatprep.subr.mxu0 0.0
    %v939 = vand.u32 %v754, 4294901760
    %v940 = vsub.f32 %v754, %v939
    %v941 = vand.u32 %v940, 4294901760
    %v942 = vsub.f32 %v940, %v941
    %v943 = vand.u32 %v942, 4294901760
    %944 = vmatpush1.msra.mxu0 %v943
    %945 = vmatprep.subr.mxu0 0.0
    %v946 = vand.u32 %v755, 4294901760
    %v947 = vsub.f32 %v755, %v946
    %v948 = vand.u32 %v947, 4294901760
    %v949 = vsub.f32 %v947, %v948
    %v950 = vand.u32 %v949, 4294901760
    %951 = vmatpush1.msra.mxu0 %v950
    %952 = vmatprep.subr.mxu0 0.0
    %v953 = vand.u32 %v756, 4294901760
    %v954 = vsub.f32 %v756, %v953
    %v955 = vand.u32 %v954, 4294901760
    %v956 = vsub.f32 %v954, %v955
    %v957 = vand.u32 %v956, 4294901760
    %958 = vmatpush1.msra.mxu0 %v957
    %959 = vmatprep.subr.mxu0 0.0
    %v960 = vand.u32 %v757, 4294901760
    %v961 = vsub.f32 %v757, %v960
    %v962 = vand.u32 %v961, 4294901760
    %v963 = vsub.f32 %v961, %v962
    %v964 = vand.u32 %v963, 4294901760
    %965 = vmatpush1.msra.mxu0 %v964
    %966 = vmatprep.subr.mxu0 0.0
    %967 = vmatpush1.msra.mxu0 0.0
    %968 = vmatprep.subr.mxu0 0.0
    %969 = vmatpush1.msra.mxu0 0.0
    %970 = vmatprep.subr.mxu0 0.0
    %971 = vmatpush1.msra.mxu0 0.0
    %972 = vmatprep.subr.mxu0 0.0
    %973 = vmatpush1.msra.mxu0 0.0
    %974 = vmatprep.subr.mxu0 0.0
    %975 = vmatpush1.msra.mxu0 0.0
    %976 = vmatprep.subr.mxu0 0.0
    %977 = vmatpush1.msra.mxu0 0.0
    %978 = vmatprep.subr.mxu0 0.0
    %979 = vmatpush1.msra.mxu0 0.0
    %980 = vmatprep.subr.mxu0 0.0
    %981 = vmatpush1.msra.mxu0 0.0
    %982 = vmatprep.subr.mxu0 0.0
    %983 = vmatpush1.msra.mxu0 0.0
    %984 = vmatprep.subr.mxu0 0.0
    %985 = vmatpush1.msra.mxu0 0.0
    %986 = vmatprep.subr.mxu0 0.0
    %987 = vmatpush1.msra.mxu0 0.0
    %988 = vmatprep.subr.mxu0 0.0
    %989 = vmatpush1.msra.mxu0 0.0
    %990 = vmatprep.subr.mxu0 0.0
    %991 = vmatpush1.msra.mxu0 0.0
    %992 = vmatprep.subr.mxu0 0.0
    %993 = vmatpush1.msra.mxu0 0.0
    %994 = vmatprep.subr.mxu0 0.0
    %995 = vmatpush1.msra.mxu0 0.0
    %996 = vmatprep.subr.mxu0 0.0
    %997 = vmatpush1.msra.mxu0 0.0
    %998 = vmatprep.subr.mxu0 0.0
    %999 = vmatpush1.msra.mxu0 0.0
    %1000 = vmatprep.subr.mxu0 0.0
    %1001 = vmatpush1.msra.mxu0 0.0
    %1002 = vmatprep.subr.mxu0 0.0
    %1003 = vmatpush1.msra.mxu0 0.0
    %1004 = vmatprep.subr.mxu0 0.0
    %1005 = vmatpush1.msra.mxu0 0.0
    %1006 = vmatprep.subr.mxu0 0.0
    %1007 = vmatpush1.msra.mxu0 0.0
    %1008 = vmatprep.subr.mxu0 0.0
    %1009 = vmatpush1.msra.mxu0 0.0
    %1010 = vmatprep.subr.mxu0 0.0
    %1011 = vmatpush1.msra.mxu0 0.0
    %1012 = vmatprep.subr.mxu0 0.0
    %1013 = vmatpush1.msra.mxu0 0.0
    %1014 = vmatprep.subr.mxu0 0.0
    %1015 = vmatpush1.msra.mxu0 0.0
    %1016 = vmatprep.subr.mxu0 0.0
    %1017 = vmatpush1.msra.mxu0 0.0
    %1018 = vmatprep.subr.mxu0 0.0
    %1019 = vmatpush1.msra.mxu0 0.0
    %1020 = vmatprep.subr.mxu0 0.0
    %1021 = vmatpush1.msra.mxu0 0.0
    %1022 = vmatprep.mubr.f32.mxu0 0.0
    %v1023 = vand.u32 %v766, 4294901760
    %1024 = vmatmul.mubr.f32.gmra.mrb[0].mxu0 %v1023
    %v1025 = vpop.f32.mrb[0].mxu0
    %v1026 = vadd.f32 %v865, %v1025
    %v1027 = vpop.f32.mrb[0].mxu0
    %1028 = vmatprep.mubr.f32.mxu0 0.0
    %v1029 = vand.u32 %v769, 4294901760
    %1030 = vmatmul.mubr.f32.gmra.mrb[0].mxu0 %v1029
    %v1031 = vpop.f32.mrb[0].mxu0
    %v1032 = vadd.f32 %v875, %v1031
    %v1033 = vpop.f32.mrb[0].mxu0
    %1034 = vmatprep.mubr.f32.mxu0 0.0
    %v1035 = vand.u32 %v772, 4294901760
    %1036 = vmatmul.mubr.f32.gmra.mrb[0].mxu0 %v1035
    %v1037 = vpop.f32.mrb[0].mxu0
    %v1038 = vadd.f32 %v885, %v1037
    %v1039 = vpop.f32.mrb[0].mxu0
    %1040 = vmatprep.mubr.f32.mxu0 0.0
    %v1041 = vand.u32 %v775, 4294901760
    %1042 = vmatmul.mubr.f32.gmra.mrb[0].mxu0 %v1041
    %v1043 = vpop.f32.mrb[0].mxu0
    %v1044 = vadd.f32 %v895, %v1043
    %v1045 = vpop.f32.mrb[0].mxu0
    %1046 = vmatprep.mubr.f32.mxu0 0.0
    %v1047 = vand.u32 %v778, 4294901760
    %1048 = vmatmul.mubr.f32.gmra.mrb[0].mxu0 %v1047
    %v1049 = vpop.f32.mrb[0].mxu0
    %v1050 = vadd.f32 %v905, %v1049
    %v1051 = vpop.f32.mrb[0].mxu0
    %1052 = vmatprep.mubr.f32.mxu0 0.0
    %v1053 = vand.u32 %v781, 4294901760
    %1054 = vmatmul.mubr.f32.gmra.mrb[0].mxu0 %v1053
    %v1055 = vpop.f32.mrb[0].mxu0
    %v1056 = vadd.f32 %v915, %v1055
    %v1057 = vpop.f32.mrb[0].mxu0
    %1058 = vmatprep.mubr.f32.mxu0 0.0
    %v1059 = vand.u32 %v784, 4294901760
    %1060 = vmatmul.mubr.f32.gmra.mrb[0].mxu0 %v1059
    %v1061 = vpop.f32.mrb[0].mxu0
    %v1062 = vadd.f32 %v925, %v1061
    %v1063 = vpop.f32.mrb[0].mxu0
    %1064 = vmatprep.mubr.f32.mxu0 0.0
    %v1065 = vand.u32 %v787, 4294901760
    %1066 = vmatmul.mubr.f32.gmra.mrb[0].mxu0 %v1065
    %v1067 = vpop.f32.mrb[0].mxu0
    %v1068 = vadd.f32 %v935, %v1067
    %v1069 = vpop.f32.mrb[0].mxu0
    %1070 = vdwg.mxu0
    %1071 = vmatprep.subr.mxu0 0.0
    %v1072 = vand.u32 %v754, 4294901760
    %v1073 = vsub.f32 %v754, %v1072
    %1074 = vmatpush1.msra.mxu0 %v1073
    %1075 = vmatprep.subr.mxu0 0.0
    %v1076 = vand.u32 %v755, 4294901760
    %v1077 = vsub.f32 %v755, %v1076
    %1078 = vmatpush1.msra.mxu0 %v1077
    %1079 = vmatprep.subr.mxu0 0.0
    %v1080 = vand.u32 %v756, 4294901760
    %v1081 = vsub.f32 %v756, %v1080
    %1082 = vmatpush1.msra.mxu0 %v1081
    %1083 = vmatprep.subr.mxu0 0.0
    %v1084 = vand.u32 %v757, 4294901760
    %v1085 = vsub.f32 %v757, %v1084
    %1086 = vmatpush1.msra.mxu0 %v1085
    %1087 = vmatprep.subr.mxu0 0.0
    %1088 = vmatpush1.msra.mxu0 0.0
    %1089 = vmatprep.subr.mxu0 0.0
    %1090 = vmatpush1.msra.mxu0 0.0
    %1091 = vmatprep.subr.mxu0 0.0
    %1092 = vmatpush1.msra.mxu0 0.0
    %1093 = vmatprep.subr.mxu0 0.0
    %1094 = vmatpush1.msra.mxu0 0.0
    %1095 = vmatprep.subr.mxu0 0.0
    %1096 = vmatpush1.msra.mxu0 0.0
    %1097 = vmatprep.subr.mxu0 0.0
    %1098 = vmatpush1.msra.mxu0 0.0
    %1099 = vmatprep.subr.mxu0 0.0
    %1100 = vmatpush1.msra.mxu0 0.0
    %1101 = vmatprep.subr.mxu0 0.0
    %1102 = vmatpush1.msra.mxu0 0.0
    %1103 = vmatprep.subr.mxu0 0.0
    %1104 = vmatpush1.msra.mxu0 0.0
    %1105 = vmatprep.subr.mxu0 0.0
    %1106 = vmatpush1.msra.mxu0 0.0
    %1107 = vmatprep.subr.mxu0 0.0
    %1108 = vmatpush1.msra.mxu0 0.0
    %1109 = vmatprep.subr.mxu0 0.0
    %1110 = vmatpush1.msra.mxu0 0.0
    %1111 = vmatprep.subr.mxu0 0.0
    %1112 = vmatpush1.msra.mxu0 0.0
    %1113 = vmatprep.subr.mxu0 0.0
    %1114 = vmatpush1.msra.mxu0 0.0
    %1115 = vmatprep.subr.mxu0 0.0
    %1116 = vmatpush1.msra.mxu0 0.0
    %1117 = vmatprep.subr.mxu0 0.0
    %1118 = vmatpush1.msra.mxu0 0.0
    %1119 = vmatprep.subr.mxu0 0.0
    %1120 = vmatpush1.msra.mxu0 0.0
    %1121 = vmatprep.subr.mxu0 0.0
    %1122 = vmatpush1.msra.mxu0 0.0
    %1123 = vmatprep.subr.mxu0 0.0
    %1124 = vmatpush1.msra.mxu0 0.0
    %1125 = vmatprep.subr.mxu0 0.0
    %1126 = vmatpush1.msra.mxu0 0.0
    %1127 = vmatprep.subr.mxu0 0.0
    %1128 = vmatpush1.msra.mxu0 0.0
    %1129 = vmatprep.subr.mxu0 0.0
    %1130 = vmatpush1.msra.mxu0 0.0
    %1131 = vmatprep.subr.mxu0 0.0
    %1132 = vmatpush1.msra.mxu0 0.0
    %1133 = vmatprep.subr.mxu0 0.0
    %1134 = vmatpush1.msra.mxu0 0.0
    %1135 = vmatprep.subr.mxu0 0.0
    %1136 = vmatpush1.msra.mxu0 0.0
    %1137 = vmatprep.subr.mxu0 0.0
    %1138 = vmatpush1.msra.mxu0 0.0
    %1139 = vmatprep.subr.mxu0 0.0
    %1140 = vmatpush1.msra.mxu0 0.0
    %1141 = vmatprep.subr.mxu0 0.0
    %1142 = vmatpush1.msra.mxu0 0.0
    %1143 = vmatprep.mubr.f32.mxu0 0.0
    %v1144 = vand.u32 %v766, 4294901760
    %v1145 = vsub.f32 %v766, %v1144
    %1146 = vmatmul.mubr.f32.gmra.mrb[0].mxu0 %v1145
    %v1147 = vpop.f32.mrb[0].mxu0
    %v1148 = vadd.f32 %v1026, %v1147
    %v1149 = vpop.f32.mrb[0].mxu0
    %1150 = vmatprep.mubr.f32.mxu0 0.0
    %v1151 = vand.u32 %v769, 4294901760
    %v1152 = vsub.f32 %v769, %v1151
    %1153 = vmatmul.mubr.f32.gmra.mrb[0].mxu0 %v1152
    %v1154 = vpop.f32.mrb[0].mxu0
    %v1155 = vadd.f32 %v1032, %v1154
    %v1156 = vpop.f32.mrb[0].mxu0
    %1157 = vmatprep.mubr.f32.mxu0 0.0
    %v1158 = vand.u32 %v772, 4294901760
    %v1159 = vsub.f32 %v772, %v1158
    %1160 = vmatmul.mubr.f32.gmra.mrb[0].mxu0 %v1159
    %v1161 = vpop.f32.mrb[0].mxu0
    %v1162 = vadd.f32 %v1038, %v1161
    %v1163 = vpop.f32.mrb[0].mxu0
    %1164 = vmatprep.mubr.f32.mxu0 0.0
    %v1165 = vand.u32 %v775, 4294901760
    %v1166 = vsub.f32 %v775, %v1165
    %1167 = vmatmul.mubr.f32.gmra.mrb[0].mxu0 %v1166
    %v1168 = vpop.f32.mrb[0].mxu0
    %v1169 = vadd.f32 %v1044, %v1168
    %v1170 = vpop.f32.mrb[0].mxu0
    %1171 = vmatprep.mubr.f32.mxu0 0.0
    %v1172 = vand.u32 %v778, 4294901760
    %v1173 = vsub.f32 %v778, %v1172
    %1174 = vmatmul.mubr.f32.gmra.mrb[0].mxu0 %v1173
    %v1175 = vpop.f32.mrb[0].mxu0
    %v1176 = vadd.f32 %v1050, %v1175
    %v1177 = vpop.f32.mrb[0].mxu0
    %1178 = vmatprep.mubr.f32.mxu0 0.0
    %v1179 = vand.u32 %v781, 4294901760
    %v1180 = vsub.f32 %v781, %v1179
    %1181 = vmatmul.mubr.f32.gmra.mrb[0].mxu0 %v1180
    %v1182 = vpop.f32.mrb[0].mxu0
    %v1183 = vadd.f32 %v1056, %v1182
    %v1184 = vpop.f32.mrb[0].mxu0
    %1185 = vmatprep.mubr.f32.mxu0 0.0
    %v1186 = vand.u32 %v784, 4294901760
    %v1187 = vsub.f32 %v784, %v1186
    %1188 = vmatmul.mubr.f32.gmra.mrb[0].mxu0 %v1187
    %v1189 = vpop.f32.mrb[0].mxu0
    %v1190 = vadd.f32 %v1062, %v1189
    %v1191 = vpop.f32.mrb[0].mxu0
    %1192 = vmatprep.mubr.f32.mxu0 0.0
    %v1193 = vand.u32 %v787, 4294901760
    %v1194 = vsub.f32 %v787, %v1193
    %1195 = vmatmul.mubr.f32.gmra.mrb[0].mxu0 %v1194
    %v1196 = vpop.f32.mrb[0].mxu0
    %v1197 = vadd.f32 %v1068, %v1196
    %v1198 = vpop.f32.mrb[0].mxu0
    %1199 = vdwg.mxu0
    %1200 = vmatprep.subr.mxu0 0.0
    %v1201 = vand.u32 %v754, 4294901760
    %1202 = vmatpush1.msra.mxu0 %v1201
    %1203 = vmatprep.subr.mxu0 0.0
    %v1204 = vand.u32 %v755, 4294901760
    %1205 = vmatpush1.msra.mxu0 %v1204
    %1206 = vmatprep.subr.mxu0 0.0
    %v1207 = vand.u32 %v756, 4294901760
    %1208 = vmatpush1.msra.mxu0 %v1207
    %1209 = vmatprep.subr.mxu0 0.0
    %v1210 = vand.u32 %v757, 4294901760
    %1211 = vmatpush1.msra.mxu0 %v1210
    %1212 = vmatprep.subr.mxu0 0.0
    %1213 = vmatpush1.msra.mxu0 0.0
    %1214 = vmatprep.subr.mxu0 0.0
    %1215 = vmatpush1.msra.mxu0 0.0
    %1216 = vmatprep.subr.mxu0 0.0
    %1217 = vmatpush1.msra.mxu0 0.0
    %1218 = vmatprep.subr.mxu0 0.0
    %1219 = vmatpush1.msra.mxu0 0.0
    %1220 = vmatprep.subr.mxu0 0.0
    %1221 = vmatpush1.msra.mxu0 0.0
    %1222 = vmatprep.subr.mxu0 0.0
    %1223 = vmatpush1.msra.mxu0 0.0
    %1224 = vmatprep.subr.mxu0 0.0
    %1225 = vmatpush1.msra.mxu0 0.0
    %1226 = vmatprep.subr.mxu0 0.0
    %1227 = vmatpush1.msra.mxu0 0.0
    %1228 = vmatprep.subr.mxu0 0.0
    %1229 = vmatpush1.msra.mxu0 0.0
    %1230 = vmatprep.subr.mxu0 0.0
    %1231 = vmatpush1.msra.mxu0 0.0
    %1232 = vmatprep.subr.mxu0 0.0
    %1233 = vmatpush1.msra.mxu0 0.0
    %1234 = vmatprep.subr.mxu0 0.0
    %1235 = vmatpush1.msra.mxu0 0.0
    %1236 = vmatprep.subr.mxu0 0.0
    %1237 = vmatpush1.msra.mxu0 0.0
    %1238 = vmatprep.subr.mxu0 0.0
    %1239 = vmatpush1.msra.mxu0 0.0
    %1240 = vmatprep.subr.mxu0 0.0
    %1241 = vmatpush1.msra.mxu0 0.0
    %1242 = vmatprep.subr.mxu0 0.0
    %1243 = vmatpush1.msra.mxu0 0.0
    %1244 = vmatprep.subr.mxu0 0.0
    %1245 = vmatpush1.msra.mxu0 0.0
    %1246 = vmatprep.subr.mxu0 0.0
    %1247 = vmatpush1.msra.mxu0 0.0
    %1248 = vmatprep.subr.mxu0 0.0
    %1249 = vmatpush1.msra.mxu0 0.0
    %1250 = vmatprep.subr.mxu0 0.0
    %1251 = vmatpush1.msra.mxu0 0.0
    %1252 = vmatprep.subr.mxu0 0.0
    %1253 = vmatpush1.msra.mxu0 0.0
    %1254 = vmatprep.subr.mxu0 0.0
    %1255 = vmatpush1.msra.mxu0 0.0
    %1256 = vmatprep.subr.mxu0 0.0
    %1257 = vmatpush1.msra.mxu0 0.0
    %1258 = vmatprep.subr.mxu0 0.0
    %1259 = vmatpush1.msra.mxu0 0.0
    %1260 = vmatprep.subr.mxu0 0.0
    %1261 = vmatpush1.msra.mxu0 0.0
    %1262 = vmatprep.subr.mxu0 0.0
    %1263 = vmatpush1.msra.mxu0 0.0
    %1264 = vmatprep.subr.mxu0 0.0
    %1265 = vmatpush1.msra.mxu0 0.0
    %1266 = vmatprep.subr.mxu0 0.0
    %1267 = vmatpush1.msra.mxu0 0.0
    %1268 = vmatprep.mubr.f32.mxu0 0.0
    %v1269 = vand.u32 %v766, 4294901760
    %v1270 = vsub.f32 %v766, %v1269
    %v1271 = vand.u32 %v1270, 4294901760
    %1272 = vmatmul.mubr.f32.gmra.mrb[0].mxu0 %v1271
    %v1273 = vpop.f32.mrb[0].mxu0
    %v1274 = vadd.f32 %v1148, %v1273
    %v1275 = vpop.f32.mrb[0].mxu0
    %1276 = vmatprep.mubr.f32.mxu0 0.0
    %v1277 = vand.u32 %v769, 4294901760
    %v1278 = vsub.f32 %v769, %v1277
    %v1279 = vand.u32 %v1278, 4294901760
    %1280 = vmatmul.mubr.f32.gmra.mrb[0].mxu0 %v1279
    %v1281 = vpop.f32.mrb[0].mxu0
    %v1282 = vadd.f32 %v1155, %v1281
    %v1283 = vpop.f32.mrb[0].mxu0
    %1284 = vmatprep.mubr.f32.mxu0 0.0
    %v1285 = vand.u32 %v772, 4294901760
    %v1286 = vsub.f32 %v772, %v1285
    %v1287 = vand.u32 %v1286, 4294901760
    %1288 = vmatmul.mubr.f32.gmra.mrb[0].mxu0 %v1287
    %v1289 = vpop.f32.mrb[0].mxu0
    %v1290 = vadd.f32 %v1162, %v1289
    %v1291 = vpop.f32.mrb[0].mxu0
    %1292 = vmatprep.mubr.f32.mxu0 0.0
    %v1293 = vand.u32 %v775, 4294901760
    %v1294 = vsub.f32 %v775, %v1293
    %v1295 = vand.u32 %v1294, 4294901760
    %1296 = vmatmul.mubr.f32.gmra.mrb[0].mxu0 %v1295
    %v1297 = vpop.f32.mrb[0].mxu0
    %v1298 = vadd.f32 %v1169, %v1297
    %v1299 = vpop.f32.mrb[0].mxu0
    %1300 = vmatprep.mubr.f32.mxu0 0.0
    %v1301 = vand.u32 %v778, 4294901760
    %v1302 = vsub.f32 %v778, %v1301
    %v1303 = vand.u32 %v1302, 4294901760
    %1304 = vmatmul.mubr.f32.gmra.mrb[0].mxu0 %v1303
    %v1305 = vpop.f32.mrb[0].mxu0
    %v1306 = vadd.f32 %v1176, %v1305
    %v1307 = vpop.f32.mrb[0].mxu0
    %1308 = vmatprep.mubr.f32.mxu0 0.0
    %v1309 = vand.u32 %v781, 4294901760
    %v1310 = vsub.f32 %v781, %v1309
    %v1311 = vand.u32 %v1310, 4294901760
    %1312 = vmatmul.mubr.f32.gmra.mrb[0].mxu0 %v1311
    %v1313 = vpop.f32.mrb[0].mxu0
    %v1314 = vadd.f32 %v1183, %v1313
    %v1315 = vpop.f32.mrb[0].mxu0
    %1316 = vmatprep.mubr.f32.mxu0 0.0
    %v1317 = vand.u32 %v784, 4294901760
    %v1318 = vsub.f32 %v784, %v1317
    %v1319 = vand.u32 %v1318, 4294901760
    %1320 = vmatmul.mubr.f32.gmra.mrb[0].mxu0 %v1319
    %v1321 = vpop.f32.mrb[0].mxu0
    %v1322 = vadd.f32 %v1190, %v1321
    %v1323 = vpop.f32.mrb[0].mxu0
    %1324 = vmatprep.mubr.f32.mxu0 0.0
    %v1325 = vand.u32 %v787, 4294901760
    %v1326 = vsub.f32 %v787, %v1325
    %v1327 = vand.u32 %v1326, 4294901760
    %1328 = vmatmul.mubr.f32.gmra.mrb[0].mxu0 %v1327
    %v1329 = vpop.f32.mrb[0].mxu0
    %v1330 = vadd.f32 %v1197, %v1329
    %v1331 = vpop.f32.mrb[0].mxu0
    %1332 = vdwg.mxu0
    %1333 = vmatprep.subr.mxu0 0.0
    %v1334 = vand.u32 %v754, 4294901760
    %v1335 = vsub.f32 %v754, %v1334
    %v1336 = vand.u32 %v1335, 4294901760
    %1337 = vmatpush1.msra.mxu0 %v1336
    %1338 = vmatprep.subr.mxu0 0.0
    %v1339 = vand.u32 %v755, 4294901760
    %v1340 = vsub.f32 %v755, %v1339
    %v1341 = vand.u32 %v1340, 4294901760
    %1342 = vmatpush1.msra.mxu0 %v1341
    %1343 = vmatprep.subr.mxu0 0.0
    %v1344 = vand.u32 %v756, 4294901760
    %v1345 = vsub.f32 %v756, %v1344
    %v1346 = vand.u32 %v1345, 4294901760
    %1347 = vmatpush1.msra.mxu0 %v1346
    %1348 = vmatprep.subr.mxu0 0.0
    %v1349 = vand.u32 %v757, 4294901760
    %v1350 = vsub.f32 %v757, %v1349
    %v1351 = vand.u32 %v1350, 4294901760
    %1352 = vmatpush1.msra.mxu0 %v1351
    %1353 = vmatprep.subr.mxu0 0.0
    %1354 = vmatpush1.msra.mxu0 0.0
    %1355 = vmatprep.subr.mxu0 0.0
    %1356 = vmatpush1.msra.mxu0 0.0
    %1357 = vmatprep.subr.mxu0 0.0
    %1358 = vmatpush1.msra.mxu0 0.0
    %1359 = vmatprep.subr.mxu0 0.0
    %1360 = vmatpush1.msra.mxu0 0.0
    %1361 = vmatprep.subr.mxu0 0.0
    %1362 = vmatpush1.msra.mxu0 0.0
    %1363 = vmatprep.subr.mxu0 0.0
    %1364 = vmatpush1.msra.mxu0 0.0
    %1365 = vmatprep.subr.mxu0 0.0
    %1366 = vmatpush1.msra.mxu0 0.0
    %1367 = vmatprep.subr.mxu0 0.0
    %1368 = vmatpush1.msra.mxu0 0.0
    %1369 = vmatprep.subr.mxu0 0.0
    %1370 = vmatpush1.msra.mxu0 0.0
    %1371 = vmatprep.subr.mxu0 0.0
    %1372 = vmatpush1.msra.mxu0 0.0
    %1373 = vmatprep.subr.mxu0 0.0
    %1374 = vmatpush1.msra.mxu0 0.0
    %1375 = vmatprep.subr.mxu0 0.0
    %1376 = vmatpush1.msra.mxu0 0.0
    %1377 = vmatprep.subr.mxu0 0.0
    %1378 = vmatpush1.msra.mxu0 0.0
    %1379 = vmatprep.subr.mxu0 0.0
    %1380 = vmatpush1.msra.mxu0 0.0
    %1381 = vmatprep.subr.mxu0 0.0
    %1382 = vmatpush1.msra.mxu0 0.0
    %1383 = vmatprep.subr.mxu0 0.0
    %1384 = vmatpush1.msra.mxu0 0.0
    %1385 = vmatprep.subr.mxu0 0.0
    %1386 = vmatpush1.msra.mxu0 0.0
    %1387 = vmatprep.subr.mxu0 0.0
    %1388 = vmatpush1.msra.mxu0 0.0
    %1389 = vmatprep.subr.mxu0 0.0
    %1390 = vmatpush1.msra.mxu0 0.0
    %1391 = vmatprep.subr.mxu0 0.0
    %1392 = vmatpush1.msra.mxu0 0.0
    %1393 = vmatprep.subr.mxu0 0.0
    %1394 = vmatpush1.msra.mxu0 0.0
    %1395 = vmatprep.subr.mxu0 0.0
    %1396 = vmatpush1.msra.mxu0 0.0
    %1397 = vmatprep.subr.mxu0 0.0
    %1398 = vmatpush1.msra.mxu0 0.0
    %1399 = vmatprep.subr.mxu0 0.0
    %1400 = vmatpush1.msra.mxu0 0.0
    %1401 = vmatprep.subr.mxu0 0.0
    %1402 = vmatpush1.msra.mxu0 0.0
    %1403 = vmatprep.subr.mxu0 0.0
    %1404 = vmatpush1.msra.mxu0 0.0
    %1405 = vmatprep.subr.mxu0 0.0
    %1406 = vmatpush1.msra.mxu0 0.0
    %1407 = vmatprep.subr.mxu0 0.0
    %1408 = vmatpush1.msra.mxu0 0.0
    %1409 = vmatprep.mubr.f32.mxu0 0.0
    %v1410 = vand.u32 %v766, 4294901760
    %1411 = vmatmul.mubr.f32.gmra.mrb[0].mxu0 %v1410
    %v1412 = vpop.f32.mrb[0].mxu0
    %v1413 = vadd.f32 %v1274, %v1412
    %v1414 = vpop.f32.mrb[0].mxu0
    %1415 = vmatprep.mubr.f32.mxu0 0.0
    %v1416 = vand.u32 %v769, 4294901760
    %1417 = vmatmul.mubr.f32.gmra.mrb[0].mxu0 %v1416
    %v1418 = vpop.f32.mrb[0].mxu0
    %v1419 = vadd.f32 %v1282, %v1418
    %v1420 = vpop.f32.mrb[0].mxu0
    %1421 = vmatprep.mubr.f32.mxu0 0.0
    %v1422 = vand.u32 %v772, 4294901760
    %1423 = vmatmul.mubr.f32.gmra.mrb[0].mxu0 %v1422
    %v1424 = vpop.f32.mrb[0].mxu0
    %v1425 = vadd.f32 %v1290, %v1424
    %v1426 = vpop.f32.mrb[0].mxu0
    %1427 = vmatprep.mubr.f32.mxu0 0.0
    %v1428 = vand.u32 %v775, 4294901760
    %1429 = vmatmul.mubr.f32.gmra.mrb[0].mxu0 %v1428
    %v1430 = vpop.f32.mrb[0].mxu0
    %v1431 = vadd.f32 %v1298, %v1430
    %v1432 = vpop.f32.mrb[0].mxu0
    %1433 = vmatprep.mubr.f32.mxu0 0.0
    %v1434 = vand.u32 %v778, 4294901760
    %1435 = vmatmul.mubr.f32.gmra.mrb[0].mxu0 %v1434
    %v1436 = vpop.f32.mrb[0].mxu0
    %v1437 = vadd.f32 %v1306, %v1436
    %v1438 = vpop.f32.mrb[0].mxu0
    %1439 = vmatprep.mubr.f32.mxu0 0.0
    %v1440 = vand.u32 %v781, 4294901760
    %1441 = vmatmul.mubr.f32.gmra.mrb[0].mxu0 %v1440
    %v1442 = vpop.f32.mrb[0].mxu0
    %v1443 = vadd.f32 %v1314, %v1442
    %v1444 = vpop.f32.mrb[0].mxu0
    %1445 = vmatprep.mubr.f32.mxu0 0.0
    %v1446 = vand.u32 %v784, 4294901760
    %1447 = vmatmul.mubr.f32.gmra.mrb[0].mxu0 %v1446
    %v1448 = vpop.f32.mrb[0].mxu0
    %v1449 = vadd.f32 %v1322, %v1448
    %v1450 = vpop.f32.mrb[0].mxu0
    %1451 = vmatprep.mubr.f32.mxu0 0.0
    %v1452 = vand.u32 %v787, 4294901760
    %1453 = vmatmul.mubr.f32.gmra.mrb[0].mxu0 %v1452
    %v1454 = vpop.f32.mrb[0].mxu0
    %v1455 = vadd.f32 %v1330, %v1454
    %v1456 = vpop.f32.mrb[0].mxu0
    %1457 = vdwg.mxu0
    %1458 = vmatprep.subr.mxu0 0.0
    %v1459 = vand.u32 %v754, 4294901760
    %1460 = vmatpush1.msra.mxu0 %v1459
    %1461 = vmatprep.subr.mxu0 0.0
    %v1462 = vand.u32 %v755, 4294901760
    %1463 = vmatpush1.msra.mxu0 %v1462
    %1464 = vmatprep.subr.mxu0 0.0
    %v1465 = vand.u32 %v756, 4294901760
    %1466 = vmatpush1.msra.mxu0 %v1465
    %1467 = vmatprep.subr.mxu0 0.0
    %v1468 = vand.u32 %v757, 4294901760
    %1469 = vmatpush1.msra.mxu0 %v1468
    %1470 = vmatprep.subr.mxu0 0.0
    %1471 = vmatpush1.msra.mxu0 0.0
    %1472 = vmatprep.subr.mxu0 0.0
    %1473 = vmatpush1.msra.mxu0 0.0
    %1474 = vmatprep.subr.mxu0 0.0
    %1475 = vmatpush1.msra.mxu0 0.0
    %1476 = vmatprep.subr.mxu0 0.0
    %1477 = vmatpush1.msra.mxu0 0.0
    %1478 = vmatprep.subr.mxu0 0.0
    %1479 = vmatpush1.msra.mxu0 0.0
    %1480 = vmatprep.subr.mxu0 0.0
    %1481 = vmatpush1.msra.mxu0 0.0
    %1482 = vmatprep.subr.mxu0 0.0
    %1483 = vmatpush1.msra.mxu0 0.0
    %1484 = vmatprep.subr.mxu0 0.0
    %1485 = vmatpush1.msra.mxu0 0.0
    %1486 = vmatprep.subr.mxu0 0.0
    %1487 = vmatpush1.msra.mxu0 0.0
    %1488 = vmatprep.subr.mxu0 0.0
    %1489 = vmatpush1.msra.mxu0 0.0
    %1490 = vmatprep.subr.mxu0 0.0
    %1491 = vmatpush1.msra.mxu0 0.0
    %1492 = vmatprep.subr.mxu0 0.0
    %1493 = vmatpush1.msra.mxu0 0.0
    %1494 = vmatprep.subr.mxu0 0.0
    %1495 = vmatpush1.msra.mxu0 0.0
    %1496 = vmatprep.subr.mxu0 0.0
    %1497 = vmatpush1.msra.mxu0 0.0
    %1498 = vmatprep.subr.mxu0 0.0
    %1499 = vmatpush1.msra.mxu0 0.0
    %1500 = vmatprep.subr.mxu0 0.0
    %1501 = vmatpush1.msra.mxu0 0.0
    %1502 = vmatprep.subr.mxu0 0.0
    %1503 = vmatpush1.msra.mxu0 0.0
    %1504 = vmatprep.subr.mxu0 0.0
    %1505 = vmatpush1.msra.mxu0 0.0
    %1506 = vmatprep.subr.mxu0 0.0
    %1507 = vmatpush1.msra.mxu0 0.0
    %1508 = vmatprep.subr.mxu0 0.0
    %1509 = vmatpush1.msra.mxu0 0.0
    %1510 = vmatprep.subr.mxu0 0.0
    %1511 = vmatpush1.msra.mxu0 0.0
    %1512 = vmatprep.subr.mxu0 0.0
    %1513 = vmatpush1.msra.mxu0 0.0
    %1514 = vmatprep.subr.mxu0 0.0
    %1515 = vmatpush1.msra.mxu0 0.0
    %1516 = vmatprep.subr.mxu0 0.0
    %1517 = vmatpush1.msra.mxu0 0.0
    %1518 = vmatprep.subr.mxu0 0.0
    %1519 = vmatpush1.msra.mxu0 0.0
    %1520 = vmatprep.subr.mxu0 0.0
    %1521 = vmatpush1.msra.mxu0 0.0
    %1522 = vmatprep.subr.mxu0 0.0
    %1523 = vmatpush1.msra.mxu0 0.0
    %1524 = vmatprep.subr.mxu0 0.0
    %1525 = vmatpush1.msra.mxu0 0.0
    %1526 = vmatprep.mubr.f32.mxu0 0.0
    %v1527 = vand.u32 %v766, 4294901760
    %1528 = vmatmul.mubr.f32.gmra.mrb[0].mxu0 %v1527
    %v1529 = vpop.f32.mrb[0].mxu0
    %v1530 = vadd.f32 %v1413, %v1529
    %v1531 = vpop.f32.mrb[0].mxu0
    %1532 = vmatprep.mubr.f32.mxu0 0.0
    %v1533 = vand.u32 %v769, 4294901760
    %1534 = vmatmul.mubr.f32.gmra.mrb[0].mxu0 %v1533
    %v1535 = vpop.f32.mrb[0].mxu0
    %v1536 = vadd.f32 %v1419, %v1535
    %v1537 = vpop.f32.mrb[0].mxu0
    %1538 = vmatprep.mubr.f32.mxu0 0.0
    %v1539 = vand.u32 %v772, 4294901760
    %1540 = vmatmul.mubr.f32.gmra.mrb[0].mxu0 %v1539
    %v1541 = vpop.f32.mrb[0].mxu0
    %v1542 = vadd.f32 %v1425, %v1541
    %v1543 = vpop.f32.mrb[0].mxu0
    %1544 = vmatprep.mubr.f32.mxu0 0.0
    %v1545 = vand.u32 %v775, 4294901760
    %1546 = vmatmul.mubr.f32.gmra.mrb[0].mxu0 %v1545
    %v1547 = vpop.f32.mrb[0].mxu0
    %v1548 = vadd.f32 %v1431, %v1547
    %v1549 = vpop.f32.mrb[0].mxu0
    %1550 = vmatprep.mubr.f32.mxu0 0.0
    %v1551 = vand.u32 %v778, 4294901760
    %1552 = vmatmul.mubr.f32.gmra.mrb[0].mxu0 %v1551
    %v1553 = vpop.f32.mrb[0].mxu0
    %v1554 = vadd.f32 %v1437, %v1553
    %v1555 = vpop.f32.mrb[0].mxu0
    %1556 = vmatprep.mubr.f32.mxu0 0.0
    %v1557 = vand.u32 %v781, 4294901760
    %1558 = vmatmul.mubr.f32.gmra.mrb[0].mxu0 %v1557
    %v1559 = vpop.f32.mrb[0].mxu0
    %v1560 = vadd.f32 %v1443, %v1559
    %v1561 = vpop.f32.mrb[0].mxu0
    %1562 = vmatprep.mubr.f32.mxu0 0.0
    %v1563 = vand.u32 %v784, 4294901760
    %1564 = vmatmul.mubr.f32.gmra.mrb[0].mxu0 %v1563
    %v1565 = vpop.f32.mrb[0].mxu0
    %v1566 = vadd.f32 %v1449, %v1565
    %v1567 = vpop.f32.mrb[0].mxu0
    %1568 = vmatprep.mubr.f32.mxu0 0.0
    %v1569 = vand.u32 %v787, 4294901760
    %1570 = vmatmul.mubr.f32.gmra.mrb[0].mxu0 %v1569
    %v1571 = vpop.f32.mrb[0].mxu0
    %v1572 = vadd.f32 %v1455, %v1571
    %v1573 = vpop.f32.mrb[0].mxu0
    %1574 = vdwg.mxu0
    %1576 = vrot.lane.b32.xlu0 %v1536, 32
    %v1577 = vpop.permute.xlu0 %1576
    %1580 = vrot.lane.b32.xlu0 %v1542, 64
    %v1581 = vpop.permute.xlu0 %1580
    %1584 = vrot.lane.b32.xlu0 %v1548, 96
    %v1585 = vpop.permute.xlu0 %1584
    %1588 = vrot.lane.b32.xlu0 %v1560, 32
    %v1589 = vpop.permute.xlu0 %1588
    %1592 = vrot.lane.b32.xlu0 %v1566, 64
    %v1593 = vpop.permute.xlu0 %1592
    %1596 = vrot.lane.b32.xlu0 %v1572, 96
    %v1597 = vpop.permute.xlu0 %1596
    %v1599 = vsel %vm65, %v1530, %v1577
    %v1600 = vsel %vm736, %v1599, %v1581
    %v1601 = vsel %vm741, %v1600, %v1585
    %v1602 = vsel %vm65, %v1554, %v1589
    %v1603 = vsel %vm736, %v1602, %v1593
    %v1604 = vsel %vm741, %v1603, %v1597
    %1606 = vrot.lane.b32.xlu0 %v1530, 96
    %v1607 = vpop.permute.xlu0 %1606
    %1609 = vrot.lane.b32.xlu0 %v1542, 32
    %v1610 = vpop.permute.xlu0 %1609
    %1612 = vrot.lane.b32.xlu0 %v1548, 64
    %v1613 = vpop.permute.xlu0 %1612
    %1616 = vrot.lane.b32.xlu0 %v1554, 96
    %v1617 = vpop.permute.xlu0 %1616
    %1619 = vrot.lane.b32.xlu0 %v1566, 32
    %v1620 = vpop.permute.xlu0 %1619
    %1622 = vrot.lane.b32.xlu0 %v1572, 64
    %v1623 = vpop.permute.xlu0 %1622
    %v1625 = vsel %vm65, %v1607, %v1536
    %v1626 = vsel %vm736, %v1625, %v1610
    %v1627 = vsel %vm741, %v1626, %v1613
    %v1628 = vsel %vm65, %v1617, %v1560
    %v1629 = vsel %vm736, %v1628, %v1620
    %v1630 = vsel %vm741, %v1629, %v1623
    %1631 = vrot.lane.b32.xlu0 %v1530, 64
    %v1632 = vpop.permute.xlu0 %1631
    %1634 = vrot.lane.b32.xlu0 %v1536, 96
    %v1635 = vpop.permute.xlu0 %1634
    %1637 = vrot.lane.b32.xlu0 %v1548, 32
    %v1638 = vpop.permute.xlu0 %1637
    %1640 = vrot.lane.b32.xlu0 %v1554, 64
    %v1641 = vpop.permute.xlu0 %1640
    %1643 = vrot.lane.b32.xlu0 %v1560, 96
    %v1644 = vpop.permute.xlu0 %1643
    %1646 = vrot.lane.b32.xlu0 %v1572, 32
    %v1647 = vpop.permute.xlu0 %1646
    %v1649 = vsel %vm65, %v1632, %v1635
    %v1650 = vsel %vm736, %v1649, %v1542
    %v1651 = vsel %vm741, %v1650, %v1638
    %v1652 = vsel %vm65, %v1641, %v1644
    %v1653 = vsel %vm736, %v1652, %v1566
    %v1654 = vsel %vm741, %v1653, %v1647
    %1655 = vrot.lane.b32.xlu0 %v1530, 32
    %v1656 = vpop.permute.xlu0 %1655
    %1658 = vrot.lane.b32.xlu0 %v1536, 64
    %v1659 = vpop.permute.xlu0 %1658
    %1661 = vrot.lane.b32.xlu0 %v1542, 96
    %v1662 = vpop.permute.xlu0 %1661
    %1664 = vrot.lane.b32.xlu0 %v1554, 32
    %v1665 = vpop.permute.xlu0 %1664
    %1667 = vrot.lane.b32.xlu0 %v1560, 64
    %v1668 = vpop.permute.xlu0 %1667
    %1670 = vrot.lane.b32.xlu0 %v1566, 96
    %v1671 = vpop.permute.xlu0 %1670
    %v1673 = vsel %vm65, %v1656, %v1659
    %v1674 = vsel %vm736, %v1673, %v1662
    %v1675 = vsel %vm741, %v1674, %v1548
    %v1676 = vsel %vm65, %v1665, %v1668
    %v1677 = vsel %vm736, %v1676, %v1671
    %v1678 = vsel %vm741, %v1677, %v1572
    %v1679 = vmul.f32 %v742, %v1601
    %v1680 = vmul.f32 %v742, %v1604
    %v1681 = vmul.f32 %v743, %v1601
    %v1682 = vmul.f32 %v743, %v1604
    %v1683 = vmul.f32 %v744, %v1601
    %v1684 = vmul.f32 %v744, %v1604
    %v1685 = vmul.f32 %v745, %v1601
    %v1686 = vmul.f32 %v745, %v1604
    %v1687 = vld [vmem:[#allocation2] sm:$0xff]
    %v1688 = vld [vmem:[#allocation2 + $0x8] sm:$0xff]
    %v1689 = vld [vmem:[#allocation2 + $0x10] sm:$0xff]
    %v1690 = vld [vmem:[#allocation2 + $0x18] sm:$0xff]
    %v1691 = vld [vmem:[#allocation2 + $0x20] sm:$0xff]
    %v1692 = vld [vmem:[#allocation2 + $0x28] sm:$0xff]
    %v1693 = vld [vmem:[#allocation2 + $0x30] sm:$0xff]
    %v1694 = vld [vmem:[#allocation2 + $0x38] sm:$0xff]
    %v1695 = vld [vmem:[#allocation2 + $0x40] sm:$0xff]
    %v1696 = vld [vmem:[#allocation2 + $0x48] sm:$0xff]
    %v1697 = vld [vmem:[#allocation2 + $0x50] sm:$0xff]
    %v1698 = vld [vmem:[#allocation2 + $0x58] sm:$0xff]
    %v1699 = vld [vmem:[#allocation2 + $0x60] sm:$0xff]
    %v1700 = vld [vmem:[#allocation2 + $0x68] sm:$0xff]
    %v1701 = vld [vmem:[#allocation2 + $0x70] sm:$0xff]
    %v1702 = vld [vmem:[#allocation2 + $0x78] sm:$0xff]
    %v1703 = vld [vmem:[#allocation2 + $0x80] sm:$0xff]
    %v1704 = vld [vmem:[#allocation2 + $0x88] sm:$0xff]
    %v1705 = vld [vmem:[#allocation2 + $0x90] sm:$0xff]
    %v1706 = vld [vmem:[#allocation2 + $0x98] sm:$0xff]
    %v1707 = vld [vmem:[#allocation2 + $0xa0] sm:$0xff]
    %v1708 = vld [vmem:[#allocation2 + $0xa8] sm:$0xff]
    %v1709 = vld [vmem:[#allocation2 + $0xb0] sm:$0xff]
    %v1710 = vld [vmem:[#allocation2 + $0xb8] sm:$0xff]
    %v1711 = vld [vmem:[#allocation2 + $0xc0] sm:$0xff]
    %v1712 = vld [vmem:[#allocation2 + $0xc8] sm:$0xff]
    %v1713 = vld [vmem:[#allocation2 + $0xd0] sm:$0xff]
    %v1714 = vld [vmem:[#allocation2 + $0xd8] sm:$0xff]
    %v1715 = vld [vmem:[#allocation2 + $0xe0] sm:$0xff]
    %v1716 = vld [vmem:[#allocation2 + $0xe8] sm:$0xff]
    %v1717 = vld [vmem:[#allocation2 + $0xf0] sm:$0xff]
    %v1718 = vld [vmem:[#allocation2 + $0xf8] sm:$0xff]
    %v1719 = vld [vmem:[#allocation2 + $0x100] sm:$0xff]
    %v1720 = vld [vmem:[#allocation2 + $0x108] sm:$0xff]
    %v1721 = vld [vmem:[#allocation2 + $0x110] sm:$0xff]
    %v1722 = vld [vmem:[#allocation2 + $0x118] sm:$0xff]
    %v1723 = vld [vmem:[#allocation2 + $0x120] sm:$0xff]
    %v1724 = vld [vmem:[#allocation2 + $0x128] sm:$0xff]
    %v1725 = vld [vmem:[#allocation2 + $0x130] sm:$0xff]
    %v1726 = vld [vmem:[#allocation2 + $0x138] sm:$0xff]
    %v1727 = vld [vmem:[#allocation2 + $0x140] sm:$0xff]
    %v1728 = vld [vmem:[#allocation2 + $0x148] sm:$0xff]
    %v1729 = vld [vmem:[#allocation2 + $0x150] sm:$0xff]
    %v1730 = vld [vmem:[#allocation2 + $0x158] sm:$0xff]
    %v1731 = vld [vmem:[#allocation2 + $0x160] sm:$0xff]
    %v1732 = vld [vmem:[#allocation2 + $0x168] sm:$0xff]
    %v1733 = vld [vmem:[#allocation2 + $0x170] sm:$0xff]
    %v1734 = vld [vmem:[#allocation2 + $0x178] sm:$0xff]
    %v1735 = vld [vmem:[#allocation2 + $0x180] sm:$0xff]
    %v1736 = vld [vmem:[#allocation2 + $0x188] sm:$0xff]
    %v1737 = vld [vmem:[#allocation2 + $0x190] sm:$0xff]
    %v1738 = vld [vmem:[#allocation2 + $0x198] sm:$0xff]
    %v1739 = vld [vmem:[#allocation2 + $0x1a0] sm:$0xff]
    %v1740 = vld [vmem:[#allocation2 + $0x1a8] sm:$0xff]
    %v1741 = vld [vmem:[#allocation2 + $0x1b0] sm:$0xff]
    %v1742 = vld [vmem:[#allocation2 + $0x1b8] sm:$0xff]
    %v1743 = vld [vmem:[#allocation2 + $0x1c0] sm:$0xff]
    %v1744 = vld [vmem:[#allocation2 + $0x1c8] sm:$0xff]
    %v1745 = vld [vmem:[#allocation2 + $0x1d0] sm:$0xff]
    %v1746 = vld [vmem:[#allocation2 + $0x1d8] sm:$0xff]
    %v1747 = vld [vmem:[#allocation2 + $0x1e0] sm:$0xff]
    %v1748 = vld [vmem:[#allocation2 + $0x1e8] sm:$0xff]
    %v1749 = vld [vmem:[#allocation2 + $0x1f0] sm:$0xff]
    %v1750 = vld [vmem:[#allocation2 + $0x1f8] sm:$0xff]
    %v1751 = vand.u32 %v1688, 4294901760
    %1752 = vmatprep.subr.mxu0 %v1751
    %v1753 = vand.u32 %v1687, 4294901760
    %1754 = vmatpush1.msra.mxu0 %v1753
    %v1755 = vand.u32 %v1690, 4294901760
    %1756 = vmatprep.subr.mxu0 %v1755
    %v1757 = vand.u32 %v1689, 4294901760
    %1758 = vmatpush1.msra.mxu0 %v1757
    %v1759 = vand.u32 %v1692, 4294901760
    %1760 = vmatprep.subr.mxu0 %v1759
    %v1761 = vand.u32 %v1691, 4294901760
    %1762 = vmatpush1.msra.mxu0 %v1761
    %v1763 = vand.u32 %v1694, 4294901760
    %1764 = vmatprep.subr.mxu0 %v1763
    %v1765 = vand.u32 %v1693, 4294901760
    %1766 = vmatpush1.msra.mxu0 %v1765
    %v1767 = vand.u32 %v1696, 4294901760
    %1768 = vmatprep.subr.mxu0 %v1767
    %v1769 = vand.u32 %v1695, 4294901760
    %1770 = vmatpush1.msra.mxu0 %v1769
    %v1771 = vand.u32 %v1698, 4294901760
    %1772 = vmatprep.subr.mxu0 %v1771
    %v1773 = vand.u32 %v1697, 4294901760
    %1774 = vmatpush1.msra.mxu0 %v1773
    %v1775 = vand.u32 %v1700, 4294901760
    %1776 = vmatprep.subr.mxu0 %v1775
    %v1777 = vand.u32 %v1699, 4294901760
    %1778 = vmatpush1.msra.mxu0 %v1777
    %v1779 = vand.u32 %v1702, 4294901760
    %1780 = vmatprep.subr.mxu0 %v1779
    %v1781 = vand.u32 %v1701, 4294901760
    %1782 = vmatpush1.msra.mxu0 %v1781
    %v1783 = vand.u32 %v1704, 4294901760
    %1784 = vmatprep.subr.mxu0 %v1783
    %v1785 = vand.u32 %v1703, 4294901760
    %1786 = vmatpush1.msra.mxu0 %v1785
    %v1787 = vand.u32 %v1706, 4294901760
    %1788 = vmatprep.subr.mxu0 %v1787
    %v1789 = vand.u32 %v1705, 4294901760
    %1790 = vmatpush1.msra.mxu0 %v1789
    %v1791 = vand.u32 %v1708, 4294901760
    %1792 = vmatprep.subr.mxu0 %v1791
    %v1793 = vand.u32 %v1707, 4294901760
    %1794 = vmatpush1.msra.mxu0 %v1793
    %v1795 = vand.u32 %v1710, 4294901760
    %1796 = vmatprep.subr.mxu0 %v1795
    %v1797 = vand.u32 %v1709, 4294901760
    %1798 = vmatpush1.msra.mxu0 %v1797
    %v1799 = vand.u32 %v1712, 4294901760
    %1800 = vmatprep.subr.mxu0 %v1799
    %v1801 = vand.u32 %v1711, 4294901760
    %1802 = vmatpush1.msra.mxu0 %v1801
    %v1803 = vand.u32 %v1714, 4294901760
    %1804 = vmatprep.subr.mxu0 %v1803
    %v1805 = vand.u32 %v1713, 4294901760
    %1806 = vmatpush1.msra.mxu0 %v1805
    %v1807 = vand.u32 %v1716, 4294901760
    %1808 = vmatprep.subr.mxu0 %v1807
    %v1809 = vand.u32 %v1715, 4294901760
    %1810 = vmatpush1.msra.mxu0 %v1809
    %v1811 = vand.u32 %v1718, 4294901760
    %1812 = vmatprep.subr.mxu0 %v1811
    %v1813 = vand.u32 %v1717, 4294901760
    %1814 = vmatpush1.msra.mxu0 %v1813
    %v1815 = vand.u32 %v1720, 4294901760
    %1816 = vmatprep.subr.mxu0 %v1815
    %v1817 = vand.u32 %v1719, 4294901760
    %1818 = vmatpush1.msra.mxu0 %v1817
    %v1819 = vand.u32 %v1722, 4294901760
    %1820 = vmatprep.subr.mxu0 %v1819
    %v1821 = vand.u32 %v1721, 4294901760
    %1822 = vmatpush1.msra.mxu0 %v1821
    %v1823 = vand.u32 %v1724, 4294901760
    %1824 = vmatprep.subr.mxu0 %v1823
    %v1825 = vand.u32 %v1723, 4294901760
    %1826 = vmatpush1.msra.mxu0 %v1825
    %v1827 = vand.u32 %v1726, 4294901760
    %1828 = vmatprep.subr.mxu0 %v1827
    %v1829 = vand.u32 %v1725, 4294901760
    %1830 = vmatpush1.msra.mxu0 %v1829
    %v1831 = vand.u32 %v1728, 4294901760
    %1832 = vmatprep.subr.mxu0 %v1831
    %v1833 = vand.u32 %v1727, 4294901760
    %1834 = vmatpush1.msra.mxu0 %v1833
    %v1835 = vand.u32 %v1730, 4294901760
    %1836 = vmatprep.subr.mxu0 %v1835
    %v1837 = vand.u32 %v1729, 4294901760
    %1838 = vmatpush1.msra.mxu0 %v1837
    %v1839 = vand.u32 %v1732, 4294901760
    %1840 = vmatprep.subr.mxu0 %v1839
    %v1841 = vand.u32 %v1731, 4294901760
    %1842 = vmatpush1.msra.mxu0 %v1841
    %v1843 = vand.u32 %v1734, 4294901760
    %1844 = vmatprep.subr.mxu0 %v1843
    %v1845 = vand.u32 %v1733, 4294901760
    %1846 = vmatpush1.msra.mxu0 %v1845
    %v1847 = vand.u32 %v1736, 4294901760
    %1848 = vmatprep.subr.mxu0 %v1847
    %v1849 = vand.u32 %v1735, 4294901760
    %1850 = vmatpush1.msra.mxu0 %v1849
    %v1851 = vand.u32 %v1738, 4294901760
    %1852 = vmatprep.subr.mxu0 %v1851
    %v1853 = vand.u32 %v1737, 4294901760
    %1854 = vmatpush1.msra.mxu0 %v1853
    %v1855 = vand.u32 %v1740, 4294901760
    %1856 = vmatprep.subr.mxu0 %v1855
    %v1857 = vand.u32 %v1739, 4294901760
    %1858 = vmatpush1.msra.mxu0 %v1857
    %v1859 = vand.u32 %v1742, 4294901760
    %1860 = vmatprep.subr.mxu0 %v1859
    %v1861 = vand.u32 %v1741, 4294901760
    %1862 = vmatpush1.msra.mxu0 %v1861
    %v1863 = vand.u32 %v1744, 4294901760
    %1864 = vmatprep.subr.mxu0 %v1863
    %v1865 = vand.u32 %v1743, 4294901760
    %1866 = vmatpush1.msra.mxu0 %v1865
    %v1867 = vand.u32 %v1746, 4294901760
    %1868 = vmatprep.subr.mxu0 %v1867
    %v1869 = vand.u32 %v1745, 4294901760
    %1870 = vmatpush1.msra.mxu0 %v1869
    %v1871 = vand.u32 %v1748, 4294901760
    %1872 = vmatprep.subr.mxu0 %v1871
    %v1873 = vand.u32 %v1747, 4294901760
    %1874 = vmatpush1.msra.mxu0 %v1873
    %v1875 = vand.u32 %v1750, 4294901760
    %1876 = vmatprep.subr.mxu0 %v1875
    %v1877 = vand.u32 %v1749, 4294901760
    %1878 = vmatpush1.msra.mxu0 %v1877
    %v1879 = vand.u32 %v1680, 4294901760
    %v1880 = vsub.f32 %v1680, %v1879
    %v1881 = vand.u32 %v1880, 4294901760
    %v1882 = vsub.f32 %v1880, %v1881
    %v1883 = vand.u32 %v1882, 4294901760
    %1884 = vmatprep.mubr.f32.mxu0 %v1883
    %v1885 = vand.u32 %v1679, 4294901760
    %v1886 = vsub.f32 %v1679, %v1885
    %v1887 = vand.u32 %v1886, 4294901760
    %v1888 = vsub.f32 %v1886, %v1887
    %v1889 = vand.u32 %v1888, 4294901760
    %1890 = vmatmul.mubr.f32.gmra.mrb[0].mxu0 %v1889
    %v1891 = vpop.f32.mrb[0].mxu0
    %v1892 = vadd.f32 %v1651, %v1891
    %v1893 = vpop.f32.mrb[0].mxu0
    %v1894 = vadd.f32 %v1654, %v1893
    %v1895 = vand.u32 %v1682, 4294901760
    %v1896 = vsub.f32 %v1682, %v1895
    %v1897 = vand.u32 %v1896, 4294901760
    %v1898 = vsub.f32 %v1896, %v1897
    %v1899 = vand.u32 %v1898, 4294901760
    %1900 = vmatprep.mubr.f32.mxu0 %v1899
    %v1901 = vand.u32 %v1681, 4294901760
    %v1902 = vsub.f32 %v1681, %v1901
    %v1903 = vand.u32 %v1902, 4294901760
    %v1904 = vsub.f32 %v1902, %v1903
    %v1905 = vand.u32 %v1904, 4294901760
    %1906 = vmatmul.mubr.f32.gmra.mrb[0].mxu0 %v1905
    %v1907 = vpop.f32.mrb[0].mxu0
    %v1908 = vadd.f32 %v1651, %v1907
    %v1909 = vpop.f32.mrb[0].mxu0
    %v1910 = vadd.f32 %v1654, %v1909
    %v1911 = vand.u32 %v1684, 4294901760
    %v1912 = vsub.f32 %v1684, %v1911
    %v1913 = vand.u32 %v1912, 4294901760
    %v1914 = vsub.f32 %v1912, %v1913
    %v1915 = vand.u32 %v1914, 4294901760
    %1916 = vmatprep.mubr.f32.mxu0 %v1915
    %v1917 = vand.u32 %v1683, 4294901760
    %v1918 = vsub.f32 %v1683, %v1917
    %v1919 = vand.u32 %v1918, 4294901760
    %v1920 = vsub.f32 %v1918, %v1919
    %v1921 = vand.u32 %v1920, 4294901760
    %1922 = vmatmul.mubr.f32.gmra.mrb[0].mxu0 %v1921
    %v1923 = vpop.f32.mrb[0].mxu0
    %v1924 = vadd.f32 %v1651, %v1923
    %v1925 = vpop.f32.mrb[0].mxu0
    %v1926 = vadd.f32 %v1654, %v1925
    %v1927 = vand.u32 %v1686, 4294901760
    %v1928 = vsub.f32 %v1686, %v1927
    %v1929 = vand.u32 %v1928, 4294901760
    %v1930 = vsub.f32 %v1928, %v1929
    %v1931 = vand.u32 %v1930, 4294901760
    %1932 = vmatprep.mubr.f32.mxu0 %v1931
    %v1933 = vand.u32 %v1685, 4294901760
    %v1934 = vsub.f32 %v1685, %v1933
    %v1935 = vand.u32 %v1934, 4294901760
    %v1936 = vsub.f32 %v1934, %v1935
    %v1937 = vand.u32 %v1936, 4294901760
    %1938 = vmatmul.mubr.f32.gmra.mrb[0].mxu0 %v1937
    %v1939 = vpop.f32.mrb[0].mxu0
    %v1940 = vadd.f32 %v1651, %v1939
    %v1941 = vpop.f32.mrb[0].mxu0
    %v1942 = vadd.f32 %v1654, %v1941
    %1943 = vdwg.mxu0
    %v1944 = vand.u32 %v1688, 4294901760
    %v1945 = vsub.f32 %v1688, %v1944
    %v1946 = vand.u32 %v1945, 4294901760
    %v1947 = vsub.f32 %v1945, %v1946
    %v1948 = vand.u32 %v1947, 4294901760
    %1949 = vmatprep.subr.mxu0 %v1948
    %v1950 = vand.u32 %v1687, 4294901760
    %v1951 = vsub.f32 %v1687, %v1950
    %v1952 = vand.u32 %v1951, 4294901760
    %v1953 = vsub.f32 %v1951, %v1952
    %v1954 = vand.u32 %v1953, 4294901760
    %1955 = vmatpush1.msra.mxu0 %v1954
    %v1956 = vand.u32 %v1690, 4294901760
    %v1957 = vsub.f32 %v1690, %v1956
    %v1958 = vand.u32 %v1957, 4294901760
    %v1959 = vsub.f32 %v1957, %v1958
    %v1960 = vand.u32 %v1959, 4294901760
    %1961 = vmatprep.subr.mxu0 %v1960
    %v1962 = vand.u32 %v1689, 4294901760
    %v1963 = vsub.f32 %v1689, %v1962
    %v1964 = vand.u32 %v1963, 4294901760
    %v1965 = vsub.f32 %v1963, %v1964
    %v1966 = vand.u32 %v1965, 4294901760
    %1967 = vmatpush1.msra.mxu0 %v1966
    %v1968 = vand.u32 %v1692, 4294901760
    %v1969 = vsub.f32 %v1692, %v1968
    %v1970 = vand.u32 %v1969, 4294901760
    %v1971 = vsub.f32 %v1969, %v1970
    %v1972 = vand.u32 %v1971, 4294901760
    %1973 = vmatprep.subr.mxu0 %v1972
    %v1974 = vand.u32 %v1691, 4294901760
    %v1975 = vsub.f32 %v1691, %v1974
    %v1976 = vand.u32 %v1975, 4294901760
    %v1977 = vsub.f32 %v1975, %v1976
    %v1978 = vand.u32 %v1977, 4294901760
    %1979 = vmatpush1.msra.mxu0 %v1978
    %v1980 = vand.u32 %v1694, 4294901760
    %v1981 = vsub.f32 %v1694, %v1980
    %v1982 = vand.u32 %v1981, 4294901760
    %v1983 = vsub.f32 %v1981, %v1982
    %v1984 = vand.u32 %v1983, 4294901760
    %1985 = vmatprep.subr.mxu0 %v1984
    %v1986 = vand.u32 %v1693, 4294901760
    %v1987 = vsub.f32 %v1693, %v1986
    %v1988 = vand.u32 %v1987, 4294901760
    %v1989 = vsub.f32 %v1987, %v1988
    %v1990 = vand.u32 %v1989, 4294901760
    %1991 = vmatpush1.msra.mxu0 %v1990
    %v1992 = vand.u32 %v1696, 4294901760
    %v1993 = vsub.f32 %v1696, %v1992
    %v1994 = vand.u32 %v1993, 4294901760
    %v1995 = vsub.f32 %v1993, %v1994
    %v1996 = vand.u32 %v1995, 4294901760
    %1997 = vmatprep.subr.mxu0 %v1996
    %v1998 = vand.u32 %v1695, 4294901760
    %v1999 = vsub.f32 %v1695, %v1998
    %v2000 = vand.u32 %v1999, 4294901760
    %v2001 = vsub.f32 %v1999, %v2000
    %v2002 = vand.u32 %v2001, 4294901760
    %2003 = vmatpush1.msra.mxu0 %v2002
    %v2004 = vand.u32 %v1698, 4294901760
    %v2005 = vsub.f32 %v1698, %v2004
    %v2006 = vand.u32 %v2005, 4294901760
    %v2007 = vsub.f32 %v2005, %v2006
    %v2008 = vand.u32 %v2007, 4294901760
    %2009 = vmatprep.subr.mxu0 %v2008
    %v2010 = vand.u32 %v1697, 4294901760
    %v2011 = vsub.f32 %v1697, %v2010
    %v2012 = vand.u32 %v2011, 4294901760
    %v2013 = vsub.f32 %v2011, %v2012
    %v2014 = vand.u32 %v2013, 4294901760
    %2015 = vmatpush1.msra.mxu0 %v2014
    %v2016 = vand.u32 %v1700, 4294901760
    %v2017 = vsub.f32 %v1700, %v2016
    %v2018 = vand.u32 %v2017, 4294901760
    %v2019 = vsub.f32 %v2017, %v2018
    %v2020 = vand.u32 %v2019, 4294901760
    %2021 = vmatprep.subr.mxu0 %v2020
    %v2022 = vand.u32 %v1699, 4294901760
    %v2023 = vsub.f32 %v1699, %v2022
    %v2024 = vand.u32 %v2023, 4294901760
    %v2025 = vsub.f32 %v2023, %v2024
    %v2026 = vand.u32 %v2025, 4294901760
    %2027 = vmatpush1.msra.mxu0 %v2026
    %v2028 = vand.u32 %v1702, 4294901760
    %v2029 = vsub.f32 %v1702, %v2028
    %v2030 = vand.u32 %v2029, 4294901760
    %v2031 = vsub.f32 %v2029, %v2030
    %v2032 = vand.u32 %v2031, 4294901760
    %2033 = vmatprep.subr.mxu0 %v2032
    %v2034 = vand.u32 %v1701, 4294901760
    %v2035 = vsub.f32 %v1701, %v2034
    %v2036 = vand.u32 %v2035, 4294901760
    %v2037 = vsub.f32 %v2035, %v2036
    %v2038 = vand.u32 %v2037, 4294901760
    %2039 = vmatpush1.msra.mxu0 %v2038
    %v2040 = vand.u32 %v1704, 4294901760
    %v2041 = vsub.f32 %v1704, %v2040
    %v2042 = vand.u32 %v2041, 4294901760
    %v2043 = vsub.f32 %v2041, %v2042
    %v2044 = vand.u32 %v2043, 4294901760
    %2045 = vmatprep.subr.mxu0 %v2044
    %v2046 = vand.u32 %v1703, 4294901760
    %v2047 = vsub.f32 %v1703, %v2046
    %v2048 = vand.u32 %v2047, 4294901760
    %v2049 = vsub.f32 %v2047, %v2048
    %v2050 = vand.u32 %v2049, 4294901760
    %2051 = vmatpush1.msra.mxu0 %v2050
    %v2052 = vand.u32 %v1706, 4294901760
    %v2053 = vsub.f32 %v1706, %v2052
    %v2054 = vand.u32 %v2053, 4294901760
    %v2055 = vsub.f32 %v2053, %v2054
    %v2056 = vand.u32 %v2055, 4294901760
    %2057 = vmatprep.subr.mxu0 %v2056
    %v2058 = vand.u32 %v1705, 4294901760
    %v2059 = vsub.f32 %v1705, %v2058
    %v2060 = vand.u32 %v2059, 4294901760
    %v2061 = vsub.f32 %v2059, %v2060
    %v2062 = vand.u32 %v2061, 4294901760
    %2063 = vmatpush1.msra.mxu0 %v2062
    %v2064 = vand.u32 %v1708, 4294901760
    %v2065 = vsub.f32 %v1708, %v2064
    %v2066 = vand.u32 %v2065, 4294901760
    %v2067 = vsub.f32 %v2065, %v2066
    %v2068 = vand.u32 %v2067, 4294901760
    %2069 = vmatprep.subr.mxu0 %v2068
    %v2070 = vand.u32 %v1707, 4294901760
    %v2071 = vsub.f32 %v1707, %v2070
    %v2072 = vand.u32 %v2071, 4294901760
    %v2073 = vsub.f32 %v2071, %v2072
    %v2074 = vand.u32 %v2073, 4294901760
    %2075 = vmatpush1.msra.mxu0 %v2074
    %v2076 = vand.u32 %v1710, 4294901760
    %v2077 = vsub.f32 %v1710, %v2076
    %v2078 = vand.u32 %v2077, 4294901760
    %v2079 = vsub.f32 %v2077, %v2078
    %v2080 = vand.u32 %v2079, 4294901760
    %2081 = vmatprep.subr.mxu0 %v2080
    %v2082 = vand.u32 %v1709, 4294901760
    %v2083 = vsub.f32 %v1709, %v2082
    %v2084 = vand.u32 %v2083, 4294901760
    %v2085 = vsub.f32 %v2083, %v2084
    %v2086 = vand.u32 %v2085, 4294901760
    %2087 = vmatpush1.msra.mxu0 %v2086
    %v2088 = vand.u32 %v1712, 4294901760
    %v2089 = vsub.f32 %v1712, %v2088
    %v2090 = vand.u32 %v2089, 4294901760
    %v2091 = vsub.f32 %v2089, %v2090
    %v2092 = vand.u32 %v2091, 4294901760
    %2093 = vmatprep.subr.mxu0 %v2092
    %v2094 = vand.u32 %v1711, 4294901760
    %v2095 = vsub.f32 %v1711, %v2094
    %v2096 = vand.u32 %v2095, 4294901760
    %v2097 = vsub.f32 %v2095, %v2096
    %v2098 = vand.u32 %v2097, 4294901760
    %2099 = vmatpush1.msra.mxu0 %v2098
    %v2100 = vand.u32 %v1714, 4294901760
    %v2101 = vsub.f32 %v1714, %v2100
    %v2102 = vand.u32 %v2101, 4294901760
    %v2103 = vsub.f32 %v2101, %v2102
    %v2104 = vand.u32 %v2103, 4294901760
    %2105 = vmatprep.subr.mxu0 %v2104
    %v2106 = vand.u32 %v1713, 4294901760
    %v2107 = vsub.f32 %v1713, %v2106
    %v2108 = vand.u32 %v2107, 4294901760
    %v2109 = vsub.f32 %v2107, %v2108
    %v2110 = vand.u32 %v2109, 4294901760
    %2111 = vmatpush1.msra.mxu0 %v2110
    %v2112 = vand.u32 %v1716, 4294901760
    %v2113 = vsub.f32 %v1716, %v2112
    %v2114 = vand.u32 %v2113, 4294901760
    %v2115 = vsub.f32 %v2113, %v2114
    %v2116 = vand.u32 %v2115, 4294901760
    %2117 = vmatprep.subr.mxu0 %v2116
    %v2118 = vand.u32 %v1715, 4294901760
    %v2119 = vsub.f32 %v1715, %v2118
    %v2120 = vand.u32 %v2119, 4294901760
    %v2121 = vsub.f32 %v2119, %v2120
    %v2122 = vand.u32 %v2121, 4294901760
    %2123 = vmatpush1.msra.mxu0 %v2122
    %v2124 = vand.u32 %v1718, 4294901760
    %v2125 = vsub.f32 %v1718, %v2124
    %v2126 = vand.u32 %v2125, 4294901760
    %v2127 = vsub.f32 %v2125, %v2126
    %v2128 = vand.u32 %v2127, 4294901760
    %2129 = vmatprep.subr.mxu0 %v2128
    %v2130 = vand.u32 %v1717, 4294901760
    %v2131 = vsub.f32 %v1717, %v2130
    %v2132 = vand.u32 %v2131, 4294901760
    %v2133 = vsub.f32 %v2131, %v2132
    %v2134 = vand.u32 %v2133, 4294901760
    %2135 = vmatpush1.msra.mxu0 %v2134
    %v2136 = vand.u32 %v1720, 4294901760
    %v2137 = vsub.f32 %v1720, %v2136
    %v2138 = vand.u32 %v2137, 4294901760
    %v2139 = vsub.f32 %v2137, %v2138
    %v2140 = vand.u32 %v2139, 4294901760
    %2141 = vmatprep.subr.mxu0 %v2140
    %v2142 = vand.u32 %v1719, 4294901760
    %v2143 = vsub.f32 %v1719, %v2142
    %v2144 = vand.u32 %v2143, 4294901760
    %v2145 = vsub.f32 %v2143, %v2144
    %v2146 = vand.u32 %v2145, 4294901760
    %2147 = vmatpush1.msra.mxu0 %v2146
    %v2148 = vand.u32 %v1722, 4294901760
    %v2149 = vsub.f32 %v1722, %v2148
    %v2150 = vand.u32 %v2149, 4294901760
    %v2151 = vsub.f32 %v2149, %v2150
    %v2152 = vand.u32 %v2151, 4294901760
    %2153 = vmatprep.subr.mxu0 %v2152
    %v2154 = vand.u32 %v1721, 4294901760
    %v2155 = vsub.f32 %v1721, %v2154
    %v2156 = vand.u32 %v2155, 4294901760
    %v2157 = vsub.f32 %v2155, %v2156
    %v2158 = vand.u32 %v2157, 4294901760
    %2159 = vmatpush1.msra.mxu0 %v2158
    %v2160 = vand.u32 %v1724, 4294901760
    %v2161 = vsub.f32 %v1724, %v2160
    %v2162 = vand.u32 %v2161, 4294901760
    %v2163 = vsub.f32 %v2161, %v2162
    %v2164 = vand.u32 %v2163, 4294901760
    %2165 = vmatprep.subr.mxu0 %v2164
    %v2166 = vand.u32 %v1723, 4294901760
    %v2167 = vsub.f32 %v1723, %v2166
    %v2168 = vand.u32 %v2167, 4294901760
    %v2169 = vsub.f32 %v2167, %v2168
    %v2170 = vand.u32 %v2169, 4294901760
    %2171 = vmatpush1.msra.mxu0 %v2170
    %v2172 = vand.u32 %v1726, 4294901760
    %v2173 = vsub.f32 %v1726, %v2172
    %v2174 = vand.u32 %v2173, 4294901760
    %v2175 = vsub.f32 %v2173, %v2174
    %v2176 = vand.u32 %v2175, 4294901760
    %2177 = vmatprep.subr.mxu0 %v2176
    %v2178 = vand.u32 %v1725, 4294901760
    %v2179 = vsub.f32 %v1725, %v2178
    %v2180 = vand.u32 %v2179, 4294901760
    %v2181 = vsub.f32 %v2179, %v2180
    %v2182 = vand.u32 %v2181, 4294901760
    %2183 = vmatpush1.msra.mxu0 %v2182
    %v2184 = vand.u32 %v1728, 4294901760
    %v2185 = vsub.f32 %v1728, %v2184
    %v2186 = vand.u32 %v2185, 4294901760
    %v2187 = vsub.f32 %v2185, %v2186
    %v2188 = vand.u32 %v2187, 4294901760
    %2189 = vmatprep.subr.mxu0 %v2188
    %v2190 = vand.u32 %v1727, 4294901760
    %v2191 = vsub.f32 %v1727, %v2190
    %v2192 = vand.u32 %v2191, 4294901760
    %v2193 = vsub.f32 %v2191, %v2192
    %v2194 = vand.u32 %v2193, 4294901760
    %2195 = vmatpush1.msra.mxu0 %v2194
    %v2196 = vand.u32 %v1730, 4294901760
    %v2197 = vsub.f32 %v1730, %v2196
    %v2198 = vand.u32 %v2197, 4294901760
    %v2199 = vsub.f32 %v2197, %v2198
    %v2200 = vand.u32 %v2199, 4294901760
    %2201 = vmatprep.subr.mxu0 %v2200
    %v2202 = vand.u32 %v1729, 4294901760
    %v2203 = vsub.f32 %v1729, %v2202
    %v2204 = vand.u32 %v2203, 4294901760
    %v2205 = vsub.f32 %v2203, %v2204
    %v2206 = vand.u32 %v2205, 4294901760
    %2207 = vmatpush1.msra.mxu0 %v2206
    %v2208 = vand.u32 %v1732, 4294901760
    %v2209 = vsub.f32 %v1732, %v2208
    %v2210 = vand.u32 %v2209, 4294901760
    %v2211 = vsub.f32 %v2209, %v2210
    %v2212 = vand.u32 %v2211, 4294901760
    %2213 = vmatprep.subr.mxu0 %v2212
    %v2214 = vand.u32 %v1731, 4294901760
    %v2215 = vsub.f32 %v1731, %v2214
    %v2216 = vand.u32 %v2215, 4294901760
    %v2217 = vsub.f32 %v2215, %v2216
    %v2218 = vand.u32 %v2217, 4294901760
    %2219 = vmatpush1.msra.mxu0 %v2218
    %v2220 = vand.u32 %v1734, 4294901760
    %v2221 = vsub.f32 %v1734, %v2220
    %v2222 = vand.u32 %v2221, 4294901760
    %v2223 = vsub.f32 %v2221, %v2222
    %v2224 = vand.u32 %v2223, 4294901760
    %2225 = vmatprep.subr.mxu0 %v2224
    %v2226 = vand.u32 %v1733, 4294901760
    %v2227 = vsub.f32 %v1733, %v2226
    %v2228 = vand.u32 %v2227, 4294901760
    %v2229 = vsub.f32 %v2227, %v2228
    %v2230 = vand.u32 %v2229, 4294901760
    %2231 = vmatpush1.msra.mxu0 %v2230
    %v2232 = vand.u32 %v1736, 4294901760
    %v2233 = vsub.f32 %v1736, %v2232
    %v2234 = vand.u32 %v2233, 4294901760
    %v2235 = vsub.f32 %v2233, %v2234
    %v2236 = vand.u32 %v2235, 4294901760
    %2237 = vmatprep.subr.mxu0 %v2236
    %v2238 = vand.u32 %v1735, 4294901760
    %v2239 = vsub.f32 %v1735, %v2238
    %v2240 = vand.u32 %v2239, 4294901760
    %v2241 = vsub.f32 %v2239, %v2240
    %v2242 = vand.u32 %v2241, 4294901760
    %2243 = vmatpush1.msra.mxu0 %v2242
    %v2244 = vand.u32 %v1738, 4294901760
    %v2245 = vsub.f32 %v1738, %v2244
    %v2246 = vand.u32 %v2245, 4294901760
    %v2247 = vsub.f32 %v2245, %v2246
    %v2248 = vand.u32 %v2247, 4294901760
    %2249 = vmatprep.subr.mxu0 %v2248
    %v2250 = vand.u32 %v1737, 4294901760
    %v2251 = vsub.f32 %v1737, %v2250
    %v2252 = vand.u32 %v2251, 4294901760
    %v2253 = vsub.f32 %v2251, %v2252
    %v2254 = vand.u32 %v2253, 4294901760
    %2255 = vmatpush1.msra.mxu0 %v2254
    %v2256 = vand.u32 %v1740, 4294901760
    %v2257 = vsub.f32 %v1740, %v2256
    %v2258 = vand.u32 %v2257, 4294901760
    %v2259 = vsub.f32 %v2257, %v2258
    %v2260 = vand.u32 %v2259, 4294901760
    %2261 = vmatprep.subr.mxu0 %v2260
    %v2262 = vand.u32 %v1739, 4294901760
    %v2263 = vsub.f32 %v1739, %v2262
    %v2264 = vand.u32 %v2263, 4294901760
    %v2265 = vsub.f32 %v2263, %v2264
    %v2266 = vand.u32 %v2265, 4294901760
    %2267 = vmatpush1.msra.mxu0 %v2266
    %v2268 = vand.u32 %v1742, 4294901760
    %v2269 = vsub.f32 %v1742, %v2268
    %v2270 = vand.u32 %v2269, 4294901760
    %v2271 = vsub.f32 %v2269, %v2270
    %v2272 = vand.u32 %v2271, 4294901760
    %2273 = vmatprep.subr.mxu0 %v2272
    %v2274 = vand.u32 %v1741, 4294901760
    %v2275 = vsub.f32 %v1741, %v2274
    %v2276 = vand.u32 %v2275, 4294901760
    %v2277 = vsub.f32 %v2275, %v2276
    %v2278 = vand.u32 %v2277, 4294901760
    %2279 = vmatpush1.msra.mxu0 %v2278
    %v2280 = vand.u32 %v1744, 4294901760
    %v2281 = vsub.f32 %v1744, %v2280
    %v2282 = vand.u32 %v2281, 4294901760
    %v2283 = vsub.f32 %v2281, %v2282
    %v2284 = vand.u32 %v2283, 4294901760
    %2285 = vmatprep.subr.mxu0 %v2284
    %v2286 = vand.u32 %v1743, 4294901760
    %v2287 = vsub.f32 %v1743, %v2286
    %v2288 = vand.u32 %v2287, 4294901760
    %v2289 = vsub.f32 %v2287, %v2288
    %v2290 = vand.u32 %v2289, 4294901760
    %2291 = vmatpush1.msra.mxu0 %v2290
    %v2292 = vand.u32 %v1746, 4294901760
    %v2293 = vsub.f32 %v1746, %v2292
    %v2294 = vand.u32 %v2293, 4294901760
    %v2295 = vsub.f32 %v2293, %v2294
    %v2296 = vand.u32 %v2295, 4294901760
    %2297 = vmatprep.subr.mxu0 %v2296
    %v2298 = vand.u32 %v1745, 4294901760
    %v2299 = vsub.f32 %v1745, %v2298
    %v2300 = vand.u32 %v2299, 4294901760
    %v2301 = vsub.f32 %v2299, %v2300
    %v2302 = vand.u32 %v2301, 4294901760
    %2303 = vmatpush1.msra.mxu0 %v2302
    %v2304 = vand.u32 %v1748, 4294901760
    %v2305 = vsub.f32 %v1748, %v2304
    %v2306 = vand.u32 %v2305, 4294901760
    %v2307 = vsub.f32 %v2305, %v2306
    %v2308 = vand.u32 %v2307, 4294901760
    %2309 = vmatprep.subr.mxu0 %v2308
    %v2310 = vand.u32 %v1747, 4294901760
    %v2311 = vsub.f32 %v1747, %v2310
    %v2312 = vand.u32 %v2311, 4294901760
    %v2313 = vsub.f32 %v2311, %v2312
    %v2314 = vand.u32 %v2313, 4294901760
    %2315 = vmatpush1.msra.mxu0 %v2314
    %v2316 = vand.u32 %v1750, 4294901760
    %v2317 = vsub.f32 %v1750, %v2316
    %v2318 = vand.u32 %v2317, 4294901760
    %v2319 = vsub.f32 %v2317, %v2318
    %v2320 = vand.u32 %v2319, 4294901760
    %2321 = vmatprep.subr.mxu0 %v2320
    %v2322 = vand.u32 %v1749, 4294901760
    %v2323 = vsub.f32 %v1749, %v2322
    %v2324 = vand.u32 %v2323, 4294901760
    %v2325 = vsub.f32 %v2323, %v2324
    %v2326 = vand.u32 %v2325, 4294901760
    %2327 = vmatpush1.msra.mxu0 %v2326
    %v2328 = vand.u32 %v1680, 4294901760
    %2329 = vmatprep.mubr.f32.mxu0 %v2328
    %v2330 = vand.u32 %v1679, 4294901760
    %2331 = vmatmul.mubr.f32.gmra.mrb[0].mxu0 %v2330
    %v2332 = vpop.f32.mrb[0].mxu0
    %v2333 = vadd.f32 %v1892, %v2332
    %v2334 = vpop.f32.mrb[0].mxu0
    %v2335 = vadd.f32 %v1894, %v2334
    %v2336 = vand.u32 %v1682, 4294901760
    %2337 = vmatprep.mubr.f32.mxu0 %v2336
    %v2338 = vand.u32 %v1681, 4294901760
    %2339 = vmatmul.mubr.f32.gmra.mrb[0].mxu0 %v2338
    %v2340 = vpop.f32.mrb[0].mxu0
    %v2341 = vadd.f32 %v1908, %v2340
    %v2342 = vpop.f32.mrb[0].mxu0
    %v2343 = vadd.f32 %v1910, %v2342
    %v2344 = vand.u32 %v1684, 4294901760
    %2345 = vmatprep.mubr.f32.mxu0 %v2344
    %v2346 = vand.u32 %v1683, 4294901760
    %2347 = vmatmul.mubr.f32.gmra.mrb[0].mxu0 %v2346
    %v2348 = vpop.f32.mrb[0].mxu0
    %v2349 = vadd.f32 %v1924, %v2348
    %v2350 = vpop.f32.mrb[0].mxu0
    %v2351 = vadd.f32 %v1926, %v2350
    %v2352 = vand.u32 %v1686, 4294901760
    %2353 = vmatprep.mubr.f32.mxu0 %v2352
    %v2354 = vand.u32 %v1685, 4294901760
    %2355 = vmatmul.mubr.f32.gmra.mrb[0].mxu0 %v2354
    %v2356 = vpop.f32.mrb[0].mxu0
    %v2357 = vadd.f32 %v1940, %v2356
    %v2358 = vpop.f32.mrb[0].mxu0
    %v2359 = vadd.f32 %v1942, %v2358
    %2360 = vdwg.mxu0
    %v2361 = vand.u32 %v1688, 4294901760
    %v2362 = vsub.f32 %v1688, %v2361
    %2363 = vmatprep.subr.mxu0 %v2362
    %v2364 = vand.u32 %v1687, 4294901760
    %v2365 = vsub.f32 %v1687, %v2364
    %2366 = vmatpush1.msra.mxu0 %v2365
    %v2367 = vand.u32 %v1690, 4294901760
    %v2368 = vsub.f32 %v1690, %v2367
    %2369 = vmatprep.subr.mxu0 %v2368
    %v2370 = vand.u32 %v1689, 4294901760
    %v2371 = vsub.f32 %v1689, %v2370
    %2372 = vmatpush1.msra.mxu0 %v2371
    %v2373 = vand.u32 %v1692, 4294901760
    %v2374 = vsub.f32 %v1692, %v2373
    %2375 = vmatprep.subr.mxu0 %v2374
    %v2376 = vand.u32 %v1691, 4294901760
    %v2377 = vsub.f32 %v1691, %v2376
    %2378 = vmatpush1.msra.mxu0 %v2377
    %v2379 = vand.u32 %v1694, 4294901760
    %v2380 = vsub.f32 %v1694, %v2379
    %2381 = vmatprep.subr.mxu0 %v2380
    %v2382 = vand.u32 %v1693, 4294901760
    %v2383 = vsub.f32 %v1693, %v2382
    %2384 = vmatpush1.msra.mxu0 %v2383
    %v2385 = vand.u32 %v1696, 4294901760
    %v2386 = vsub.f32 %v1696, %v2385
    %2387 = vmatprep.subr.mxu0 %v2386
    %v2388 = vand.u32 %v1695, 4294901760
    %v2389 = vsub.f32 %v1695, %v2388
    %2390 = vmatpush1.msra.mxu0 %v2389
    %v2391 = vand.u32 %v1698, 4294901760
    %v2392 = vsub.f32 %v1698, %v2391
    %2393 = vmatprep.subr.mxu0 %v2392
    %v2394 = vand.u32 %v1697, 4294901760
    %v2395 = vsub.f32 %v1697, %v2394
    %2396 = vmatpush1.msra.mxu0 %v2395
    %v2397 = vand.u32 %v1700, 4294901760
    %v2398 = vsub.f32 %v1700, %v2397
    %2399 = vmatprep.subr.mxu0 %v2398
    %v2400 = vand.u32 %v1699, 4294901760
    %v2401 = vsub.f32 %v1699, %v2400
    %2402 = vmatpush1.msra.mxu0 %v2401
    %v2403 = vand.u32 %v1702, 4294901760
    %v2404 = vsub.f32 %v1702, %v2403
    %2405 = vmatprep.subr.mxu0 %v2404
    %v2406 = vand.u32 %v1701, 4294901760
    %v2407 = vsub.f32 %v1701, %v2406
    %2408 = vmatpush1.msra.mxu0 %v2407
    %v2409 = vand.u32 %v1704, 4294901760
    %v2410 = vsub.f32 %v1704, %v2409
    %2411 = vmatprep.subr.mxu0 %v2410
    %v2412 = vand.u32 %v1703, 4294901760
    %v2413 = vsub.f32 %v1703, %v2412
    %2414 = vmatpush1.msra.mxu0 %v2413
    %v2415 = vand.u32 %v1706, 4294901760
    %v2416 = vsub.f32 %v1706, %v2415
    %2417 = vmatprep.subr.mxu0 %v2416
    %v2418 = vand.u32 %v1705, 4294901760
    %v2419 = vsub.f32 %v1705, %v2418
    %2420 = vmatpush1.msra.mxu0 %v2419
    %v2421 = vand.u32 %v1708, 4294901760
    %v2422 = vsub.f32 %v1708, %v2421
    %2423 = vmatprep.subr.mxu0 %v2422
    %v2424 = vand.u32 %v1707, 4294901760
    %v2425 = vsub.f32 %v1707, %v2424
    %2426 = vmatpush1.msra.mxu0 %v2425
    %v2427 = vand.u32 %v1710, 4294901760
    %v2428 = vsub.f32 %v1710, %v2427
    %2429 = vmatprep.subr.mxu0 %v2428
    %v2430 = vand.u32 %v1709, 4294901760
    %v2431 = vsub.f32 %v1709, %v2430
    %2432 = vmatpush1.msra.mxu0 %v2431
    %v2433 = vand.u32 %v1712, 4294901760
    %v2434 = vsub.f32 %v1712, %v2433
    %2435 = vmatprep.subr.mxu0 %v2434
    %v2436 = vand.u32 %v1711, 4294901760
    %v2437 = vsub.f32 %v1711, %v2436
    %2438 = vmatpush1.msra.mxu0 %v2437
    %v2439 = vand.u32 %v1714, 4294901760
    %v2440 = vsub.f32 %v1714, %v2439
    %2441 = vmatprep.subr.mxu0 %v2440
    %v2442 = vand.u32 %v1713, 4294901760
    %v2443 = vsub.f32 %v1713, %v2442
    %2444 = vmatpush1.msra.mxu0 %v2443
    %v2445 = vand.u32 %v1716, 4294901760
    %v2446 = vsub.f32 %v1716, %v2445
    %2447 = vmatprep.subr.mxu0 %v2446
    %v2448 = vand.u32 %v1715, 4294901760
    %v2449 = vsub.f32 %v1715, %v2448
    %2450 = vmatpush1.msra.mxu0 %v2449
    %v2451 = vand.u32 %v1718, 4294901760
    %v2452 = vsub.f32 %v1718, %v2451
    %2453 = vmatprep.subr.mxu0 %v2452
    %v2454 = vand.u32 %v1717, 4294901760
    %v2455 = vsub.f32 %v1717, %v2454
    %2456 = vmatpush1.msra.mxu0 %v2455
    %v2457 = vand.u32 %v1720, 4294901760
    %v2458 = vsub.f32 %v1720, %v2457
    %2459 = vmatprep.subr.mxu0 %v2458
    %v2460 = vand.u32 %v1719, 4294901760
    %v2461 = vsub.f32 %v1719, %v2460
    %2462 = vmatpush1.msra.mxu0 %v2461
    %v2463 = vand.u32 %v1722, 4294901760
    %v2464 = vsub.f32 %v1722, %v2463
    %2465 = vmatprep.subr.mxu0 %v2464
    %v2466 = vand.u32 %v1721, 4294901760
    %v2467 = vsub.f32 %v1721, %v2466
    %2468 = vmatpush1.msra.mxu0 %v2467
    %v2469 = vand.u32 %v1724, 4294901760
    %v2470 = vsub.f32 %v1724, %v2469
    %2471 = vmatprep.subr.mxu0 %v2470
    %v2472 = vand.u32 %v1723, 4294901760
    %v2473 = vsub.f32 %v1723, %v2472
    %2474 = vmatpush1.msra.mxu0 %v2473
    %v2475 = vand.u32 %v1726, 4294901760
    %v2476 = vsub.f32 %v1726, %v2475
    %2477 = vmatprep.subr.mxu0 %v2476
    %v2478 = vand.u32 %v1725, 4294901760
    %v2479 = vsub.f32 %v1725, %v2478
    %2480 = vmatpush1.msra.mxu0 %v2479
    %v2481 = vand.u32 %v1728, 4294901760
    %v2482 = vsub.f32 %v1728, %v2481
    %2483 = vmatprep.subr.mxu0 %v2482
    %v2484 = vand.u32 %v1727, 4294901760
    %v2485 = vsub.f32 %v1727, %v2484
    %2486 = vmatpush1.msra.mxu0 %v2485
    %v2487 = vand.u32 %v1730, 4294901760
    %v2488 = vsub.f32 %v1730, %v2487
    %2489 = vmatprep.subr.mxu0 %v2488
    %v2490 = vand.u32 %v1729, 4294901760
    %v2491 = vsub.f32 %v1729, %v2490
    %2492 = vmatpush1.msra.mxu0 %v2491
    %v2493 = vand.u32 %v1732, 4294901760
    %v2494 = vsub.f32 %v1732, %v2493
    %2495 = vmatprep.subr.mxu0 %v2494
    %v2496 = vand.u32 %v1731, 4294901760
    %v2497 = vsub.f32 %v1731, %v2496
    %2498 = vmatpush1.msra.mxu0 %v2497
    %v2499 = vand.u32 %v1734, 4294901760
    %v2500 = vsub.f32 %v1734, %v2499
    %2501 = vmatprep.subr.mxu0 %v2500
    %v2502 = vand.u32 %v1733, 4294901760
    %v2503 = vsub.f32 %v1733, %v2502
    %2504 = vmatpush1.msra.mxu0 %v2503
    %v2505 = vand.u32 %v1736, 4294901760
    %v2506 = vsub.f32 %v1736, %v2505
    %2507 = vmatprep.subr.mxu0 %v2506
    %v2508 = vand.u32 %v1735, 4294901760
    %v2509 = vsub.f32 %v1735, %v2508
    %2510 = vmatpush1.msra.mxu0 %v2509
    %v2511 = vand.u32 %v1738, 4294901760
    %v2512 = vsub.f32 %v1738, %v2511
    %2513 = vmatprep.subr.mxu0 %v2512
    %v2514 = vand.u32 %v1737, 4294901760
    %v2515 = vsub.f32 %v1737, %v2514
    %2516 = vmatpush1.msra.mxu0 %v2515
    %v2517 = vand.u32 %v1740, 4294901760
    %v2518 = vsub.f32 %v1740, %v2517
    %2519 = vmatprep.subr.mxu0 %v2518
    %v2520 = vand.u32 %v1739, 4294901760
    %v2521 = vsub.f32 %v1739, %v2520
    %2522 = vmatpush1.msra.mxu0 %v2521
    %v2523 = vand.u32 %v1742, 4294901760
    %v2524 = vsub.f32 %v1742, %v2523
    %2525 = vmatprep.subr.mxu0 %v2524
    %v2526 = vand.u32 %v1741, 4294901760
    %v2527 = vsub.f32 %v1741, %v2526
    %2528 = vmatpush1.msra.mxu0 %v2527
    %v2529 = vand.u32 %v1744, 4294901760
    %v2530 = vsub.f32 %v1744, %v2529
    %2531 = vmatprep.subr.mxu0 %v2530
    %v2532 = vand.u32 %v1743, 4294901760
    %v2533 = vsub.f32 %v1743, %v2532
    %2534 = vmatpush1.msra.mxu0 %v2533
    %v2535 = vand.u32 %v1746, 4294901760
    %v2536 = vsub.f32 %v1746, %v2535
    %2537 = vmatprep.subr.mxu0 %v2536
    %v2538 = vand.u32 %v1745, 4294901760
    %v2539 = vsub.f32 %v1745, %v2538
    %2540 = vmatpush1.msra.mxu0 %v2539
    %v2541 = vand.u32 %v1748, 4294901760
    %v2542 = vsub.f32 %v1748, %v2541
    %2543 = vmatprep.subr.mxu0 %v2542
    %v2544 = vand.u32 %v1747, 4294901760
    %v2545 = vsub.f32 %v1747, %v2544
    %2546 = vmatpush1.msra.mxu0 %v2545
    %v2547 = vand.u32 %v1750, 4294901760
    %v2548 = vsub.f32 %v1750, %v2547
    %2549 = vmatprep.subr.mxu0 %v2548
    %v2550 = vand.u32 %v1749, 4294901760
    %v2551 = vsub.f32 %v1749, %v2550
    %2552 = vmatpush1.msra.mxu0 %v2551
    %v2553 = vand.u32 %v1680, 4294901760
    %v2554 = vsub.f32 %v1680, %v2553
    %2555 = vmatprep.mubr.f32.mxu0 %v2554
    %v2556 = vand.u32 %v1679, 4294901760
    %v2557 = vsub.f32 %v1679, %v2556
    %2558 = vmatmul.mubr.f32.gmra.mrb[0].mxu0 %v2557
    %v2559 = vpop.f32.mrb[0].mxu0
    %v2560 = vadd.f32 %v2333, %v2559
    %v2561 = vpop.f32.mrb[0].mxu0
    %v2562 = vadd.f32 %v2335, %v2561
    %v2563 = vand.u32 %v1682, 4294901760
    %v2564 = vsub.f32 %v1682, %v2563
    %2565 = vmatprep.mubr.f32.mxu0 %v2564
    %v2566 = vand.u32 %v1681, 4294901760
    %v2567 = vsub.f32 %v1681, %v2566
    %2568 = vmatmul.mubr.f32.gmra.mrb[0].mxu0 %v2567
    %v2569 = vpop.f32.mrb[0].mxu0
    %v2570 = vadd.f32 %v2341, %v2569
    %v2571 = vpop.f32.mrb[0].mxu0
    %v2572 = vadd.f32 %v2343, %v2571
    %v2573 = vand.u32 %v1684, 4294901760
    %v2574 = vsub.f32 %v1684, %v2573
    %2575 = vmatprep.mubr.f32.mxu0 %v2574
    %v2576 = vand.u32 %v1683, 4294901760
    %v2577 = vsub.f32 %v1683, %v2576
    %2578 = vmatmul.mubr.f32.gmra.mrb[0].mxu0 %v2577
    %v2579 = vpop.f32.mrb[0].mxu0
    %v2580 = vadd.f32 %v2349, %v2579
    %v2581 = vpop.f32.mrb[0].mxu0
    %v2582 = vadd.f32 %v2351, %v2581
    %v2583 = vand.u32 %v1686, 4294901760
    %v2584 = vsub.f32 %v1686, %v2583
    %2585 = vmatprep.mubr.f32.mxu0 %v2584
    %v2586 = vand.u32 %v1685, 4294901760
    %v2587 = vsub.f32 %v1685, %v2586
    %2588 = vmatmul.mubr.f32.gmra.mrb[0].mxu0 %v2587
    %v2589 = vpop.f32.mrb[0].mxu0
    %v2590 = vadd.f32 %v2357, %v2589
    %v2591 = vpop.f32.mrb[0].mxu0
    %v2592 = vadd.f32 %v2359, %v2591
    %2593 = vdwg.mxu0
    %v2594 = vand.u32 %v1688, 4294901760
    %2595 = vmatprep.subr.mxu0 %v2594
    %v2596 = vand.u32 %v1687, 4294901760
    %2597 = vmatpush1.msra.mxu0 %v2596
    %v2598 = vand.u32 %v1690, 4294901760
    %2599 = vmatprep.subr.mxu0 %v2598
    %v2600 = vand.u32 %v1689, 4294901760
    %2601 = vmatpush1.msra.mxu0 %v2600
    %v2602 = vand.u32 %v1692, 4294901760
    %2603 = vmatprep.subr.mxu0 %v2602
    %v2604 = vand.u32 %v1691, 4294901760
    %2605 = vmatpush1.msra.mxu0 %v2604
    %v2606 = vand.u32 %v1694, 4294901760
    %2607 = vmatprep.subr.mxu0 %v2606
    %v2608 = vand.u32 %v1693, 4294901760
    %2609 = vmatpush1.msra.mxu0 %v2608
    %v2610 = vand.u32 %v1696, 4294901760
    %2611 = vmatprep.subr.mxu0 %v2610
    %v2612 = vand.u32 %v1695, 4294901760
    %2613 = vmatpush1.msra.mxu0 %v2612
    %v2614 = vand.u32 %v1698, 4294901760
    %2615 = vmatprep.subr.mxu0 %v2614
    %v2616 = vand.u32 %v1697, 4294901760
    %2617 = vmatpush1.msra.mxu0 %v2616
    %v2618 = vand.u32 %v1700, 4294901760
    %2619 = vmatprep.subr.mxu0 %v2618
    %v2620 = vand.u32 %v1699, 4294901760
    %2621 = vmatpush1.msra.mxu0 %v2620
    %v2622 = vand.u32 %v1702, 4294901760
    %2623 = vmatprep.subr.mxu0 %v2622
    %v2624 = vand.u32 %v1701, 4294901760
    %2625 = vmatpush1.msra.mxu0 %v2624
    %v2626 = vand.u32 %v1704, 4294901760
    %2627 = vmatprep.subr.mxu0 %v2626
    %v2628 = vand.u32 %v1703, 4294901760
    %2629 = vmatpush1.msra.mxu0 %v2628
    %v2630 = vand.u32 %v1706, 4294901760
    %2631 = vmatprep.subr.mxu0 %v2630
    %v2632 = vand.u32 %v1705, 4294901760
    %2633 = vmatpush1.msra.mxu0 %v2632
    %v2634 = vand.u32 %v1708, 4294901760
    %2635 = vmatprep.subr.mxu0 %v2634
    %v2636 = vand.u32 %v1707, 4294901760
    %2637 = vmatpush1.msra.mxu0 %v2636
    %v2638 = vand.u32 %v1710, 4294901760
    %2639 = vmatprep.subr.mxu0 %v2638
    %v2640 = vand.u32 %v1709, 4294901760
    %2641 = vmatpush1.msra.mxu0 %v2640
    %v2642 = vand.u32 %v1712, 4294901760
    %2643 = vmatprep.subr.mxu0 %v2642
    %v2644 = vand.u32 %v1711, 4294901760
    %2645 = vmatpush1.msra.mxu0 %v2644
    %v2646 = vand.u32 %v1714, 4294901760
    %2647 = vmatprep.subr.mxu0 %v2646
    %v2648 = vand.u32 %v1713, 4294901760
    %2649 = vmatpush1.msra.mxu0 %v2648
    %v2650 = vand.u32 %v1716, 4294901760
    %2651 = vmatprep.subr.mxu0 %v2650
    %v2652 = vand.u32 %v1715, 4294901760
    %2653 = vmatpush1.msra.mxu0 %v2652
    %v2654 = vand.u32 %v1718, 4294901760
    %2655 = vmatprep.subr.mxu0 %v2654
    %v2656 = vand.u32 %v1717, 4294901760
    %2657 = vmatpush1.msra.mxu0 %v2656
    %v2658 = vand.u32 %v1720, 4294901760
    %2659 = vmatprep.subr.mxu0 %v2658
    %v2660 = vand.u32 %v1719, 4294901760
    %2661 = vmatpush1.msra.mxu0 %v2660
    %v2662 = vand.u32 %v1722, 4294901760
    %2663 = vmatprep.subr.mxu0 %v2662
    %v2664 = vand.u32 %v1721, 4294901760
    %2665 = vmatpush1.msra.mxu0 %v2664
    %v2666 = vand.u32 %v1724, 4294901760
    %2667 = vmatprep.subr.mxu0 %v2666
    %v2668 = vand.u32 %v1723, 4294901760
    %2669 = vmatpush1.msra.mxu0 %v2668
    %v2670 = vand.u32 %v1726, 4294901760
    %2671 = vmatprep.subr.mxu0 %v2670
    %v2672 = vand.u32 %v1725, 4294901760
    %2673 = vmatpush1.msra.mxu0 %v2672
    %v2674 = vand.u32 %v1728, 4294901760
    %2675 = vmatprep.subr.mxu0 %v2674
    %v2676 = vand.u32 %v1727, 4294901760
    %2677 = vmatpush1.msra.mxu0 %v2676
    %v2678 = vand.u32 %v1730, 4294901760
    %2679 = vmatprep.subr.mxu0 %v2678
    %v2680 = vand.u32 %v1729, 4294901760
    %2681 = vmatpush1.msra.mxu0 %v2680
    %v2682 = vand.u32 %v1732, 4294901760
    %2683 = vmatprep.subr.mxu0 %v2682
    %v2684 = vand.u32 %v1731, 4294901760
    %2685 = vmatpush1.msra.mxu0 %v2684
    %v2686 = vand.u32 %v1734, 4294901760
    %2687 = vmatprep.subr.mxu0 %v2686
    %v2688 = vand.u32 %v1733, 4294901760
    %2689 = vmatpush1.msra.mxu0 %v2688
    %v2690 = vand.u32 %v1736, 4294901760
    %2691 = vmatprep.subr.mxu0 %v2690
    %v2692 = vand.u32 %v1735, 4294901760
    %2693 = vmatpush1.msra.mxu0 %v2692
    %v2694 = vand.u32 %v1738, 4294901760
    %2695 = vmatprep.subr.mxu0 %v2694
    %v2696 = vand.u32 %v1737, 4294901760
    %2697 = vmatpush1.msra.mxu0 %v2696
    %v2698 = vand.u32 %v1740, 4294901760
    %2699 = vmatprep.subr.mxu0 %v2698
    %v2700 = vand.u32 %v1739, 4294901760
    %2701 = vmatpush1.msra.mxu0 %v2700
    %v2702 = vand.u32 %v1742, 4294901760
    %2703 = vmatprep.subr.mxu0 %v2702
    %v2704 = vand.u32 %v1741, 4294901760
    %2705 = vmatpush1.msra.mxu0 %v2704
    %v2706 = vand.u32 %v1744, 4294901760
    %2707 = vmatprep.subr.mxu0 %v2706
    %v2708 = vand.u32 %v1743, 4294901760
    %2709 = vmatpush1.msra.mxu0 %v2708
    %v2710 = vand.u32 %v1746, 4294901760
    %2711 = vmatprep.subr.mxu0 %v2710
    %v2712 = vand.u32 %v1745, 4294901760
    %2713 = vmatpush1.msra.mxu0 %v2712
    %v2714 = vand.u32 %v1748, 4294901760
    %2715 = vmatprep.subr.mxu0 %v2714
    %v2716 = vand.u32 %v1747, 4294901760
    %2717 = vmatpush1.msra.mxu0 %v2716
    %v2718 = vand.u32 %v1750, 4294901760
    %2719 = vmatprep.subr.mxu0 %v2718
    %v2720 = vand.u32 %v1749, 4294901760
    %2721 = vmatpush1.msra.mxu0 %v2720
    %v2722 = vand.u32 %v1680, 4294901760
    %v2723 = vsub.f32 %v1680, %v2722
    %v2724 = vand.u32 %v2723, 4294901760
    %2725 = vmatprep.mubr.f32.mxu0 %v2724
    %v2726 = vand.u32 %v1679, 4294901760
    %v2727 = vsub.f32 %v1679, %v2726
    %v2728 = vand.u32 %v2727, 4294901760
    %2729 = vmatmul.mubr.f32.gmra.mrb[0].mxu0 %v2728
    %v2730 = vpop.f32.mrb[0].mxu0
    %v2731 = vadd.f32 %v2560, %v2730
    %v2732 = vpop.f32.mrb[0].mxu0
    %v2733 = vadd.f32 %v2562, %v2732
    %v2734 = vand.u32 %v1682, 4294901760
    %v2735 = vsub.f32 %v1682, %v2734
    %v2736 = vand.u32 %v2735, 4294901760
    %2737 = vmatprep.mubr.f32.mxu0 %v2736
    %v2738 = vand.u32 %v1681, 4294901760
    %v2739 = vsub.f32 %v1681, %v2738
    %v2740 = vand.u32 %v2739, 4294901760
    %2741 = vmatmul.mubr.f32.gmra.mrb[0].mxu0 %v2740
    %v2742 = vpop.f32.mrb[0].mxu0
    %v2743 = vadd.f32 %v2570, %v2742
    %v2744 = vpop.f32.mrb[0].mxu0
    %v2745 = vadd.f32 %v2572, %v2744
    %v2746 = vand.u32 %v1684, 4294901760
    %v2747 = vsub.f32 %v1684, %v2746
    %v2748 = vand.u32 %v2747, 4294901760
    %2749 = vmatprep.mubr.f32.mxu0 %v2748
    %v2750 = vand.u32 %v1683, 4294901760
    %v2751 = vsub.f32 %v1683, %v2750
    %v2752 = vand.u32 %v2751, 4294901760
    %2753 = vmatmul.mubr.f32.gmra.mrb[0].mxu0 %v2752
    %v2754 = vpop.f32.mrb[0].mxu0
    %v2755 = vadd.f32 %v2580, %v2754
    %v2756 = vpop.f32.mrb[0].mxu0
    %v2757 = vadd.f32 %v2582, %v2756
    %v2758 = vand.u32 %v1686, 4294901760
    %v2759 = vsub.f32 %v1686, %v2758
    %v2760 = vand.u32 %v2759, 4294901760
    %2761 = vmatprep.mubr.f32.mxu0 %v2760
    %v2762 = vand.u32 %v1685, 4294901760
    %v2763 = vsub.f32 %v1685, %v2762
    %v2764 = vand.u32 %v2763, 4294901760
    %2765 = vmatmul.mubr.f32.gmra.mrb[0].mxu0 %v2764
    %v2766 = vpop.f32.mrb[0].mxu0
    %v2767 = vadd.f32 %v2590, %v2766
    %v2768 = vpop.f32.mrb[0].mxu0
    %v2769 = vadd.f32 %v2592, %v2768
    %2770 = vdwg.mxu0
    %v2771 = vand.u32 %v1688, 4294901760
    %v2772 = vsub.f32 %v1688, %v2771
    %v2773 = vand.u32 %v2772, 4294901760
    %2774 = vmatprep.subr.mxu0 %v2773
    %v2775 = vand.u32 %v1687, 4294901760
    %v2776 = vsub.f32 %v1687, %v2775
    %v2777 = vand.u32 %v2776, 4294901760
    %2778 = vmatpush1.msra.mxu0 %v2777
    %v2779 = vand.u32 %v1690, 4294901760
    %v2780 = vsub.f32 %v1690, %v2779
    %v2781 = vand.u32 %v2780, 4294901760
    %2782 = vmatprep.subr.mxu0 %v2781
    %v2783 = vand.u32 %v1689, 4294901760
    %v2784 = vsub.f32 %v1689, %v2783
    %v2785 = vand.u32 %v2784, 4294901760
    %2786 = vmatpush1.msra.mxu0 %v2785
    %v2787 = vand.u32 %v1692, 4294901760
    %v2788 = vsub.f32 %v1692, %v2787
    %v2789 = vand.u32 %v2788, 4294901760
    %2790 = vmatprep.subr.mxu0 %v2789
    %v2791 = vand.u32 %v1691, 4294901760
    %v2792 = vsub.f32 %v1691, %v2791
    %v2793 = vand.u32 %v2792, 4294901760
    %2794 = vmatpush1.msra.mxu0 %v2793
    %v2795 = vand.u32 %v1694, 4294901760
    %v2796 = vsub.f32 %v1694, %v2795
    %v2797 = vand.u32 %v2796, 4294901760
    %2798 = vmatprep.subr.mxu0 %v2797
    %v2799 = vand.u32 %v1693, 4294901760
    %v2800 = vsub.f32 %v1693, %v2799
    %v2801 = vand.u32 %v2800, 4294901760
    %2802 = vmatpush1.msra.mxu0 %v2801
    %v2803 = vand.u32 %v1696, 4294901760
    %v2804 = vsub.f32 %v1696, %v2803
    %v2805 = vand.u32 %v2804, 4294901760
    %2806 = vmatprep.subr.mxu0 %v2805
    %v2807 = vand.u32 %v1695, 4294901760
    %v2808 = vsub.f32 %v1695, %v2807
    %v2809 = vand.u32 %v2808, 4294901760
    %2810 = vmatpush1.msra.mxu0 %v2809
    %v2811 = vand.u32 %v1698, 4294901760
    %v2812 = vsub.f32 %v1698, %v2811
    %v2813 = vand.u32 %v2812, 4294901760
    %2814 = vmatprep.subr.mxu0 %v2813
    %v2815 = vand.u32 %v1697, 4294901760
    %v2816 = vsub.f32 %v1697, %v2815
    %v2817 = vand.u32 %v2816, 4294901760
    %2818 = vmatpush1.msra.mxu0 %v2817
    %v2819 = vand.u32 %v1700, 4294901760
    %v2820 = vsub.f32 %v1700, %v2819
    %v2821 = vand.u32 %v2820, 4294901760
    %2822 = vmatprep.subr.mxu0 %v2821
    %v2823 = vand.u32 %v1699, 4294901760
    %v2824 = vsub.f32 %v1699, %v2823
    %v2825 = vand.u32 %v2824, 4294901760
    %2826 = vmatpush1.msra.mxu0 %v2825
    %v2827 = vand.u32 %v1702, 4294901760
    %v2828 = vsub.f32 %v1702, %v2827
    %v2829 = vand.u32 %v2828, 4294901760
    %2830 = vmatprep.subr.mxu0 %v2829
    %v2831 = vand.u32 %v1701, 4294901760
    %v2832 = vsub.f32 %v1701, %v2831
    %v2833 = vand.u32 %v2832, 4294901760
    %2834 = vmatpush1.msra.mxu0 %v2833
    %v2835 = vand.u32 %v1704, 4294901760
    %v2836 = vsub.f32 %v1704, %v2835
    %v2837 = vand.u32 %v2836, 4294901760
    %2838 = vmatprep.subr.mxu0 %v2837
    %v2839 = vand.u32 %v1703, 4294901760
    %v2840 = vsub.f32 %v1703, %v2839
    %v2841 = vand.u32 %v2840, 4294901760
    %2842 = vmatpush1.msra.mxu0 %v2841
    %v2843 = vand.u32 %v1706, 4294901760
    %v2844 = vsub.f32 %v1706, %v2843
    %v2845 = vand.u32 %v2844, 4294901760
    %2846 = vmatprep.subr.mxu0 %v2845
    %v2847 = vand.u32 %v1705, 4294901760
    %v2848 = vsub.f32 %v1705, %v2847
    %v2849 = vand.u32 %v2848, 4294901760
    %2850 = vmatpush1.msra.mxu0 %v2849
    %v2851 = vand.u32 %v1708, 4294901760
    %v2852 = vsub.f32 %v1708, %v2851
    %v2853 = vand.u32 %v2852, 4294901760
    %2854 = vmatprep.subr.mxu0 %v2853
    %v2855 = vand.u32 %v1707, 4294901760
    %v2856 = vsub.f32 %v1707, %v2855
    %v2857 = vand.u32 %v2856, 4294901760
    %2858 = vmatpush1.msra.mxu0 %v2857
    %v2859 = vand.u32 %v1710, 4294901760
    %v2860 = vsub.f32 %v1710, %v2859
    %v2861 = vand.u32 %v2860, 4294901760
    %2862 = vmatprep.subr.mxu0 %v2861
    %v2863 = vand.u32 %v1709, 4294901760
    %v2864 = vsub.f32 %v1709, %v2863
    %v2865 = vand.u32 %v2864, 4294901760
    %2866 = vmatpush1.msra.mxu0 %v2865
    %v2867 = vand.u32 %v1712, 4294901760
    %v2868 = vsub.f32 %v1712, %v2867
    %v2869 = vand.u32 %v2868, 4294901760
    %2870 = vmatprep.subr.mxu0 %v2869
    %v2871 = vand.u32 %v1711, 4294901760
    %v2872 = vsub.f32 %v1711, %v2871
    %v2873 = vand.u32 %v2872, 4294901760
    %2874 = vmatpush1.msra.mxu0 %v2873
    %v2875 = vand.u32 %v1714, 4294901760
    %v2876 = vsub.f32 %v1714, %v2875
    %v2877 = vand.u32 %v2876, 4294901760
    %2878 = vmatprep.subr.mxu0 %v2877
    %v2879 = vand.u32 %v1713, 4294901760
    %v2880 = vsub.f32 %v1713, %v2879
    %v2881 = vand.u32 %v2880, 4294901760
    %2882 = vmatpush1.msra.mxu0 %v2881
    %v2883 = vand.u32 %v1716, 4294901760
    %v2884 = vsub.f32 %v1716, %v2883
    %v2885 = vand.u32 %v2884, 4294901760
    %2886 = vmatprep.subr.mxu0 %v2885
    %v2887 = vand.u32 %v1715, 4294901760
    %v2888 = vsub.f32 %v1715, %v2887
    %v2889 = vand.u32 %v2888, 4294901760
    %2890 = vmatpush1.msra.mxu0 %v2889
    %v2891 = vand.u32 %v1718, 4294901760
    %v2892 = vsub.f32 %v1718, %v2891
    %v2893 = vand.u32 %v2892, 4294901760
    %2894 = vmatprep.subr.mxu0 %v2893
    %v2895 = vand.u32 %v1717, 4294901760
    %v2896 = vsub.f32 %v1717, %v2895
    %v2897 = vand.u32 %v2896, 4294901760
    %2898 = vmatpush1.msra.mxu0 %v2897
    %v2899 = vand.u32 %v1720, 4294901760
    %v2900 = vsub.f32 %v1720, %v2899
    %v2901 = vand.u32 %v2900, 4294901760
    %2902 = vmatprep.subr.mxu0 %v2901
    %v2903 = vand.u32 %v1719, 4294901760
    %v2904 = vsub.f32 %v1719, %v2903
    %v2905 = vand.u32 %v2904, 4294901760
    %2906 = vmatpush1.msra.mxu0 %v2905
    %v2907 = vand.u32 %v1722, 4294901760
    %v2908 = vsub.f32 %v1722, %v2907
    %v2909 = vand.u32 %v2908, 4294901760
    %2910 = vmatprep.subr.mxu0 %v2909
    %v2911 = vand.u32 %v1721, 4294901760
    %v2912 = vsub.f32 %v1721, %v2911
    %v2913 = vand.u32 %v2912, 4294901760
    %2914 = vmatpush1.msra.mxu0 %v2913
    %v2915 = vand.u32 %v1724, 4294901760
    %v2916 = vsub.f32 %v1724, %v2915
    %v2917 = vand.u32 %v2916, 4294901760
    %2918 = vmatprep.subr.mxu0 %v2917
    %v2919 = vand.u32 %v1723, 4294901760
    %v2920 = vsub.f32 %v1723, %v2919
    %v2921 = vand.u32 %v2920, 4294901760
    %2922 = vmatpush1.msra.mxu0 %v2921
    %v2923 = vand.u32 %v1726, 4294901760
    %v2924 = vsub.f32 %v1726, %v2923
    %v2925 = vand.u32 %v2924, 4294901760
    %2926 = vmatprep.subr.mxu0 %v2925
    %v2927 = vand.u32 %v1725, 4294901760
    %v2928 = vsub.f32 %v1725, %v2927
    %v2929 = vand.u32 %v2928, 4294901760
    %2930 = vmatpush1.msra.mxu0 %v2929
    %v2931 = vand.u32 %v1728, 4294901760
    %v2932 = vsub.f32 %v1728, %v2931
    %v2933 = vand.u32 %v2932, 4294901760
    %2934 = vmatprep.subr.mxu0 %v2933
    %v2935 = vand.u32 %v1727, 4294901760
    %v2936 = vsub.f32 %v1727, %v2935
    %v2937 = vand.u32 %v2936, 4294901760
    %2938 = vmatpush1.msra.mxu0 %v2937
    %v2939 = vand.u32 %v1730, 4294901760
    %v2940 = vsub.f32 %v1730, %v2939
    %v2941 = vand.u32 %v2940, 4294901760
    %2942 = vmatprep.subr.mxu0 %v2941
    %v2943 = vand.u32 %v1729, 4294901760
    %v2944 = vsub.f32 %v1729, %v2943
    %v2945 = vand.u32 %v2944, 4294901760
    %2946 = vmatpush1.msra.mxu0 %v2945
    %v2947 = vand.u32 %v1732, 4294901760
    %v2948 = vsub.f32 %v1732, %v2947
    %v2949 = vand.u32 %v2948, 4294901760
    %2950 = vmatprep.subr.mxu0 %v2949
    %v2951 = vand.u32 %v1731, 4294901760
    %v2952 = vsub.f32 %v1731, %v2951
    %v2953 = vand.u32 %v2952, 4294901760
    %2954 = vmatpush1.msra.mxu0 %v2953
    %v2955 = vand.u32 %v1734, 4294901760
    %v2956 = vsub.f32 %v1734, %v2955
    %v2957 = vand.u32 %v2956, 4294901760
    %2958 = vmatprep.subr.mxu0 %v2957
    %v2959 = vand.u32 %v1733, 4294901760
    %v2960 = vsub.f32 %v1733, %v2959
    %v2961 = vand.u32 %v2960, 4294901760
    %2962 = vmatpush1.msra.mxu0 %v2961
    %v2963 = vand.u32 %v1736, 4294901760
    %v2964 = vsub.f32 %v1736, %v2963
    %v2965 = vand.u32 %v2964, 4294901760
    %2966 = vmatprep.subr.mxu0 %v2965
    %v2967 = vand.u32 %v1735, 4294901760
    %v2968 = vsub.f32 %v1735, %v2967
    %v2969 = vand.u32 %v2968, 4294901760
    %2970 = vmatpush1.msra.mxu0 %v2969
    %v2971 = vand.u32 %v1738, 4294901760
    %v2972 = vsub.f32 %v1738, %v2971
    %v2973 = vand.u32 %v2972, 4294901760
    %2974 = vmatprep.subr.mxu0 %v2973
    %v2975 = vand.u32 %v1737, 4294901760
    %v2976 = vsub.f32 %v1737, %v2975
    %v2977 = vand.u32 %v2976, 4294901760
    %2978 = vmatpush1.msra.mxu0 %v2977
    %v2979 = vand.u32 %v1740, 4294901760
    %v2980 = vsub.f32 %v1740, %v2979
    %v2981 = vand.u32 %v2980, 4294901760
    %2982 = vmatprep.subr.mxu0 %v2981
    %v2983 = vand.u32 %v1739, 4294901760
    %v2984 = vsub.f32 %v1739, %v2983
    %v2985 = vand.u32 %v2984, 4294901760
    %2986 = vmatpush1.msra.mxu0 %v2985
    %v2987 = vand.u32 %v1742, 4294901760
    %v2988 = vsub.f32 %v1742, %v2987
    %v2989 = vand.u32 %v2988, 4294901760
    %2990 = vmatprep.subr.mxu0 %v2989
    %v2991 = vand.u32 %v1741, 4294901760
    %v2992 = vsub.f32 %v1741, %v2991
    %v2993 = vand.u32 %v2992, 4294901760
    %2994 = vmatpush1.msra.mxu0 %v2993
    %v2995 = vand.u32 %v1744, 4294901760
    %v2996 = vsub.f32 %v1744, %v2995
    %v2997 = vand.u32 %v2996, 4294901760
    %2998 = vmatprep.subr.mxu0 %v2997
    %v2999 = vand.u32 %v1743, 4294901760
    %v3000 = vsub.f32 %v1743, %v2999
    %v3001 = vand.u32 %v3000, 4294901760
    %3002 = vmatpush1.msra.mxu0 %v3001
    %v3003 = vand.u32 %v1746, 4294901760
    %v3004 = vsub.f32 %v1746, %v3003
    %v3005 = vand.u32 %v3004, 4294901760
    %3006 = vmatprep.subr.mxu0 %v3005
    %v3007 = vand.u32 %v1745, 4294901760
    %v3008 = vsub.f32 %v1745, %v3007
    %v3009 = vand.u32 %v3008, 4294901760
    %3010 = vmatpush1.msra.mxu0 %v3009
    %v3011 = vand.u32 %v1748, 4294901760
    %v3012 = vsub.f32 %v1748, %v3011
    %v3013 = vand.u32 %v3012, 4294901760
    %3014 = vmatprep.subr.mxu0 %v3013
    %v3015 = vand.u32 %v1747, 4294901760
    %v3016 = vsub.f32 %v1747, %v3015
    %v3017 = vand.u32 %v3016, 4294901760
    %3018 = vmatpush1.msra.mxu0 %v3017
    %v3019 = vand.u32 %v1750, 4294901760
    %v3020 = vsub.f32 %v1750, %v3019
    %v3021 = vand.u32 %v3020, 4294901760
    %3022 = vmatprep.subr.mxu0 %v3021
    %v3023 = vand.u32 %v1749, 4294901760
    %v3024 = vsub.f32 %v1749, %v3023
    %v3025 = vand.u32 %v3024, 4294901760
    %3026 = vmatpush1.msra.mxu0 %v3025
    %v3027 = vand.u32 %v1680, 4294901760
    %3028 = vmatprep.mubr.f32.mxu0 %v3027
    %v3029 = vand.u32 %v1679, 4294901760
    %3030 = vmatmul.mubr.f32.gmra.mrb[0].mxu0 %v3029
    %v3031 = vpop.f32.mrb[0].mxu0
    %v3032 = vadd.f32 %v2731, %v3031
    %v3033 = vpop.f32.mrb[0].mxu0
    %v3034 = vadd.f32 %v2733, %v3033
    %v3035 = vand.u32 %v1682, 4294901760
    %3036 = vmatprep.mubr.f32.mxu0 %v3035
    %v3037 = vand.u32 %v1681, 4294901760
    %3038 = vmatmul.mubr.f32.gmra.mrb[0].mxu0 %v3037
    %v3039 = vpop.f32.mrb[0].mxu0
    %v3040 = vadd.f32 %v2743, %v3039
    %v3041 = vpop.f32.mrb[0].mxu0
    %v3042 = vadd.f32 %v2745, %v3041
    %v3043 = vand.u32 %v1684, 4294901760
    %3044 = vmatprep.mubr.f32.mxu0 %v3043
    %v3045 = vand.u32 %v1683, 4294901760
    %3046 = vmatmul.mubr.f32.gmra.mrb[0].mxu0 %v3045
    %v3047 = vpop.f32.mrb[0].mxu0
    %v3048 = vadd.f32 %v2755, %v3047
    %v3049 = vpop.f32.mrb[0].mxu0
    %v3050 = vadd.f32 %v2757, %v3049
    %v3051 = vand.u32 %v1686, 4294901760
    %3052 = vmatprep.mubr.f32.mxu0 %v3051
    %v3053 = vand.u32 %v1685, 4294901760
    %3054 = vmatmul.mubr.f32.gmra.mrb[0].mxu0 %v3053
    %v3055 = vpop.f32.mrb[0].mxu0
    %v3056 = vadd.f32 %v2767, %v3055
    %v3057 = vpop.f32.mrb[0].mxu0
    %v3058 = vadd.f32 %v2769, %v3057
    %3059 = vdwg.mxu0
    %v3060 = vand.u32 %v1688, 4294901760
    %3061 = vmatprep.subr.mxu0 %v3060
    %v3062 = vand.u32 %v1687, 4294901760
    %3063 = vmatpush1.msra.mxu0 %v3062
    %v3064 = vand.u32 %v1690, 4294901760
    %3065 = vmatprep.subr.mxu0 %v3064
    %v3066 = vand.u32 %v1689, 4294901760
    %3067 = vmatpush1.msra.mxu0 %v3066
    %v3068 = vand.u32 %v1692, 4294901760
    %3069 = vmatprep.subr.mxu0 %v3068
    %v3070 = vand.u32 %v1691, 4294901760
    %3071 = vmatpush1.msra.mxu0 %v3070
    %v3072 = vand.u32 %v1694, 4294901760
    %3073 = vmatprep.subr.mxu0 %v3072
    %v3074 = vand.u32 %v1693, 4294901760
    %3075 = vmatpush1.msra.mxu0 %v3074
    %v3076 = vand.u32 %v1696, 4294901760
    %3077 = vmatprep.subr.mxu0 %v3076
    %v3078 = vand.u32 %v1695, 4294901760
    %3079 = vmatpush1.msra.mxu0 %v3078
    %v3080 = vand.u32 %v1698, 4294901760
    %3081 = vmatprep.subr.mxu0 %v3080
    %v3082 = vand.u32 %v1697, 4294901760
    %3083 = vmatpush1.msra.mxu0 %v3082
    %v3084 = vand.u32 %v1700, 4294901760
    %3085 = vmatprep.subr.mxu0 %v3084
    %v3086 = vand.u32 %v1699, 4294901760
    %3087 = vmatpush1.msra.mxu0 %v3086
    %v3088 = vand.u32 %v1702, 4294901760
    %3089 = vmatprep.subr.mxu0 %v3088
    %v3090 = vand.u32 %v1701, 4294901760
    %3091 = vmatpush1.msra.mxu0 %v3090
    %v3092 = vand.u32 %v1704, 4294901760
    %3093 = vmatprep.subr.mxu0 %v3092
    %v3094 = vand.u32 %v1703, 4294901760
    %3095 = vmatpush1.msra.mxu0 %v3094
    %v3096 = vand.u32 %v1706, 4294901760
    %3097 = vmatprep.subr.mxu0 %v3096
    %v3098 = vand.u32 %v1705, 4294901760
    %3099 = vmatpush1.msra.mxu0 %v3098
    %v3100 = vand.u32 %v1708, 4294901760
    %3101 = vmatprep.subr.mxu0 %v3100
    %v3102 = vand.u32 %v1707, 4294901760
    %3103 = vmatpush1.msra.mxu0 %v3102
    %v3104 = vand.u32 %v1710, 4294901760
    %3105 = vmatprep.subr.mxu0 %v3104
    %v3106 = vand.u32 %v1709, 4294901760
    %3107 = vmatpush1.msra.mxu0 %v3106
    %v3108 = vand.u32 %v1712, 4294901760
    %3109 = vmatprep.subr.mxu0 %v3108
    %v3110 = vand.u32 %v1711, 4294901760
    %3111 = vmatpush1.msra.mxu0 %v3110
    %v3112 = vand.u32 %v1714, 4294901760
    %3113 = vmatprep.subr.mxu0 %v3112
    %v3114 = vand.u32 %v1713, 4294901760
    %3115 = vmatpush1.msra.mxu0 %v3114
    %v3116 = vand.u32 %v1716, 4294901760
    %3117 = vmatprep.subr.mxu0 %v3116
    %v3118 = vand.u32 %v1715, 4294901760
    %3119 = vmatpush1.msra.mxu0 %v3118
    %v3120 = vand.u32 %v1718, 4294901760
    %3121 = vmatprep.subr.mxu0 %v3120
    %v3122 = vand.u32 %v1717, 4294901760
    %3123 = vmatpush1.msra.mxu0 %v3122
    %v3124 = vand.u32 %v1720, 4294901760
    %3125 = vmatprep.subr.mxu0 %v3124
    %v3126 = vand.u32 %v1719, 4294901760
    %3127 = vmatpush1.msra.mxu0 %v3126
    %v3128 = vand.u32 %v1722, 4294901760
    %3129 = vmatprep.subr.mxu0 %v3128
    %v3130 = vand.u32 %v1721, 4294901760
    %3131 = vmatpush1.msra.mxu0 %v3130
    %v3132 = vand.u32 %v1724, 4294901760
    %3133 = vmatprep.subr.mxu0 %v3132
    %v3134 = vand.u32 %v1723, 4294901760
    %3135 = vmatpush1.msra.mxu0 %v3134
    %v3136 = vand.u32 %v1726, 4294901760
    %3137 = vmatprep.subr.mxu0 %v3136
    %v3138 = vand.u32 %v1725, 4294901760
    %3139 = vmatpush1.msra.mxu0 %v3138
    %v3140 = vand.u32 %v1728, 4294901760
    %3141 = vmatprep.subr.mxu0 %v3140
    %v3142 = vand.u32 %v1727, 4294901760
    %3143 = vmatpush1.msra.mxu0 %v3142
    %v3144 = vand.u32 %v1730, 4294901760
    %3145 = vmatprep.subr.mxu0 %v3144
    %v3146 = vand.u32 %v1729, 4294901760
    %3147 = vmatpush1.msra.mxu0 %v3146
    %v3148 = vand.u32 %v1732, 4294901760
    %3149 = vmatprep.subr.mxu0 %v3148
    %v3150 = vand.u32 %v1731, 4294901760
    %3151 = vmatpush1.msra.mxu0 %v3150
    %v3152 = vand.u32 %v1734, 4294901760
    %3153 = vmatprep.subr.mxu0 %v3152
    %v3154 = vand.u32 %v1733, 4294901760
    %3155 = vmatpush1.msra.mxu0 %v3154
    %v3156 = vand.u32 %v1736, 4294901760
    %3157 = vmatprep.subr.mxu0 %v3156
    %v3158 = vand.u32 %v1735, 4294901760
    %3159 = vmatpush1.msra.mxu0 %v3158
    %v3160 = vand.u32 %v1738, 4294901760
    %3161 = vmatprep.subr.mxu0 %v3160
    %v3162 = vand.u32 %v1737, 4294901760
    %3163 = vmatpush1.msra.mxu0 %v3162
    %v3164 = vand.u32 %v1740, 4294901760
    %3165 = vmatprep.subr.mxu0 %v3164
    %v3166 = vand.u32 %v1739, 4294901760
    %3167 = vmatpush1.msra.mxu0 %v3166
    %v3168 = vand.u32 %v1742, 4294901760
    %3169 = vmatprep.subr.mxu0 %v3168
    %v3170 = vand.u32 %v1741, 4294901760
    %3171 = vmatpush1.msra.mxu0 %v3170
    %v3172 = vand.u32 %v1744, 4294901760
    %3173 = vmatprep.subr.mxu0 %v3172
    %v3174 = vand.u32 %v1743, 4294901760
    %3175 = vmatpush1.msra.mxu0 %v3174
    %v3176 = vand.u32 %v1746, 4294901760
    %3177 = vmatprep.subr.mxu0 %v3176
    %v3178 = vand.u32 %v1745, 4294901760
    %3179 = vmatpush1.msra.mxu0 %v3178
    %v3180 = vand.u32 %v1748, 4294901760
    %3181 = vmatprep.subr.mxu0 %v3180
    %v3182 = vand.u32 %v1747, 4294901760
    %3183 = vmatpush1.msra.mxu0 %v3182
    %v3184 = vand.u32 %v1750, 4294901760
    %3185 = vmatprep.subr.mxu0 %v3184
    %v3186 = vand.u32 %v1749, 4294901760
    %3187 = vmatpush1.msra.mxu0 %v3186
    %v3188 = vand.u32 %v1680, 4294901760
    %3189 = vmatprep.mubr.f32.mxu0 %v3188
    %v3190 = vand.u32 %v1679, 4294901760
    %3191 = vmatmul.mubr.f32.gmra.mrb[0].mxu0 %v3190
    %v3192 = vpop.f32.mrb[0].mxu0
    %v3193 = vadd.f32 %v3032, %v3192
    %v3194 = vpop.f32.mrb[0].mxu0
    %v3195 = vadd.f32 %v3034, %v3194
    %v3196 = vand.u32 %v1682, 4294901760
    %3197 = vmatprep.mubr.f32.mxu0 %v3196
    %v3198 = vand.u32 %v1681, 4294901760
    %3199 = vmatmul.mubr.f32.gmra.mrb[0].mxu0 %v3198
    %v3200 = vpop.f32.mrb[0].mxu0
    %v3201 = vadd.f32 %v3040, %v3200
    %v3202 = vpop.f32.mrb[0].mxu0
    %v3203 = vadd.f32 %v3042, %v3202
    %v3204 = vand.u32 %v1684, 4294901760
    %3205 = vmatprep.mubr.f32.mxu0 %v3204
    %v3206 = vand.u32 %v1683, 4294901760
    %3207 = vmatmul.mubr.f32.gmra.mrb[0].mxu0 %v3206
    %v3208 = vpop.f32.mrb[0].mxu0
    %v3209 = vadd.f32 %v3048, %v3208
    %v3210 = vpop.f32.mrb[0].mxu0
    %v3211 = vadd.f32 %v3050, %v3210
    %v3212 = vand.u32 %v1686, 4294901760
    %3213 = vmatprep.mubr.f32.mxu0 %v3212
    %v3214 = vand.u32 %v1685, 4294901760
    %3215 = vmatmul.mubr.f32.gmra.mrb[0].mxu0 %v3214
    %v3216 = vpop.f32.mrb[0].mxu0
    %v3217 = vadd.f32 %v3056, %v3216
    %v3218 = vpop.f32.mrb[0].mxu0
    %v3219 = vadd.f32 %v3058, %v3218
    %3220 = vdwg.mxu0
    %3221 = vrot.lane.b32.xlu0 %v3193, 32
    %v3222 = vpop.permute.xlu0 %3221
    %3223 = vrot.lane.b32.xlu0 %v3201, 32
    %v3224 = vpop.permute.xlu0 %3223
    %3225 = vrot.lane.b32.xlu0 %v3209, 32
    %v3226 = vpop.permute.xlu0 %3225
    %3227 = vrot.lane.b32.xlu0 %v3217, 32
    %v3228 = vpop.permute.xlu0 %3227
    %3229 = vrot.lane.b32.xlu0 %v3195, 32
    %v3230 = vpop.permute.xlu0 %3229
    %3231 = vrot.lane.b32.xlu0 %v3203, 32
    %v3232 = vpop.permute.xlu0 %3231
    %3233 = vrot.lane.b32.xlu0 %v3211, 32
    %v3234 = vpop.permute.xlu0 %3233
    %3235 = vrot.lane.b32.xlu0 %v3219, 32
    %v3236 = vpop.permute.xlu0 %3235
    %v3237 = vlaneseq
    %v3238 = vand.u32 %v3237, 127
    %vm3239 = vcmp.lt.s32.totalorder %v3238, 32
    %v3240 = vsel %vm3239, %v3222, %v3230
    %v3241 = vsel %vm3239, %v3224, %v3232
    %v3242 = vsel %vm3239, %v3226, %v3234
    %v3243 = vsel %vm3239, %v3228, %v3236
    %v3244 = vsel %vm3239, %v3230, %v3222
    %v3245 = vsel %vm3239, %v3232, %v3224
    %v3246 = vsel %vm3239, %v3234, %v3226
    %v3247 = vsel %vm3239, %v3236, %v3228
    %v3248 = vmax.f32 %v3193, %v3244
    %v3249 = vmax.f32 %v3195, %v3240
    %v3250 = vmax.f32 %v3201, %v3245
    %v3251 = vmax.f32 %v3203, %v3241
    %v3252 = vmax.f32 %v3209, %v3246
    %v3253 = vmax.f32 %v3211, %v3242
    %v3254 = vmax.f32 %v3217, %v3247
    %v3255 = vmax.f32 %v3219, %v3243
    %3256 = vrot.lane.b32.xlu0 %v3248, 64
    %v3257 = vpop.permute.xlu0 %3256
    %3258 = vrot.lane.b32.xlu0 %v3250, 64
    %v3259 = vpop.permute.xlu0 %3258
    %3260 = vrot.lane.b32.xlu0 %v3252, 64
    %v3261 = vpop.permute.xlu0 %3260
    %3262 = vrot.lane.b32.xlu0 %v3254, 64
    %v3263 = vpop.permute.xlu0 %3262
    %3264 = vrot.lane.b32.xlu0 %v3249, 64
    %v3265 = vpop.permute.xlu0 %3264
    %3266 = vrot.lane.b32.xlu0 %v3251, 64
    %v3267 = vpop.permute.xlu0 %3266
    %3268 = vrot.lane.b32.xlu0 %v3253, 64
    %v3269 = vpop.permute.xlu0 %3268
    %3270 = vrot.lane.b32.xlu0 %v3255, 64
    %v3271 = vpop.permute.xlu0 %3270
    %vm3272 = vcmp.lt.s32.totalorder %v3238, 64
    %v3273 = vsel %vm3272, %v3257, %v3265
    %v3274 = vsel %vm3272, %v3259, %v3267
    %v3275 = vsel %vm3272, %v3261, %v3269
    %v3276 = vsel %vm3272, %v3263, %v3271
    %v3277 = vsel %vm3272, %v3265, %v3257
    %v3278 = vsel %vm3272, %v3267, %v3259
    %v3279 = vsel %vm3272, %v3269, %v3261
    %v3280 = vsel %vm3272, %v3271, %v3263
    %v3281 = vmax.f32 %v3248, %v3277
    %v3282 = vmax.f32 %v3249, %v3273
    %v3283 = vmax.f32 %v3250, %v3278
    %v3284 = vmax.f32 %v3251, %v3274
    %v3285 = vmax.f32 %v3252, %v3279
    %v3286 = vmax.f32 %v3253, %v3275
    %v3287 = vmax.f32 %v3254, %v3280
    %v3288 = vmax.f32 %v3255, %v3276
    %v3289 = vmax.f32 %v3281, %v3282
    %v3290 = vmax.f32 %v3283, %v3284
    %v3291 = vmax.f32 %v3285, %v3286
    %v3292 = vmax.f32 %v3287, %v3288
    %v3293 = vsub.f32 %v3193, %v3289
    %v3294 = vsub.f32 %v3195, %v3289
    %v3295 = vsub.f32 %v3201, %v3290
    %v3296 = vsub.f32 %v3203, %v3290
    %v3297 = vsub.f32 %v3209, %v3291
    %v3298 = vsub.f32 %v3211, %v3291
    %v3299 = vsub.f32 %v3217, %v3292
    %v3300 = vsub.f32 %v3219, %v3292
    %v3301 = vmul.f32 %v3293, 1.442695
    %v3302 = vpow.pop %v3301
    %v3303 = vmul.f32 %v3294, 1.442695
    %v3304 = vpow.pop %v3303
    %v3305 = vmul.f32 %v3295, 1.442695
    %v3306 = vpow.pop %v3305
    %v3307 = vmul.f32 %v3296, 1.442695
    %v3308 = vpow.pop %v3307
    %v3309 = vmul.f32 %v3297, 1.442695
    %v3310 = vpow.pop %v3309
    %v3311 = vmul.f32 %v3298, 1.442695
    %v3312 = vpow.pop %v3311
    %v3313 = vmul.f32 %v3299, 1.442695
    %v3314 = vpow.pop %v3313
    %v3315 = vmul.f32 %v3300, 1.442695
    %v3316 = vpow.pop %v3315
    %v3317 = vld [vmem:[%s7] sm:$0xff]
    %v3318 = vld [vmem:[%s7 + $0x8] sm:$0xff]
    %v3319 = vld [vmem:[%s7 + $0x10] sm:$0xff]
    %v3320 = vld [vmem:[%s7 + $0x18] sm:$0xff]
    %v3321 = vld [vmem:[%s7 + $0x20] sm:$0xff]
    %v3322 = vld [vmem:[%s7 + $0x28] sm:$0xff]
    %v3323 = vld [vmem:[%s7 + $0x30] sm:$0xff]
    %v3324 = vld [vmem:[%s7 + $0x38] sm:$0xff]
    %v3325 = vld [vmem:[%s7 + $0x40] sm:$0xff]
    %v3326 = vld [vmem:[%s7 + $0x48] sm:$0xff]
    %v3327 = vld [vmem:[%s7 + $0x50] sm:$0xff]
    %v3328 = vld [vmem:[%s7 + $0x58] sm:$0xff]
    %v3329 = vld [vmem:[%s7 + $0x60] sm:$0xff]
    %v3330 = vld [vmem:[%s7 + $0x68] sm:$0xff]
    %v3331 = vld [vmem:[%s7 + $0x70] sm:$0xff]
    %v3332 = vld [vmem:[%s7 + $0x78] sm:$0xff]
    %v3333 = vld [vmem:[%s7 + $0x80] sm:$0xff]
    %v3334 = vld [vmem:[%s7 + $0x88] sm:$0xff]
    %v3335 = vld [vmem:[%s7 + $0x90] sm:$0xff]
    %v3336 = vld [vmem:[%s7 + $0x98] sm:$0xff]
    %v3337 = vld [vmem:[%s7 + $0xa0] sm:$0xff]
    %v3338 = vld [vmem:[%s7 + $0xa8] sm:$0xff]
    %v3339 = vld [vmem:[%s7 + $0xb0] sm:$0xff]
    %v3340 = vld [vmem:[%s7 + $0xb8] sm:$0xff]
    %v3341 = vld [vmem:[%s7 + $0xc0] sm:$0xff]
    %v3342 = vld [vmem:[%s7 + $0xc8] sm:$0xff]
    %v3343 = vld [vmem:[%s7 + $0xd0] sm:$0xff]
    %v3344 = vld [vmem:[%s7 + $0xd8] sm:$0xff]
    %v3345 = vld [vmem:[%s7 + $0xe0] sm:$0xff]
    %v3346 = vld [vmem:[%s7 + $0xe8] sm:$0xff]
    %v3347 = vld [vmem:[%s7 + $0xf0] sm:$0xff]
    %v3348 = vld [vmem:[%s7 + $0xf8] sm:$0xff]
    %3349 = vmatprep.subr.mxu0 0.0
    %v3350 = vand.u32 %v3317, 4294901760
    %3351 = vmatpush1.msra.mxu0 %v3350
    %3352 = vmatprep.subr.mxu0 0.0
    %v3353 = vand.u32 %v3318, 4294901760
    %3354 = vmatpush1.msra.mxu0 %v3353
    %3355 = vmatprep.subr.mxu0 0.0
    %v3356 = vand.u32 %v3319, 4294901760
    %3357 = vmatpush1.msra.mxu0 %v3356
    %3358 = vmatprep.subr.mxu0 0.0
    %v3359 = vand.u32 %v3320, 4294901760
    %3360 = vmatpush1.msra.mxu0 %v3359
    %3361 = vmatprep.subr.mxu0 0.0
    %v3362 = vand.u32 %v3321, 4294901760
    %3363 = vmatpush1.msra.mxu0 %v3362
    %3364 = vmatprep.subr.mxu0 0.0
    %v3365 = vand.u32 %v3322, 4294901760
    %3366 = vmatpush1.msra.mxu0 %v3365
    %3367 = vmatprep.subr.mxu0 0.0
    %v3368 = vand.u32 %v3323, 4294901760
    %3369 = vmatpush1.msra.mxu0 %v3368
    %3370 = vmatprep.subr.mxu0 0.0
    %v3371 = vand.u32 %v3324, 4294901760
    %3372 = vmatpush1.msra.mxu0 %v3371
    %3373 = vmatprep.subr.mxu0 0.0
    %v3374 = vand.u32 %v3325, 4294901760
    %3375 = vmatpush1.msra.mxu0 %v3374
    %3376 = vmatprep.subr.mxu0 0.0
    %v3377 = vand.u32 %v3326, 4294901760
    %3378 = vmatpush1.msra.mxu0 %v3377
    %3379 = vmatprep.subr.mxu0 0.0
    %v3380 = vand.u32 %v3327, 4294901760
    %3381 = vmatpush1.msra.mxu0 %v3380
    %3382 = vmatprep.subr.mxu0 0.0
    %v3383 = vand.u32 %v3328, 4294901760
    %3384 = vmatpush1.msra.mxu0 %v3383
    %3385 = vmatprep.subr.mxu0 0.0
    %v3386 = vand.u32 %v3329, 4294901760
    %3387 = vmatpush1.msra.mxu0 %v3386
    %3388 = vmatprep.subr.mxu0 0.0
    %v3389 = vand.u32 %v3330, 4294901760
    %3390 = vmatpush1.msra.mxu0 %v3389
    %3391 = vmatprep.subr.mxu0 0.0
    %v3392 = vand.u32 %v3331, 4294901760
    %3393 = vmatpush1.msra.mxu0 %v3392
    %3394 = vmatprep.subr.mxu0 0.0
    %v3395 = vand.u32 %v3332, 4294901760
    %3396 = vmatpush1.msra.mxu0 %v3395
    %3397 = vmatprep.subr.mxu0 0.0
    %v3398 = vand.u32 %v3333, 4294901760
    %3399 = vmatpush1.msra.mxu0 %v3398
    %3400 = vmatprep.subr.mxu0 0.0
    %v3401 = vand.u32 %v3334, 4294901760
    %3402 = vmatpush1.msra.mxu0 %v3401
    %3403 = vmatprep.subr.mxu0 0.0
    %v3404 = vand.u32 %v3335, 4294901760
    %3405 = vmatpush1.msra.mxu0 %v3404
    %3406 = vmatprep.subr.mxu0 0.0
    %v3407 = vand.u32 %v3336, 4294901760
    %3408 = vmatpush1.msra.mxu0 %v3407
    %3409 = vmatprep.subr.mxu0 0.0
    %v3410 = vand.u32 %v3337, 4294901760
    %3411 = vmatpush1.msra.mxu0 %v3410
    %3412 = vmatprep.subr.mxu0 0.0
    %v3413 = vand.u32 %v3338, 4294901760
    %3414 = vmatpush1.msra.mxu0 %v3413
    %3415 = vmatprep.subr.mxu0 0.0
    %v3416 = vand.u32 %v3339, 4294901760
    %3417 = vmatpush1.msra.mxu0 %v3416
    %3418 = vmatprep.subr.mxu0 0.0
    %v3419 = vand.u32 %v3340, 4294901760
    %3420 = vmatpush1.msra.mxu0 %v3419
    %3421 = vmatprep.subr.mxu0 0.0
    %v3422 = vand.u32 %v3341, 4294901760
    %3423 = vmatpush1.msra.mxu0 %v3422
    %3424 = vmatprep.subr.mxu0 0.0
    %v3425 = vand.u32 %v3342, 4294901760
    %3426 = vmatpush1.msra.mxu0 %v3425
    %3427 = vmatprep.subr.mxu0 0.0
    %v3428 = vand.u32 %v3343, 4294901760
    %3429 = vmatpush1.msra.mxu0 %v3428
    %3430 = vmatprep.subr.mxu0 0.0
    %v3431 = vand.u32 %v3344, 4294901760
    %3432 = vmatpush1.msra.mxu0 %v3431
    %3433 = vmatprep.subr.mxu0 0.0
    %v3434 = vand.u32 %v3345, 4294901760
    %3435 = vmatpush1.msra.mxu0 %v3434
    %3436 = vmatprep.subr.mxu0 0.0
    %v3437 = vand.u32 %v3346, 4294901760
    %3438 = vmatpush1.msra.mxu0 %v3437
    %3439 = vmatprep.subr.mxu0 0.0
    %v3440 = vand.u32 %v3347, 4294901760
    %3441 = vmatpush1.msra.mxu0 %v3440
    %3442 = vmatprep.subr.mxu0 0.0
    %v3443 = vand.u32 %v3348, 4294901760
    %3444 = vmatpush1.msra.mxu0 %v3443
    %v3445 = vand.u32 %v3304, 4294901760
    %v3446 = vsub.f32 %v3304, %v3445
    %v3447 = vand.u32 %v3446, 4294901760
    %v3448 = vsub.f32 %v3446, %v3447
    %v3449 = vand.u32 %v3448, 4294901760
    %3450 = vmatprep.mubr.f32.mxu0 %v3449
    %v3451 = vand.u32 %v3302, 4294901760
    %v3452 = vsub.f32 %v3302, %v3451
    %v3453 = vand.u32 %v3452, 4294901760
    %v3454 = vsub.f32 %v3452, %v3453
    %v3455 = vand.u32 %v3454, 4294901760
    %3456 = vmatmul.mubr.f32.gmra.mrb[0].mxu0 %v3455
    %v3457 = vpop.f32.mrb[0].mxu0
    %v3458 = vadd.f32 0.0, %v3457
    %v3459 = vpop.f32.mrb[0].mxu0
    %v3460 = vand.u32 %v3308, 4294901760
    %v3461 = vsub.f32 %v3308, %v3460
    %v3462 = vand.u32 %v3461, 4294901760
    %v3463 = vsub.f32 %v3461, %v3462
    %v3464 = vand.u32 %v3463, 4294901760
    %3465 = vmatprep.mubr.f32.mxu0 %v3464
    %v3466 = vand.u32 %v3306, 4294901760
    %v3467 = vsub.f32 %v3306, %v3466
    %v3468 = vand.u32 %v3467, 4294901760
    %v3469 = vsub.f32 %v3467, %v3468
    %v3470 = vand.u32 %v3469, 4294901760
    %3471 = vmatmul.mubr.f32.gmra.mrb[0].mxu0 %v3470
    %v3472 = vpop.f32.mrb[0].mxu0
    %v3473 = vadd.f32 0.0, %v3472
    %v3474 = vpop.f32.mrb[0].mxu0
    %v3475 = vand.u32 %v3312, 4294901760
    %v3476 = vsub.f32 %v3312, %v3475
    %v3477 = vand.u32 %v3476, 4294901760
    %v3478 = vsub.f32 %v3476, %v3477
    %v3479 = vand.u32 %v3478, 4294901760
    %3480 = vmatprep.mubr.f32.mxu0 %v3479
    %v3481 = vand.u32 %v3310, 4294901760
    %v3482 = vsub.f32 %v3310, %v3481
    %v3483 = vand.u32 %v3482, 4294901760
    %v3484 = vsub.f32 %v3482, %v3483
    %v3485 = vand.u32 %v3484, 4294901760
    %3486 = vmatmul.mubr.f32.gmra.mrb[0].mxu0 %v3485
    %v3487 = vpop.f32.mrb[0].mxu0
    %v3488 = vadd.f32 0.0, %v3487
    %v3489 = vpop.f32.mrb[0].mxu0
    %v3490 = vand.u32 %v3316, 4294901760
    %v3491 = vsub.f32 %v3316, %v3490
    %v3492 = vand.u32 %v3491, 4294901760
    %v3493 = vsub.f32 %v3491, %v3492
    %v3494 = vand.u32 %v3493, 4294901760
    %3495 = vmatprep.mubr.f32.mxu0 %v3494
    %v3496 = vand.u32 %v3314, 4294901760
    %v3497 = vsub.f32 %v3314, %v3496
    %v3498 = vand.u32 %v3497, 4294901760
    %v3499 = vsub.f32 %v3497, %v3498
    %v3500 = vand.u32 %v3499, 4294901760
    %3501 = vmatmul.mubr.f32.gmra.mrb[0].mxu0 %v3500
    %v3502 = vpop.f32.mrb[0].mxu0
    %v3503 = vadd.f32 0.0, %v3502
    %v3504 = vpop.f32.mrb[0].mxu0
    %3505 = vdwg.mxu0
    %3506 = vmatprep.subr.mxu0 0.0
    %v3507 = vand.u32 %v3317, 4294901760
    %v3508 = vsub.f32 %v3317, %v3507
    %v3509 = vand.u32 %v3508, 4294901760
    %v3510 = vsub.f32 %v3508, %v3509
    %v3511 = vand.u32 %v3510, 4294901760
    %3512 = vmatpush1.msra.mxu0 %v3511
    %3513 = vmatprep.subr.mxu0 0.0
    %v3514 = vand.u32 %v3318, 4294901760
    %v3515 = vsub.f32 %v3318, %v3514
    %v3516 = vand.u32 %v3515, 4294901760
    %v3517 = vsub.f32 %v3515, %v3516
    %v3518 = vand.u32 %v3517, 4294901760
    %3519 = vmatpush1.msra.mxu0 %v3518
    %3520 = vmatprep.subr.mxu0 0.0
    %v3521 = vand.u32 %v3319, 4294901760
    %v3522 = vsub.f32 %v3319, %v3521
    %v3523 = vand.u32 %v3522, 4294901760
    %v3524 = vsub.f32 %v3522, %v3523
    %v3525 = vand.u32 %v3524, 4294901760
    %3526 = vmatpush1.msra.mxu0 %v3525
    %3527 = vmatprep.subr.mxu0 0.0
    %v3528 = vand.u32 %v3320, 4294901760
    %v3529 = vsub.f32 %v3320, %v3528
    %v3530 = vand.u32 %v3529, 4294901760
    %v3531 = vsub.f32 %v3529, %v3530
    %v3532 = vand.u32 %v3531, 4294901760
    %3533 = vmatpush1.msra.mxu0 %v3532
    %3534 = vmatprep.subr.mxu0 0.0
    %v3535 = vand.u32 %v3321, 4294901760
    %v3536 = vsub.f32 %v3321, %v3535
    %v3537 = vand.u32 %v3536, 4294901760
    %v3538 = vsub.f32 %v3536, %v3537
    %v3539 = vand.u32 %v3538, 4294901760
    %3540 = vmatpush1.msra.mxu0 %v3539
    %3541 = vmatprep.subr.mxu0 0.0
    %v3542 = vand.u32 %v3322, 4294901760
    %v3543 = vsub.f32 %v3322, %v3542
    %v3544 = vand.u32 %v3543, 4294901760
    %v3545 = vsub.f32 %v3543, %v3544
    %v3546 = vand.u32 %v3545, 4294901760
    %3547 = vmatpush1.msra.mxu0 %v3546
    %3548 = vmatprep.subr.mxu0 0.0
    %v3549 = vand.u32 %v3323, 4294901760
    %v3550 = vsub.f32 %v3323, %v3549
    %v3551 = vand.u32 %v3550, 4294901760
    %v3552 = vsub.f32 %v3550, %v3551
    %v3553 = vand.u32 %v3552, 4294901760
    %3554 = vmatpush1.msra.mxu0 %v3553
    %3555 = vmatprep.subr.mxu0 0.0
    %v3556 = vand.u32 %v3324, 4294901760
    %v3557 = vsub.f32 %v3324, %v3556
    %v3558 = vand.u32 %v3557, 4294901760
    %v3559 = vsub.f32 %v3557, %v3558
    %v3560 = vand.u32 %v3559, 4294901760
    %3561 = vmatpush1.msra.mxu0 %v3560
    %3562 = vmatprep.subr.mxu0 0.0
    %v3563 = vand.u32 %v3325, 4294901760
    %v3564 = vsub.f32 %v3325, %v3563
    %v3565 = vand.u32 %v3564, 4294901760
    %v3566 = vsub.f32 %v3564, %v3565
    %v3567 = vand.u32 %v3566, 4294901760
    %3568 = vmatpush1.msra.mxu0 %v3567
    %3569 = vmatprep.subr.mxu0 0.0
    %v3570 = vand.u32 %v3326, 4294901760
    %v3571 = vsub.f32 %v3326, %v3570
    %v3572 = vand.u32 %v3571, 4294901760
    %v3573 = vsub.f32 %v3571, %v3572
    %v3574 = vand.u32 %v3573, 4294901760
    %3575 = vmatpush1.msra.mxu0 %v3574
    %3576 = vmatprep.subr.mxu0 0.0
    %v3577 = vand.u32 %v3327, 4294901760
    %v3578 = vsub.f32 %v3327, %v3577
    %v3579 = vand.u32 %v3578, 4294901760
    %v3580 = vsub.f32 %v3578, %v3579
    %v3581 = vand.u32 %v3580, 4294901760
    %3582 = vmatpush1.msra.mxu0 %v3581
    %3583 = vmatprep.subr.mxu0 0.0
    %v3584 = vand.u32 %v3328, 4294901760
    %v3585 = vsub.f32 %v3328, %v3584
    %v3586 = vand.u32 %v3585, 4294901760
    %v3587 = vsub.f32 %v3585, %v3586
    %v3588 = vand.u32 %v3587, 4294901760
    %3589 = vmatpush1.msra.mxu0 %v3588
    %3590 = vmatprep.subr.mxu0 0.0
    %v3591 = vand.u32 %v3329, 4294901760
    %v3592 = vsub.f32 %v3329, %v3591
    %v3593 = vand.u32 %v3592, 4294901760
    %v3594 = vsub.f32 %v3592, %v3593
    %v3595 = vand.u32 %v3594, 4294901760
    %3596 = vmatpush1.msra.mxu0 %v3595
    %3597 = vmatprep.subr.mxu0 0.0
    %v3598 = vand.u32 %v3330, 4294901760
    %v3599 = vsub.f32 %v3330, %v3598
    %v3600 = vand.u32 %v3599, 4294901760
    %v3601 = vsub.f32 %v3599, %v3600
    %v3602 = vand.u32 %v3601, 4294901760
    %3603 = vmatpush1.msra.mxu0 %v3602
    %3604 = vmatprep.subr.mxu0 0.0
    %v3605 = vand.u32 %v3331, 4294901760
    %v3606 = vsub.f32 %v3331, %v3605
    %v3607 = vand.u32 %v3606, 4294901760
    %v3608 = vsub.f32 %v3606, %v3607
    %v3609 = vand.u32 %v3608, 4294901760
    %3610 = vmatpush1.msra.mxu0 %v3609
    %3611 = vmatprep.subr.mxu0 0.0
    %v3612 = vand.u32 %v3332, 4294901760
    %v3613 = vsub.f32 %v3332, %v3612
    %v3614 = vand.u32 %v3613, 4294901760
    %v3615 = vsub.f32 %v3613, %v3614
    %v3616 = vand.u32 %v3615, 4294901760
    %3617 = vmatpush1.msra.mxu0 %v3616
    %3618 = vmatprep.subr.mxu0 0.0
    %v3619 = vand.u32 %v3333, 4294901760
    %v3620 = vsub.f32 %v3333, %v3619
    %v3621 = vand.u32 %v3620, 4294901760
    %v3622 = vsub.f32 %v3620, %v3621
    %v3623 = vand.u32 %v3622, 4294901760
    %3624 = vmatpush1.msra.mxu0 %v3623
    %3625 = vmatprep.subr.mxu0 0.0
    %v3626 = vand.u32 %v3334, 4294901760
    %v3627 = vsub.f32 %v3334, %v3626
    %v3628 = vand.u32 %v3627, 4294901760
    %v3629 = vsub.f32 %v3627, %v3628
    %v3630 = vand.u32 %v3629, 4294901760
    %3631 = vmatpush1.msra.mxu0 %v3630
    %3632 = vmatprep.subr.mxu0 0.0
    %v3633 = vand.u32 %v3335, 4294901760
    %v3634 = vsub.f32 %v3335, %v3633
    %v3635 = vand.u32 %v3634, 4294901760
    %v3636 = vsub.f32 %v3634, %v3635
    %v3637 = vand.u32 %v3636, 4294901760
    %3638 = vmatpush1.msra.mxu0 %v3637
    %3639 = vmatprep.subr.mxu0 0.0
    %v3640 = vand.u32 %v3336, 4294901760
    %v3641 = vsub.f32 %v3336, %v3640
    %v3642 = vand.u32 %v3641, 4294901760
    %v3643 = vsub.f32 %v3641, %v3642
    %v3644 = vand.u32 %v3643, 4294901760
    %3645 = vmatpush1.msra.mxu0 %v3644
    %3646 = vmatprep.subr.mxu0 0.0
    %v3647 = vand.u32 %v3337, 4294901760
    %v3648 = vsub.f32 %v3337, %v3647
    %v3649 = vand.u32 %v3648, 4294901760
    %v3650 = vsub.f32 %v3648, %v3649
    %v3651 = vand.u32 %v3650, 4294901760
    %3652 = vmatpush1.msra.mxu0 %v3651
    %3653 = vmatprep.subr.mxu0 0.0
    %v3654 = vand.u32 %v3338, 4294901760
    %v3655 = vsub.f32 %v3338, %v3654
    %v3656 = vand.u32 %v3655, 4294901760
    %v3657 = vsub.f32 %v3655, %v3656
    %v3658 = vand.u32 %v3657, 4294901760
    %3659 = vmatpush1.msra.mxu0 %v3658
    %3660 = vmatprep.subr.mxu0 0.0
    %v3661 = vand.u32 %v3339, 4294901760
    %v3662 = vsub.f32 %v3339, %v3661
    %v3663 = vand.u32 %v3662, 4294901760
    %v3664 = vsub.f32 %v3662, %v3663
    %v3665 = vand.u32 %v3664, 4294901760
    %3666 = vmatpush1.msra.mxu0 %v3665
    %3667 = vmatprep.subr.mxu0 0.0
    %v3668 = vand.u32 %v3340, 4294901760
    %v3669 = vsub.f32 %v3340, %v3668
    %v3670 = vand.u32 %v3669, 4294901760
    %v3671 = vsub.f32 %v3669, %v3670
    %v3672 = vand.u32 %v3671, 4294901760
    %3673 = vmatpush1.msra.mxu0 %v3672
    %3674 = vmatprep.subr.mxu0 0.0
    %v3675 = vand.u32 %v3341, 4294901760
    %v3676 = vsub.f32 %v3341, %v3675
    %v3677 = vand.u32 %v3676, 4294901760
    %v3678 = vsub.f32 %v3676, %v3677
    %v3679 = vand.u32 %v3678, 4294901760
    %3680 = vmatpush1.msra.mxu0 %v3679
    %3681 = vmatprep.subr.mxu0 0.0
    %v3682 = vand.u32 %v3342, 4294901760
    %v3683 = vsub.f32 %v3342, %v3682
    %v3684 = vand.u32 %v3683, 4294901760
    %v3685 = vsub.f32 %v3683, %v3684
    %v3686 = vand.u32 %v3685, 4294901760
    %3687 = vmatpush1.msra.mxu0 %v3686
    %3688 = vmatprep.subr.mxu0 0.0
    %v3689 = vand.u32 %v3343, 4294901760
    %v3690 = vsub.f32 %v3343, %v3689
    %v3691 = vand.u32 %v3690, 4294901760
    %v3692 = vsub.f32 %v3690, %v3691
    %v3693 = vand.u32 %v3692, 4294901760
    %3694 = vmatpush1.msra.mxu0 %v3693
    %3695 = vmatprep.subr.mxu0 0.0
    %v3696 = vand.u32 %v3344, 4294901760
    %v3697 = vsub.f32 %v3344, %v3696
    %v3698 = vand.u32 %v3697, 4294901760
    %v3699 = vsub.f32 %v3697, %v3698
    %v3700 = vand.u32 %v3699, 4294901760
    %3701 = vmatpush1.msra.mxu0 %v3700
    %3702 = vmatprep.subr.mxu0 0.0
    %v3703 = vand.u32 %v3345, 4294901760
    %v3704 = vsub.f32 %v3345, %v3703
    %v3705 = vand.u32 %v3704, 4294901760
    %v3706 = vsub.f32 %v3704, %v3705
    %v3707 = vand.u32 %v3706, 4294901760
    %3708 = vmatpush1.msra.mxu0 %v3707
    %3709 = vmatprep.subr.mxu0 0.0
    %v3710 = vand.u32 %v3346, 4294901760
    %v3711 = vsub.f32 %v3346, %v3710
    %v3712 = vand.u32 %v3711, 4294901760
    %v3713 = vsub.f32 %v3711, %v3712
    %v3714 = vand.u32 %v3713, 4294901760
    %3715 = vmatpush1.msra.mxu0 %v3714
    %3716 = vmatprep.subr.mxu0 0.0
    %v3717 = vand.u32 %v3347, 4294901760
    %v3718 = vsub.f32 %v3347, %v3717
    %v3719 = vand.u32 %v3718, 4294901760
    %v3720 = vsub.f32 %v3718, %v3719
    %v3721 = vand.u32 %v3720, 4294901760
    %3722 = vmatpush1.msra.mxu0 %v3721
    %3723 = vmatprep.subr.mxu0 0.0
    %v3724 = vand.u32 %v3348, 4294901760
    %v3725 = vsub.f32 %v3348, %v3724
    %v3726 = vand.u32 %v3725, 4294901760
    %v3727 = vsub.f32 %v3725, %v3726
    %v3728 = vand.u32 %v3727, 4294901760
    %3729 = vmatpush1.msra.mxu0 %v3728
    %v3730 = vand.u32 %v3304, 4294901760
    %3731 = vmatprep.mubr.f32.mxu0 %v3730
    %v3732 = vand.u32 %v3302, 4294901760
    %3733 = vmatmul.mubr.f32.gmra.mrb[0].mxu0 %v3732
    %v3734 = vpop.f32.mrb[0].mxu0
    %v3735 = vadd.f32 %v3458, %v3734
    %v3736 = vpop.f32.mrb[0].mxu0
    %v3737 = vand.u32 %v3308, 4294901760
    %3738 = vmatprep.mubr.f32.mxu0 %v3737
    %v3739 = vand.u32 %v3306, 4294901760
    %3740 = vmatmul.mubr.f32.gmra.mrb[0].mxu0 %v3739
    %v3741 = vpop.f32.mrb[0].mxu0
    %v3742 = vadd.f32 %v3473, %v3741
    %v3743 = vpop.f32.mrb[0].mxu0
    %v3744 = vand.u32 %v3312, 4294901760
    %3745 = vmatprep.mubr.f32.mxu0 %v3744
    %v3746 = vand.u32 %v3310, 4294901760
    %3747 = vmatmul.mubr.f32.gmra.mrb[0].mxu0 %v3746
    %v3748 = vpop.f32.mrb[0].mxu0
    %v3749 = vadd.f32 %v3488, %v3748
    %v3750 = vpop.f32.mrb[0].mxu0
    %v3751 = vand.u32 %v3316, 4294901760
    %3752 = vmatprep.mubr.f32.mxu0 %v3751
    %v3753 = vand.u32 %v3314, 4294901760
    %3754 = vmatmul.mubr.f32.gmra.mrb[0].mxu0 %v3753
    %v3755 = vpop.f32.mrb[0].mxu0
    %v3756 = vadd.f32 %v3503, %v3755
    %v3757 = vpop.f32.mrb[0].mxu0
    %3758 = vdwg.mxu0
    %3759 = vmatprep.subr.mxu0 0.0
    %v3760 = vand.u32 %v3317, 4294901760
    %v3761 = vsub.f32 %v3317, %v3760
    %3762 = vmatpush1.msra.mxu0 %v3761
    %3763 = vmatprep.subr.mxu0 0.0
    %v3764 = vand.u32 %v3318, 4294901760
    %v3765 = vsub.f32 %v3318, %v3764
    %3766 = vmatpush1.msra.mxu0 %v3765
    %3767 = vmatprep.subr.mxu0 0.0
    %v3768 = vand.u32 %v3319, 4294901760
    %v3769 = vsub.f32 %v3319, %v3768
    %3770 = vmatpush1.msra.mxu0 %v3769
    %3771 = vmatprep.subr.mxu0 0.0
    %v3772 = vand.u32 %v3320, 4294901760
    %v3773 = vsub.f32 %v3320, %v3772
    %3774 = vmatpush1.msra.mxu0 %v3773
    %3775 = vmatprep.subr.mxu0 0.0
    %v3776 = vand.u32 %v3321, 4294901760
    %v3777 = vsub.f32 %v3321, %v3776
    %3778 = vmatpush1.msra.mxu0 %v3777
    %3779 = vmatprep.subr.mxu0 0.0
    %v3780 = vand.u32 %v3322, 4294901760
    %v3781 = vsub.f32 %v3322, %v3780
    %3782 = vmatpush1.msra.mxu0 %v3781
    %3783 = vmatprep.subr.mxu0 0.0
    %v3784 = vand.u32 %v3323, 4294901760
    %v3785 = vsub.f32 %v3323, %v3784
    %3786 = vmatpush1.msra.mxu0 %v3785
    %3787 = vmatprep.subr.mxu0 0.0
    %v3788 = vand.u32 %v3324, 4294901760
    %v3789 = vsub.f32 %v3324, %v3788
    %3790 = vmatpush1.msra.mxu0 %v3789
    %3791 = vmatprep.subr.mxu0 0.0
    %v3792 = vand.u32 %v3325, 4294901760
    %v3793 = vsub.f32 %v3325, %v3792
    %3794 = vmatpush1.msra.mxu0 %v3793
    %3795 = vmatprep.subr.mxu0 0.0
    %v3796 = vand.u32 %v3326, 4294901760
    %v3797 = vsub.f32 %v3326, %v3796
    %3798 = vmatpush1.msra.mxu0 %v3797
    %3799 = vmatprep.subr.mxu0 0.0
    %v3800 = vand.u32 %v3327, 4294901760
    %v3801 = vsub.f32 %v3327, %v3800
    %3802 = vmatpush1.msra.mxu0 %v3801
    %3803 = vmatprep.subr.mxu0 0.0
    %v3804 = vand.u32 %v3328, 4294901760
    %v3805 = vsub.f32 %v3328, %v3804
    %3806 = vmatpush1.msra.mxu0 %v3805
    %3807 = vmatprep.subr.mxu0 0.0
    %v3808 = vand.u32 %v3329, 4294901760
    %v3809 = vsub.f32 %v3329, %v3808
    %3810 = vmatpush1.msra.mxu0 %v3809
    %3811 = vmatprep.subr.mxu0 0.0
    %v3812 = vand.u32 %v3330, 4294901760
    %v3813 = vsub.f32 %v3330, %v3812
    %3814 = vmatpush1.msra.mxu0 %v3813
    %3815 = vmatprep.subr.mxu0 0.0
    %v3816 = vand.u32 %v3331, 4294901760
    %v3817 = vsub.f32 %v3331, %v3816
    %3818 = vmatpush1.msra.mxu0 %v3817
    %3819 = vmatprep.subr.mxu0 0.0
    %v3820 = vand.u32 %v3332, 4294901760
    %v3821 = vsub.f32 %v3332, %v3820
    %3822 = vmatpush1.msra.mxu0 %v3821
    %3823 = vmatprep.subr.mxu0 0.0
    %v3824 = vand.u32 %v3333, 4294901760
    %v3825 = vsub.f32 %v3333, %v3824
    %3826 = vmatpush1.msra.mxu0 %v3825
    %3827 = vmatprep.subr.mxu0 0.0
    %v3828 = vand.u32 %v3334, 4294901760
    %v3829 = vsub.f32 %v3334, %v3828
    %3830 = vmatpush1.msra.mxu0 %v3829
    %3831 = vmatprep.subr.mxu0 0.0
    %v3832 = vand.u32 %v3335, 4294901760
    %v3833 = vsub.f32 %v3335, %v3832
    %3834 = vmatpush1.msra.mxu0 %v3833
    %3835 = vmatprep.subr.mxu0 0.0
    %v3836 = vand.u32 %v3336, 4294901760
    %v3837 = vsub.f32 %v3336, %v3836
    %3838 = vmatpush1.msra.mxu0 %v3837
    %3839 = vmatprep.subr.mxu0 0.0
    %v3840 = vand.u32 %v3337, 4294901760
    %v3841 = vsub.f32 %v3337, %v3840
    %3842 = vmatpush1.msra.mxu0 %v3841
    %3843 = vmatprep.subr.mxu0 0.0
    %v3844 = vand.u32 %v3338, 4294901760
    %v3845 = vsub.f32 %v3338, %v3844
    %3846 = vmatpush1.msra.mxu0 %v3845
    %3847 = vmatprep.subr.mxu0 0.0
    %v3848 = vand.u32 %v3339, 4294901760
    %v3849 = vsub.f32 %v3339, %v3848
    %3850 = vmatpush1.msra.mxu0 %v3849
    %3851 = vmatprep.subr.mxu0 0.0
    %v3852 = vand.u32 %v3340, 4294901760
    %v3853 = vsub.f32 %v3340, %v3852
    %3854 = vmatpush1.msra.mxu0 %v3853
    %3855 = vmatprep.subr.mxu0 0.0
    %v3856 = vand.u32 %v3341, 4294901760
    %v3857 = vsub.f32 %v3341, %v3856
    %3858 = vmatpush1.msra.mxu0 %v3857
    %3859 = vmatprep.subr.mxu0 0.0
    %v3860 = vand.u32 %v3342, 4294901760
    %v3861 = vsub.f32 %v3342, %v3860
    %3862 = vmatpush1.msra.mxu0 %v3861
    %3863 = vmatprep.subr.mxu0 0.0
    %v3864 = vand.u32 %v3343, 4294901760
    %v3865 = vsub.f32 %v3343, %v3864
    %3866 = vmatpush1.msra.mxu0 %v3865
    %3867 = vmatprep.subr.mxu0 0.0
    %v3868 = vand.u32 %v3344, 4294901760
    %v3869 = vsub.f32 %v3344, %v3868
    %3870 = vmatpush1.msra.mxu0 %v3869
    %3871 = vmatprep.subr.mxu0 0.0
    %v3872 = vand.u32 %v3345, 4294901760
    %v3873 = vsub.f32 %v3345, %v3872
    %3874 = vmatpush1.msra.mxu0 %v3873
    %3875 = vmatprep.subr.mxu0 0.0
    %v3876 = vand.u32 %v3346, 4294901760
    %v3877 = vsub.f32 %v3346, %v3876
    %3878 = vmatpush1.msra.mxu0 %v3877
    %3879 = vmatprep.subr.mxu0 0.0
    %v3880 = vand.u32 %v3347, 4294901760
    %v3881 = vsub.f32 %v3347, %v3880
    %3882 = vmatpush1.msra.mxu0 %v3881
    %3883 = vmatprep.subr.mxu0 0.0
    %v3884 = vand.u32 %v3348, 4294901760
    %v3885 = vsub.f32 %v3348, %v3884
    %3886 = vmatpush1.msra.mxu0 %v3885
    %v3887 = vand.u32 %v3304, 4294901760
    %v3888 = vsub.f32 %v3304, %v3887
    %3889 = vmatprep.mubr.f32.mxu0 %v3888
    %v3890 = vand.u32 %v3302, 4294901760
    %v3891 = vsub.f32 %v3302, %v3890
    %3892 = vmatmul.mubr.f32.gmra.mrb[0].mxu0 %v3891
    %v3893 = vpop.f32.mrb[0].mxu0
    %v3894 = vadd.f32 %v3735, %v3893
    %v3895 = vpop.f32.mrb[0].mxu0
    %v3896 = vand.u32 %v3308, 4294901760
    %v3897 = vsub.f32 %v3308, %v3896
    %3898 = vmatprep.mubr.f32.mxu0 %v3897
    %v3899 = vand.u32 %v3306, 4294901760
    %v3900 = vsub.f32 %v3306, %v3899
    %3901 = vmatmul.mubr.f32.gmra.mrb[0].mxu0 %v3900
    %v3902 = vpop.f32.mrb[0].mxu0
    %v3903 = vadd.f32 %v3742, %v3902
    %v3904 = vpop.f32.mrb[0].mxu0
    %v3905 = vand.u32 %v3312, 4294901760
    %v3906 = vsub.f32 %v3312, %v3905
    %3907 = vmatprep.mubr.f32.mxu0 %v3906
    %v3908 = vand.u32 %v3310, 4294901760
    %v3909 = vsub.f32 %v3310, %v3908
    %3910 = vmatmul.mubr.f32.gmra.mrb[0].mxu0 %v3909
    %v3911 = vpop.f32.mrb[0].mxu0
    %v3912 = vadd.f32 %v3749, %v3911
    %v3913 = vpop.f32.mrb[0].mxu0
    %v3914 = vand.u32 %v3316, 4294901760
    %v3915 = vsub.f32 %v3316, %v3914
    %3916 = vmatprep.mubr.f32.mxu0 %v3915
    %v3917 = vand.u32 %v3314, 4294901760
    %v3918 = vsub.f32 %v3314, %v3917
    %3919 = vmatmul.mubr.f32.gmra.mrb[0].mxu0 %v3918
    %v3920 = vpop.f32.mrb[0].mxu0
    %v3921 = vadd.f32 %v3756, %v3920
    %v3922 = vpop.f32.mrb[0].mxu0
    %3923 = vdwg.mxu0
    %3924 = vmatprep.subr.mxu0 0.0
    %v3925 = vand.u32 %v3317, 4294901760
    %3926 = vmatpush1.msra.mxu0 %v3925
    %3927 = vmatprep.subr.mxu0 0.0
    %v3928 = vand.u32 %v3318, 4294901760
    %3929 = vmatpush1.msra.mxu0 %v3928
    %3930 = vmatprep.subr.mxu0 0.0
    %v3931 = vand.u32 %v3319, 4294901760
    %3932 = vmatpush1.msra.mxu0 %v3931
    %3933 = vmatprep.subr.mxu0 0.0
    %v3934 = vand.u32 %v3320, 4294901760
    %3935 = vmatpush1.msra.mxu0 %v3934
    %3936 = vmatprep.subr.mxu0 0.0
    %v3937 = vand.u32 %v3321, 4294901760
    %3938 = vmatpush1.msra.mxu0 %v3937
    %3939 = vmatprep.subr.mxu0 0.0
    %v3940 = vand.u32 %v3322, 4294901760
    %3941 = vmatpush1.msra.mxu0 %v3940
    %3942 = vmatprep.subr.mxu0 0.0
    %v3943 = vand.u32 %v3323, 4294901760
    %3944 = vmatpush1.msra.mxu0 %v3943
    %3945 = vmatprep.subr.mxu0 0.0
    %v3946 = vand.u32 %v3324, 4294901760
    %3947 = vmatpush1.msra.mxu0 %v3946
    %3948 = vmatprep.subr.mxu0 0.0
    %v3949 = vand.u32 %v3325, 4294901760
    %3950 = vmatpush1.msra.mxu0 %v3949
    %3951 = vmatprep.subr.mxu0 0.0
    %v3952 = vand.u32 %v3326, 4294901760
    %3953 = vmatpush1.msra.mxu0 %v3952
    %3954 = vmatprep.subr.mxu0 0.0
    %v3955 = vand.u32 %v3327, 4294901760
    %3956 = vmatpush1.msra.mxu0 %v3955
    %3957 = vmatprep.subr.mxu0 0.0
    %v3958 = vand.u32 %v3328, 4294901760
    %3959 = vmatpush1.msra.mxu0 %v3958
    %3960 = vmatprep.subr.mxu0 0.0
    %v3961 = vand.u32 %v3329, 4294901760
    %3962 = vmatpush1.msra.mxu0 %v3961
    %3963 = vmatprep.subr.mxu0 0.0
    %v3964 = vand.u32 %v3330, 4294901760
    %3965 = vmatpush1.msra.mxu0 %v3964
    %3966 = vmatprep.subr.mxu0 0.0
    %v3967 = vand.u32 %v3331, 4294901760
    %3968 = vmatpush1.msra.mxu0 %v3967
    %3969 = vmatprep.subr.mxu0 0.0
    %v3970 = vand.u32 %v3332, 4294901760
    %3971 = vmatpush1.msra.mxu0 %v3970
    %3972 = vmatprep.subr.mxu0 0.0
    %v3973 = vand.u32 %v3333, 4294901760
    %3974 = vmatpush1.msra.mxu0 %v3973
    %3975 = vmatprep.subr.mxu0 0.0
    %v3976 = vand.u32 %v3334, 4294901760
    %3977 = vmatpush1.msra.mxu0 %v3976
    %3978 = vmatprep.subr.mxu0 0.0
    %v3979 = vand.u32 %v3335, 4294901760
    %3980 = vmatpush1.msra.mxu0 %v3979
    %3981 = vmatprep.subr.mxu0 0.0
    %v3982 = vand.u32 %v3336, 4294901760
    %3983 = vmatpush1.msra.mxu0 %v3982
    %3984 = vmatprep.subr.mxu0 0.0
    %v3985 = vand.u32 %v3337, 4294901760
    %3986 = vmatpush1.msra.mxu0 %v3985
    %3987 = vmatprep.subr.mxu0 0.0
    %v3988 = vand.u32 %v3338, 4294901760
    %3989 = vmatpush1.msra.mxu0 %v3988
    %3990 = vmatprep.subr.mxu0 0.0
    %v3991 = vand.u32 %v3339, 4294901760
    %3992 = vmatpush1.msra.mxu0 %v3991
    %3993 = vmatprep.subr.mxu0 0.0
    %v3994 = vand.u32 %v3340, 4294901760
    %3995 = vmatpush1.msra.mxu0 %v3994
    %3996 = vmatprep.subr.mxu0 0.0
    %v3997 = vand.u32 %v3341, 4294901760
    %3998 = vmatpush1.msra.mxu0 %v3997
    %3999 = vmatprep.subr.mxu0 0.0
    %v4000 = vand.u32 %v3342, 4294901760
    %4001 = vmatpush1.msra.mxu0 %v4000
    %4002 = vmatprep.subr.mxu0 0.0
    %v4003 = vand.u32 %v3343, 4294901760
    %4004 = vmatpush1.msra.mxu0 %v4003
    %4005 = vmatprep.subr.mxu0 0.0
    %v4006 = vand.u32 %v3344, 4294901760
    %4007 = vmatpush1.msra.mxu0 %v4006
    %4008 = vmatprep.subr.mxu0 0.0
    %v4009 = vand.u32 %v3345, 4294901760
    %4010 = vmatpush1.msra.mxu0 %v4009
    %4011 = vmatprep.subr.mxu0 0.0
    %v4012 = vand.u32 %v3346, 4294901760
    %4013 = vmatpush1.msra.mxu0 %v4012
    %4014 = vmatprep.subr.mxu0 0.0
    %v4015 = vand.u32 %v3347, 4294901760
    %4016 = vmatpush1.msra.mxu0 %v4015
    %4017 = vmatprep.subr.mxu0 0.0
    %v4018 = vand.u32 %v3348, 4294901760
    %4019 = vmatpush1.msra.mxu0 %v4018
    %v4020 = vand.u32 %v3304, 4294901760
    %v4021 = vsub.f32 %v3304, %v4020
    %v4022 = vand.u32 %v4021, 4294901760
    %4023 = vmatprep.mubr.f32.mxu0 %v4022
    %v4024 = vand.u32 %v3302, 4294901760
    %v4025 = vsub.f32 %v3302, %v4024
    %v4026 = vand.u32 %v4025, 4294901760
    %4027 = vmatmul.mubr.f32.gmra.mrb[0].mxu0 %v4026
    %v4028 = vpop.f32.mrb[0].mxu0
    %v4029 = vadd.f32 %v3894, %v4028
    %v4030 = vpop.f32.mrb[0].mxu0
    %v4031 = vand.u32 %v3308, 4294901760
    %v4032 = vsub.f32 %v3308, %v4031
    %v4033 = vand.u32 %v4032, 4294901760
    %4034 = vmatprep.mubr.f32.mxu0 %v4033
    %v4035 = vand.u32 %v3306, 4294901760
    %v4036 = vsub.f32 %v3306, %v4035
    %v4037 = vand.u32 %v4036, 4294901760
    %4038 = vmatmul.mubr.f32.gmra.mrb[0].mxu0 %v4037
    %v4039 = vpop.f32.mrb[0].mxu0
    %v4040 = vadd.f32 %v3903, %v4039
    %v4041 = vpop.f32.mrb[0].mxu0
    %v4042 = vand.u32 %v3312, 4294901760
    %v4043 = vsub.f32 %v3312, %v4042
    %v4044 = vand.u32 %v4043, 4294901760
    %4045 = vmatprep.mubr.f32.mxu0 %v4044
    %v4046 = vand.u32 %v3310, 4294901760
    %v4047 = vsub.f32 %v3310, %v4046
    %v4048 = vand.u32 %v4047, 4294901760
    %4049 = vmatmul.mubr.f32.gmra.mrb[0].mxu0 %v4048
    %v4050 = vpop.f32.mrb[0].mxu0
    %v4051 = vadd.f32 %v3912, %v4050
    %v4052 = vpop.f32.mrb[0].mxu0
    %v4053 = vand.u32 %v3316, 4294901760
    %v4054 = vsub.f32 %v3316, %v4053
    %v4055 = vand.u32 %v4054, 4294901760
    %4056 = vmatprep.mubr.f32.mxu0 %v4055
    %v4057 = vand.u32 %v3314, 4294901760
    %v4058 = vsub.f32 %v3314, %v4057
    %v4059 = vand.u32 %v4058, 4294901760
    %4060 = vmatmul.mubr.f32.gmra.mrb[0].mxu0 %v4059
    %v4061 = vpop.f32.mrb[0].mxu0
    %v4062 = vadd.f32 %v3921, %v4061
    %v4063 = vpop.f32.mrb[0].mxu0
    %4064 = vdwg.mxu0
    %4065 = vmatprep.subr.mxu0 0.0
    %v4066 = vand.u32 %v3317, 4294901760
    %v4067 = vsub.f32 %v3317, %v4066
    %v4068 = vand.u32 %v4067, 4294901760
    %4069 = vmatpush1.msra.mxu0 %v4068
    %4070 = vmatprep.subr.mxu0 0.0
    %v4071 = vand.u32 %v3318, 4294901760
    %v4072 = vsub.f32 %v3318, %v4071
    %v4073 = vand.u32 %v4072, 4294901760
    %4074 = vmatpush1.msra.mxu0 %v4073
    %4075 = vmatprep.subr.mxu0 0.0
    %v4076 = vand.u32 %v3319, 4294901760
    %v4077 = vsub.f32 %v3319, %v4076
    %v4078 = vand.u32 %v4077, 4294901760
    %4079 = vmatpush1.msra.mxu0 %v4078
    %4080 = vmatprep.subr.mxu0 0.0
    %v4081 = vand.u32 %v3320, 4294901760
    %v4082 = vsub.f32 %v3320, %v4081
    %v4083 = vand.u32 %v4082, 4294901760
    %4084 = vmatpush1.msra.mxu0 %v4083
    %4085 = vmatprep.subr.mxu0 0.0
    %v4086 = vand.u32 %v3321, 4294901760
    %v4087 = vsub.f32 %v3321, %v4086
    %v4088 = vand.u32 %v4087, 4294901760
    %4089 = vmatpush1.msra.mxu0 %v4088
    %4090 = vmatprep.subr.mxu0 0.0
    %v4091 = vand.u32 %v3322, 4294901760
    %v4092 = vsub.f32 %v3322, %v4091
    %v4093 = vand.u32 %v4092, 4294901760
    %4094 = vmatpush1.msra.mxu0 %v4093
    %4095 = vmatprep.subr.mxu0 0.0
    %v4096 = vand.u32 %v3323, 4294901760
    %v4097 = vsub.f32 %v3323, %v4096
    %v4098 = vand.u32 %v4097, 4294901760
    %4099 = vmatpush1.msra.mxu0 %v4098
    %4100 = vmatprep.subr.mxu0 0.0
    %v4101 = vand.u32 %v3324, 4294901760
    %v4102 = vsub.f32 %v3324, %v4101
    %v4103 = vand.u32 %v4102, 4294901760
    %4104 = vmatpush1.msra.mxu0 %v4103
    %4105 = vmatprep.subr.mxu0 0.0
    %v4106 = vand.u32 %v3325, 4294901760
    %v4107 = vsub.f32 %v3325, %v4106
    %v4108 = vand.u32 %v4107, 4294901760
    %4109 = vmatpush1.msra.mxu0 %v4108
    %4110 = vmatprep.subr.mxu0 0.0
    %v4111 = vand.u32 %v3326, 4294901760
    %v4112 = vsub.f32 %v3326, %v4111
    %v4113 = vand.u32 %v4112, 4294901760
    %4114 = vmatpush1.msra.mxu0 %v4113
    %4115 = vmatprep.subr.mxu0 0.0
    %v4116 = vand.u32 %v3327, 4294901760
    %v4117 = vsub.f32 %v3327, %v4116
    %v4118 = vand.u32 %v4117, 4294901760
    %4119 = vmatpush1.msra.mxu0 %v4118
    %4120 = vmatprep.subr.mxu0 0.0
    %v4121 = vand.u32 %v3328, 4294901760
    %v4122 = vsub.f32 %v3328, %v4121
    %v4123 = vand.u32 %v4122, 4294901760
    %4124 = vmatpush1.msra.mxu0 %v4123
    %4125 = vmatprep.subr.mxu0 0.0
    %v4126 = vand.u32 %v3329, 4294901760
    %v4127 = vsub.f32 %v3329, %v4126
    %v4128 = vand.u32 %v4127, 4294901760
    %4129 = vmatpush1.msra.mxu0 %v4128
    %4130 = vmatprep.subr.mxu0 0.0
    %v4131 = vand.u32 %v3330, 4294901760
    %v4132 = vsub.f32 %v3330, %v4131
    %v4133 = vand.u32 %v4132, 4294901760
    %4134 = vmatpush1.msra.mxu0 %v4133
    %4135 = vmatprep.subr.mxu0 0.0
    %v4136 = vand.u32 %v3331, 4294901760
    %v4137 = vsub.f32 %v3331, %v4136
    %v4138 = vand.u32 %v4137, 4294901760
    %4139 = vmatpush1.msra.mxu0 %v4138
    %4140 = vmatprep.subr.mxu0 0.0
    %v4141 = vand.u32 %v3332, 4294901760
    %v4142 = vsub.f32 %v3332, %v4141
    %v4143 = vand.u32 %v4142, 4294901760
    %4144 = vmatpush1.msra.mxu0 %v4143
    %4145 = vmatprep.subr.mxu0 0.0
    %v4146 = vand.u32 %v3333, 4294901760
    %v4147 = vsub.f32 %v3333, %v4146
    %v4148 = vand.u32 %v4147, 4294901760
    %4149 = vmatpush1.msra.mxu0 %v4148
    %4150 = vmatprep.subr.mxu0 0.0
    %v4151 = vand.u32 %v3334, 4294901760
    %v4152 = vsub.f32 %v3334, %v4151
    %v4153 = vand.u32 %v4152, 4294901760
    %4154 = vmatpush1.msra.mxu0 %v4153
    %4155 = vmatprep.subr.mxu0 0.0
    %v4156 = vand.u32 %v3335, 4294901760
    %v4157 = vsub.f32 %v3335, %v4156
    %v4158 = vand.u32 %v4157, 4294901760
    %4159 = vmatpush1.msra.mxu0 %v4158
    %4160 = vmatprep.subr.mxu0 0.0
    %v4161 = vand.u32 %v3336, 4294901760
    %v4162 = vsub.f32 %v3336, %v4161
    %v4163 = vand.u32 %v4162, 4294901760
    %4164 = vmatpush1.msra.mxu0 %v4163
    %4165 = vmatprep.subr.mxu0 0.0
    %v4166 = vand.u32 %v3337, 4294901760
    %v4167 = vsub.f32 %v3337, %v4166
    %v4168 = vand.u32 %v4167, 4294901760
    %4169 = vmatpush1.msra.mxu0 %v4168
    %4170 = vmatprep.subr.mxu0 0.0
    %v4171 = vand.u32 %v3338, 4294901760
    %v4172 = vsub.f32 %v3338, %v4171
    %v4173 = vand.u32 %v4172, 4294901760
    %4174 = vmatpush1.msra.mxu0 %v4173
    %4175 = vmatprep.subr.mxu0 0.0
    %v4176 = vand.u32 %v3339, 4294901760
    %v4177 = vsub.f32 %v3339, %v4176
    %v4178 = vand.u32 %v4177, 4294901760
    %4179 = vmatpush1.msra.mxu0 %v4178
    %4180 = vmatprep.subr.mxu0 0.0
    %v4181 = vand.u32 %v3340, 4294901760
    %v4182 = vsub.f32 %v3340, %v4181
    %v4183 = vand.u32 %v4182, 4294901760
    %4184 = vmatpush1.msra.mxu0 %v4183
    %4185 = vmatprep.subr.mxu0 0.0
    %v4186 = vand.u32 %v3341, 4294901760
    %v4187 = vsub.f32 %v3341, %v4186
    %v4188 = vand.u32 %v4187, 4294901760
    %4189 = vmatpush1.msra.mxu0 %v4188
    %4190 = vmatprep.subr.mxu0 0.0
    %v4191 = vand.u32 %v3342, 4294901760
    %v4192 = vsub.f32 %v3342, %v4191
    %v4193 = vand.u32 %v4192, 4294901760
    %4194 = vmatpush1.msra.mxu0 %v4193
    %4195 = vmatprep.subr.mxu0 0.0
    %v4196 = vand.u32 %v3343, 4294901760
    %v4197 = vsub.f32 %v3343, %v4196
    %v4198 = vand.u32 %v4197, 4294901760
    %4199 = vmatpush1.msra.mxu0 %v4198
    %4200 = vmatprep.subr.mxu0 0.0
    %v4201 = vand.u32 %v3344, 4294901760
    %v4202 = vsub.f32 %v3344, %v4201
    %v4203 = vand.u32 %v4202, 4294901760
    %4204 = vmatpush1.msra.mxu0 %v4203
    %4205 = vmatprep.subr.mxu0 0.0
    %v4206 = vand.u32 %v3345, 4294901760
    %v4207 = vsub.f32 %v3345, %v4206
    %v4208 = vand.u32 %v4207, 4294901760
    %4209 = vmatpush1.msra.mxu0 %v4208
    %4210 = vmatprep.subr.mxu0 0.0
    %v4211 = vand.u32 %v3346, 4294901760
    %v4212 = vsub.f32 %v3346, %v4211
    %v4213 = vand.u32 %v4212, 4294901760
    %4214 = vmatpush1.msra.mxu0 %v4213
    %4215 = vmatprep.subr.mxu0 0.0
    %v4216 = vand.u32 %v3347, 4294901760
    %v4217 = vsub.f32 %v3347, %v4216
    %v4218 = vand.u32 %v4217, 4294901760
    %4219 = vmatpush1.msra.mxu0 %v4218
    %4220 = vmatprep.subr.mxu0 0.0
    %v4221 = vand.u32 %v3348, 4294901760
    %v4222 = vsub.f32 %v3348, %v4221
    %v4223 = vand.u32 %v4222, 4294901760
    %4224 = vmatpush1.msra.mxu0 %v4223
    %v4225 = vand.u32 %v3304, 4294901760
    %4226 = vmatprep.mubr.f32.mxu0 %v4225
    %v4227 = vand.u32 %v3302, 4294901760
    %4228 = vmatmul.mubr.f32.gmra.mrb[0].mxu0 %v4227
    %v4229 = vpop.f32.mrb[0].mxu0
    %v4230 = vadd.f32 %v4029, %v4229
    %v4231 = vpop.f32.mrb[0].mxu0
    %v4232 = vand.u32 %v3308, 4294901760
    %4233 = vmatprep.mubr.f32.mxu0 %v4232
    %v4234 = vand.u32 %v3306, 4294901760
    %4235 = vmatmul.mubr.f32.gmra.mrb[0].mxu0 %v4234
    %v4236 = vpop.f32.mrb[0].mxu0
    %v4237 = vadd.f32 %v4040, %v4236
    %v4238 = vpop.f32.mrb[0].mxu0
    %v4239 = vand.u32 %v3312, 4294901760
    %4240 = vmatprep.mubr.f32.mxu0 %v4239
    %v4241 = vand.u32 %v3310, 4294901760
    %4242 = vmatmul.mubr.f32.gmra.mrb[0].mxu0 %v4241
    %v4243 = vpop.f32.mrb[0].mxu0
    %v4244 = vadd.f32 %v4051, %v4243
    %v4245 = vpop.f32.mrb[0].mxu0
    %v4246 = vand.u32 %v3316, 4294901760
    %4247 = vmatprep.mubr.f32.mxu0 %v4246
    %v4248 = vand.u32 %v3314, 4294901760
    %4249 = vmatmul.mubr.f32.gmra.mrb[0].mxu0 %v4248
    %v4250 = vpop.f32.mrb[0].mxu0
    %v4251 = vadd.f32 %v4062, %v4250
    %v4252 = vpop.f32.mrb[0].mxu0
    %4253 = vdwg.mxu0
    %4254 = vmatprep.subr.mxu0 0.0
    %v4255 = vand.u32 %v3317, 4294901760
    %4256 = vmatpush1.msra.mxu0 %v4255
    %4257 = vmatprep.subr.mxu0 0.0
    %v4258 = vand.u32 %v3318, 4294901760
    %4259 = vmatpush1.msra.mxu0 %v4258
    %4260 = vmatprep.subr.mxu0 0.0
    %v4261 = vand.u32 %v3319, 4294901760
    %4262 = vmatpush1.msra.mxu0 %v4261
    %4263 = vmatprep.subr.mxu0 0.0
    %v4264 = vand.u32 %v3320, 4294901760
    %4265 = vmatpush1.msra.mxu0 %v4264
    %4266 = vmatprep.subr.mxu0 0.0
    %v4267 = vand.u32 %v3321, 4294901760
    %4268 = vmatpush1.msra.mxu0 %v4267
    %4269 = vmatprep.subr.mxu0 0.0
    %v4270 = vand.u32 %v3322, 4294901760
    %4271 = vmatpush1.msra.mxu0 %v4270
    %4272 = vmatprep.subr.mxu0 0.0
    %v4273 = vand.u32 %v3323, 4294901760
    %4274 = vmatpush1.msra.mxu0 %v4273
    %4275 = vmatprep.subr.mxu0 0.0
    %v4276 = vand.u32 %v3324, 4294901760
    %4277 = vmatpush1.msra.mxu0 %v4276
    %4278 = vmatprep.subr.mxu0 0.0
    %v4279 = vand.u32 %v3325, 4294901760
    %4280 = vmatpush1.msra.mxu0 %v4279
    %4281 = vmatprep.subr.mxu0 0.0
    %v4282 = vand.u32 %v3326, 4294901760
    %4283 = vmatpush1.msra.mxu0 %v4282
    %4284 = vmatprep.subr.mxu0 0.0
    %v4285 = vand.u32 %v3327, 4294901760
    %4286 = vmatpush1.msra.mxu0 %v4285
    %4287 = vmatprep.subr.mxu0 0.0
    %v4288 = vand.u32 %v3328, 4294901760
    %4289 = vmatpush1.msra.mxu0 %v4288
    %4290 = vmatprep.subr.mxu0 0.0
    %v4291 = vand.u32 %v3329, 4294901760
    %4292 = vmatpush1.msra.mxu0 %v4291
    %4293 = vmatprep.subr.mxu0 0.0
    %v4294 = vand.u32 %v3330, 4294901760
    %4295 = vmatpush1.msra.mxu0 %v4294
    %4296 = vmatprep.subr.mxu0 0.0
    %v4297 = vand.u32 %v3331, 4294901760
    %4298 = vmatpush1.msra.mxu0 %v4297
    %4299 = vmatprep.subr.mxu0 0.0
    %v4300 = vand.u32 %v3332, 4294901760
    %4301 = vmatpush1.msra.mxu0 %v4300
    %4302 = vmatprep.subr.mxu0 0.0
    %v4303 = vand.u32 %v3333, 4294901760
    %4304 = vmatpush1.msra.mxu0 %v4303
    %4305 = vmatprep.subr.mxu0 0.0
    %v4306 = vand.u32 %v3334, 4294901760
    %4307 = vmatpush1.msra.mxu0 %v4306
    %4308 = vmatprep.subr.mxu0 0.0
    %v4309 = vand.u32 %v3335, 4294901760
    %4310 = vmatpush1.msra.mxu0 %v4309
    %4311 = vmatprep.subr.mxu0 0.0
    %v4312 = vand.u32 %v3336, 4294901760
    %4313 = vmatpush1.msra.mxu0 %v4312
    %4314 = vmatprep.subr.mxu0 0.0
    %v4315 = vand.u32 %v3337, 4294901760
    %4316 = vmatpush1.msra.mxu0 %v4315
    %4317 = vmatprep.subr.mxu0 0.0
    %v4318 = vand.u32 %v3338, 4294901760
    %4319 = vmatpush1.msra.mxu0 %v4318
    %4320 = vmatprep.subr.mxu0 0.0
    %v4321 = vand.u32 %v3339, 4294901760
    %4322 = vmatpush1.msra.mxu0 %v4321
    %4323 = vmatprep.subr.mxu0 0.0
    %v4324 = vand.u32 %v3340, 4294901760
    %4325 = vmatpush1.msra.mxu0 %v4324
    %4326 = vmatprep.subr.mxu0 0.0
    %v4327 = vand.u32 %v3341, 4294901760
    %4328 = vmatpush1.msra.mxu0 %v4327
    %4329 = vmatprep.subr.mxu0 0.0
    %v4330 = vand.u32 %v3342, 4294901760
    %4331 = vmatpush1.msra.mxu0 %v4330
    %4332 = vmatprep.subr.mxu0 0.0
    %v4333 = vand.u32 %v3343, 4294901760
    %4334 = vmatpush1.msra.mxu0 %v4333
    %4335 = vmatprep.subr.mxu0 0.0
    %v4336 = vand.u32 %v3344, 4294901760
    %4337 = vmatpush1.msra.mxu0 %v4336
    %4338 = vmatprep.subr.mxu0 0.0
    %v4339 = vand.u32 %v3345, 4294901760
    %4340 = vmatpush1.msra.mxu0 %v4339
    %4341 = vmatprep.subr.mxu0 0.0
    %v4342 = vand.u32 %v3346, 4294901760
    %4343 = vmatpush1.msra.mxu0 %v4342
    %4344 = vmatprep.subr.mxu0 0.0
    %v4345 = vand.u32 %v3347, 4294901760
    %4346 = vmatpush1.msra.mxu0 %v4345
    %4347 = vmatprep.subr.mxu0 0.0
    %v4348 = vand.u32 %v3348, 4294901760
    %4349 = vmatpush1.msra.mxu0 %v4348
    %v4350 = vand.u32 %v3304, 4294901760
    %4351 = vmatprep.mubr.f32.mxu0 %v4350
    %v4352 = vand.u32 %v3302, 4294901760
    %4353 = vmatmul.mubr.f32.gmra.mrb[0].mxu0 %v4352
    %v4354 = vpop.f32.mrb[0].mxu0
    %v4355 = vadd.f32 %v4230, %v4354
    %v4356 = vpop.f32.mrb[0].mxu0
    %v4357 = vand.u32 %v3308, 4294901760
    %4358 = vmatprep.mubr.f32.mxu0 %v4357
    %v4359 = vand.u32 %v3306, 4294901760
    %4360 = vmatmul.mubr.f32.gmra.mrb[0].mxu0 %v4359
    %v4361 = vpop.f32.mrb[0].mxu0
    %v4362 = vadd.f32 %v4237, %v4361
    %v4363 = vpop.f32.mrb[0].mxu0
    %v4364 = vand.u32 %v3312, 4294901760
    %4365 = vmatprep.mubr.f32.mxu0 %v4364
    %v4366 = vand.u32 %v3310, 4294901760
    %4367 = vmatmul.mubr.f32.gmra.mrb[0].mxu0 %v4366
    %v4368 = vpop.f32.mrb[0].mxu0
    %v4369 = vadd.f32 %v4244, %v4368
    %v4370 = vpop.f32.mrb[0].mxu0
    %v4371 = vand.u32 %v3316, 4294901760
    %4372 = vmatprep.mubr.f32.mxu0 %v4371
    %v4373 = vand.u32 %v3314, 4294901760
    %4374 = vmatmul.mubr.f32.gmra.mrb[0].mxu0 %v4373
    %v4375 = vpop.f32.mrb[0].mxu0
    %v4376 = vadd.f32 %v4251, %v4375
    %v4377 = vpop.f32.mrb[0].mxu0
    %4378 = vdwg.mxu0
    %v4379 = vrcp.pop %v4355
    %v4380 = vrcp.pop %v4362
    %v4381 = vrcp.pop %v4369
    %v4382 = vrcp.pop %v4376
    %v4383 = vmul.f32 %v4355, %v4379
    %v4384 = vmul.f32 %v4362, %v4380
    %v4385 = vmul.f32 %v4369, %v4381
    %v4386 = vmul.f32 %v4376, %v4382
    %v4387 = vsub.f32 2.0, %v4383
    %v4388 = vsub.f32 2.0, %v4384
    %v4389 = vsub.f32 2.0, %v4385
    %v4390 = vsub.f32 2.0, %v4386
    %v4391 = vmul.f32 %v4379, %v4387
    %v4392 = vmul.f32 %v4380, %v4388
    %v4393 = vmul.f32 %v4381, %v4389
    %v4394 = vmul.f32 %v4382, %v4390
    %4399 = vrot.lane.b32.xlu0 %v4391, 32
    %v4400 = vpop.permute.xlu0 %4399
    %4401 = vrot.lane.b32.xlu0 %v4392, 32
    %v4402 = vpop.permute.xlu0 %4401
    %4403 = vrot.lane.b32.xlu0 %v4393, 32
    %v4404 = vpop.permute.xlu0 %4403
    %4405 = vrot.lane.b32.xlu0 %v4394, 32
    %v4406 = vpop.permute.xlu0 %4405
    %4411 = vrot.lane.b32.xlu0 %v4391, 64
    %v4412 = vpop.permute.xlu0 %4411
    %4413 = vrot.lane.b32.xlu0 %v4392, 64
    %v4414 = vpop.permute.xlu0 %4413
    %4415 = vrot.lane.b32.xlu0 %v4393, 64
    %v4416 = vpop.permute.xlu0 %4415
    %4417 = vrot.lane.b32.xlu0 %v4394, 64
    %v4418 = vpop.permute.xlu0 %4417
    %4423 = vrot.lane.b32.xlu0 %v4391, 96
    %v4424 = vpop.permute.xlu0 %4423
    %4425 = vrot.lane.b32.xlu0 %v4392, 96
    %v4426 = vpop.permute.xlu0 %4425
    %4427 = vrot.lane.b32.xlu0 %v4393, 96
    %v4428 = vpop.permute.xlu0 %4427
    %4429 = vrot.lane.b32.xlu0 %v4394, 96
    %v4430 = vpop.permute.xlu0 %4429
    %v4435 = vsel %vm65, %v4391, %v4400
    %v4436 = vsel %vm65, %v4392, %v4402
    %v4437 = vsel %vm65, %v4393, %v4404
    %v4438 = vsel %vm65, %v4394, %v4406
    %v4439 = vsel %vm736, %v4435, %v4412
    %v4440 = vsel %vm736, %v4436, %v4414
    %v4441 = vsel %vm736, %v4437, %v4416
    %v4442 = vsel %vm736, %v4438, %v4418
    %v4443 = vsel %vm741, %v4439, %v4424
    %v4444 = vsel %vm741, %v4440, %v4426
    %v4445 = vsel %vm741, %v4441, %v4428
    %v4446 = vsel %vm741, %v4442, %v4430
    %v4447 = vmul.f32 %v1675, 0.5
    %v4448 = vmul.f32 %v1678, 0.5
    %v4449 = vtanh.pop %v4447
    %v4450 = vtanh.pop %v4448
    %v4451 = vadd.f32 %v4449, 1.0
    %v4452 = vadd.f32 %v4450, 1.0
    %v4453 = vmul.f32 %v4451, 0.5
    %v4454 = vmul.f32 %v4452, 0.5
    %v4455 = vmul.f32 %v3302, %v4443
    %v4456 = vmul.f32 %v3304, %v4443
    %v4457 = vmul.f32 %v3306, %v4444
    %v4458 = vmul.f32 %v3308, %v4444
    %v4459 = vmul.f32 %v3310, %v4445
    %v4460 = vmul.f32 %v3312, %v4445
    %v4461 = vmul.f32 %v3314, %v4446
    %v4462 = vmul.f32 %v3316, %v4446
    %v4463 = vmul.f32 %v4455, %v4453
    %v4464 = vmul.f32 %v4456, %v4454
    %v4465 = vmul.f32 %v4457, %v4453
    %v4466 = vmul.f32 %v4458, %v4454
    %v4467 = vmul.f32 %v4459, %v4453
    %v4468 = vmul.f32 %v4460, %v4454
    %v4469 = vmul.f32 %v4461, %v4453
    %v4470 = vmul.f32 %v4462, %v4454
    %v4471 = vmul.f32 %v4463, %v1627
    %v4472 = vmul.f32 %v4464, %v1630
    %v4473 = vmul.f32 %v4465, %v1627
    %v4474 = vmul.f32 %v4466, %v1630
    %v4475 = vmul.f32 %v4467, %v1627
    %v4476 = vmul.f32 %v4468, %v1630
    %v4477 = vmul.f32 %v4469, %v1627
    %v4478 = vmul.f32 %v4470, %v1630
    %4479 = vmatprep.subr.mxu0 0.0
    %v4480 = vand.u32 %v3317, 4294901760
    %4481 = vmatpush1.msra.mxu0 %v4480
    %4482 = vmatprep.subr.mxu0 0.0
    %v4483 = vand.u32 %v3318, 4294901760
    %4484 = vmatpush1.msra.mxu0 %v4483
    %4485 = vmatprep.subr.mxu0 0.0
    %v4486 = vand.u32 %v3319, 4294901760
    %4487 = vmatpush1.msra.mxu0 %v4486
    %4488 = vmatprep.subr.mxu0 0.0
    %v4489 = vand.u32 %v3320, 4294901760
    %4490 = vmatpush1.msra.mxu0 %v4489
    %4491 = vmatprep.subr.mxu0 0.0
    %v4492 = vand.u32 %v3321, 4294901760
    %4493 = vmatpush1.msra.mxu0 %v4492
    %4494 = vmatprep.subr.mxu0 0.0
    %v4495 = vand.u32 %v3322, 4294901760
    %4496 = vmatpush1.msra.mxu0 %v4495
    %4497 = vmatprep.subr.mxu0 0.0
    %v4498 = vand.u32 %v3323, 4294901760
    %4499 = vmatpush1.msra.mxu0 %v4498
    %4500 = vmatprep.subr.mxu0 0.0
    %v4501 = vand.u32 %v3324, 4294901760
    %4502 = vmatpush1.msra.mxu0 %v4501
    %4503 = vmatprep.subr.mxu0 0.0
    %v4504 = vand.u32 %v3325, 4294901760
    %4505 = vmatpush1.msra.mxu0 %v4504
    %4506 = vmatprep.subr.mxu0 0.0
    %v4507 = vand.u32 %v3326, 4294901760
    %4508 = vmatpush1.msra.mxu0 %v4507
    %4509 = vmatprep.subr.mxu0 0.0
    %v4510 = vand.u32 %v3327, 4294901760
    %4511 = vmatpush1.msra.mxu0 %v4510
    %4512 = vmatprep.subr.mxu0 0.0
    %v4513 = vand.u32 %v3328, 4294901760
    %4514 = vmatpush1.msra.mxu0 %v4513
    %4515 = vmatprep.subr.mxu0 0.0
    %v4516 = vand.u32 %v3329, 4294901760
    %4517 = vmatpush1.msra.mxu0 %v4516
    %4518 = vmatprep.subr.mxu0 0.0
    %v4519 = vand.u32 %v3330, 4294901760
    %4520 = vmatpush1.msra.mxu0 %v4519
    %4521 = vmatprep.subr.mxu0 0.0
    %v4522 = vand.u32 %v3331, 4294901760
    %4523 = vmatpush1.msra.mxu0 %v4522
    %4524 = vmatprep.subr.mxu0 0.0
    %v4525 = vand.u32 %v3332, 4294901760
    %4526 = vmatpush1.msra.mxu0 %v4525
    %4527 = vmatprep.subr.mxu0 0.0
    %v4528 = vand.u32 %v3333, 4294901760
    %4529 = vmatpush1.msra.mxu0 %v4528
    %4530 = vmatprep.subr.mxu0 0.0
    %v4531 = vand.u32 %v3334, 4294901760
    %4532 = vmatpush1.msra.mxu0 %v4531
    %4533 = vmatprep.subr.mxu0 0.0
    %v4534 = vand.u32 %v3335, 4294901760
    %4535 = vmatpush1.msra.mxu0 %v4534
    %4536 = vmatprep.subr.mxu0 0.0
    %v4537 = vand.u32 %v3336, 4294901760
    %4538 = vmatpush1.msra.mxu0 %v4537
    %4539 = vmatprep.subr.mxu0 0.0
    %v4540 = vand.u32 %v3337, 4294901760
    %4541 = vmatpush1.msra.mxu0 %v4540
    %4542 = vmatprep.subr.mxu0 0.0
    %v4543 = vand.u32 %v3338, 4294901760
    %4544 = vmatpush1.msra.mxu0 %v4543
    %4545 = vmatprep.subr.mxu0 0.0
    %v4546 = vand.u32 %v3339, 4294901760
    %4547 = vmatpush1.msra.mxu0 %v4546
    %4548 = vmatprep.subr.mxu0 0.0
    %v4549 = vand.u32 %v3340, 4294901760
    %4550 = vmatpush1.msra.mxu0 %v4549
    %4551 = vmatprep.subr.mxu0 0.0
    %v4552 = vand.u32 %v3341, 4294901760
    %4553 = vmatpush1.msra.mxu0 %v4552
    %4554 = vmatprep.subr.mxu0 0.0
    %v4555 = vand.u32 %v3342, 4294901760
    %4556 = vmatpush1.msra.mxu0 %v4555
    %4557 = vmatprep.subr.mxu0 0.0
    %v4558 = vand.u32 %v3343, 4294901760
    %4559 = vmatpush1.msra.mxu0 %v4558
    %4560 = vmatprep.subr.mxu0 0.0
    %v4561 = vand.u32 %v3344, 4294901760
    %4562 = vmatpush1.msra.mxu0 %v4561
    %4563 = vmatprep.subr.mxu0 0.0
    %v4564 = vand.u32 %v3345, 4294901760
    %4565 = vmatpush1.msra.mxu0 %v4564
    %4566 = vmatprep.subr.mxu0 0.0
    %v4567 = vand.u32 %v3346, 4294901760
    %4568 = vmatpush1.msra.mxu0 %v4567
    %4569 = vmatprep.subr.mxu0 0.0
    %v4570 = vand.u32 %v3347, 4294901760
    %4571 = vmatpush1.msra.mxu0 %v4570
    %4572 = vmatprep.subr.mxu0 0.0
    %v4573 = vand.u32 %v3348, 4294901760
    %4574 = vmatpush1.msra.mxu0 %v4573
    %v4575 = vand.u32 %v4472, 4294901760
    %v4576 = vsub.f32 %v4472, %v4575
    %v4577 = vand.u32 %v4576, 4294901760
    %v4578 = vsub.f32 %v4576, %v4577
    %v4579 = vand.u32 %v4578, 4294901760
    %4580 = vmatprep.mubr.f32.mxu0 %v4579
    %v4581 = vand.u32 %v4471, 4294901760
    %v4582 = vsub.f32 %v4471, %v4581
    %v4583 = vand.u32 %v4582, 4294901760
    %v4584 = vsub.f32 %v4582, %v4583
    %v4585 = vand.u32 %v4584, 4294901760
    %4586 = vmatmul.mubr.f32.gmra.mrb[0].mxu0 %v4585
    %v4587 = vpop.f32.mrb[0].mxu0
    %v4588 = vadd.f32 0.0, %v4587
    %v4589 = vpop.f32.mrb[0].mxu0
    %v4590 = vand.u32 %v4474, 4294901760
    %v4591 = vsub.f32 %v4474, %v4590
    %v4592 = vand.u32 %v4591, 4294901760
    %v4593 = vsub.f32 %v4591, %v4592
    %v4594 = vand.u32 %v4593, 4294901760
    %4595 = vmatprep.mubr.f32.mxu0 %v4594
    %v4596 = vand.u32 %v4473, 4294901760
    %v4597 = vsub.f32 %v4473, %v4596
    %v4598 = vand.u32 %v4597, 4294901760
    %v4599 = vsub.f32 %v4597, %v4598
    %v4600 = vand.u32 %v4599, 4294901760
    %4601 = vmatmul.mubr.f32.gmra.mrb[0].mxu0 %v4600
    %v4602 = vpop.f32.mrb[0].mxu0
    %v4603 = vadd.f32 0.0, %v4602
    %v4604 = vpop.f32.mrb[0].mxu0
    %v4605 = vand.u32 %v4476, 4294901760
    %v4606 = vsub.f32 %v4476, %v4605
    %v4607 = vand.u32 %v4606, 4294901760
    %v4608 = vsub.f32 %v4606, %v4607
    %v4609 = vand.u32 %v4608, 4294901760
    %4610 = vmatprep.mubr.f32.mxu0 %v4609
    %v4611 = vand.u32 %v4475, 4294901760
    %v4612 = vsub.f32 %v4475, %v4611
    %v4613 = vand.u32 %v4612, 4294901760
    %v4614 = vsub.f32 %v4612, %v4613
    %v4615 = vand.u32 %v4614, 4294901760
    %4616 = vmatmul.mubr.f32.gmra.mrb[0].mxu0 %v4615
    %v4617 = vpop.f32.mrb[0].mxu0
    %v4618 = vadd.f32 0.0, %v4617
    %v4619 = vpop.f32.mrb[0].mxu0
    %v4620 = vand.u32 %v4478, 4294901760
    %v4621 = vsub.f32 %v4478, %v4620
    %v4622 = vand.u32 %v4621, 4294901760
    %v4623 = vsub.f32 %v4621, %v4622
    %v4624 = vand.u32 %v4623, 4294901760
    %4625 = vmatprep.mubr.f32.mxu0 %v4624
    %v4626 = vand.u32 %v4477, 4294901760
    %v4627 = vsub.f32 %v4477, %v4626
    %v4628 = vand.u32 %v4627, 4294901760
    %v4629 = vsub.f32 %v4627, %v4628
    %v4630 = vand.u32 %v4629, 4294901760
    %4631 = vmatmul.mubr.f32.gmra.mrb[0].mxu0 %v4630
    %v4632 = vpop.f32.mrb[0].mxu0
    %v4633 = vadd.f32 0.0, %v4632
    %v4634 = vpop.f32.mrb[0].mxu0
    %4635 = vdwg.mxu0
    %4636 = vmatprep.subr.mxu0 0.0
    %v4637 = vand.u32 %v3317, 4294901760
    %v4638 = vsub.f32 %v3317, %v4637
    %v4639 = vand.u32 %v4638, 4294901760
    %v4640 = vsub.f32 %v4638, %v4639
    %v4641 = vand.u32 %v4640, 4294901760
    %4642 = vmatpush1.msra.mxu0 %v4641
    %4643 = vmatprep.subr.mxu0 0.0
    %v4644 = vand.u32 %v3318, 4294901760
    %v4645 = vsub.f32 %v3318, %v4644
    %v4646 = vand.u32 %v4645, 4294901760
    %v4647 = vsub.f32 %v4645, %v4646
    %v4648 = vand.u32 %v4647, 4294901760
    %4649 = vmatpush1.msra.mxu0 %v4648
    %4650 = vmatprep.subr.mxu0 0.0
    %v4651 = vand.u32 %v3319, 4294901760
    %v4652 = vsub.f32 %v3319, %v4651
    %v4653 = vand.u32 %v4652, 4294901760
    %v4654 = vsub.f32 %v4652, %v4653
    %v4655 = vand.u32 %v4654, 4294901760
    %4656 = vmatpush1.msra.mxu0 %v4655
    %4657 = vmatprep.subr.mxu0 0.0
    %v4658 = vand.u32 %v3320, 4294901760
    %v4659 = vsub.f32 %v3320, %v4658
    %v4660 = vand.u32 %v4659, 4294901760
    %v4661 = vsub.f32 %v4659, %v4660
    %v4662 = vand.u32 %v4661, 4294901760
    %4663 = vmatpush1.msra.mxu0 %v4662
    %4664 = vmatprep.subr.mxu0 0.0
    %v4665 = vand.u32 %v3321, 4294901760
    %v4666 = vsub.f32 %v3321, %v4665
    %v4667 = vand.u32 %v4666, 4294901760
    %v4668 = vsub.f32 %v4666, %v4667
    %v4669 = vand.u32 %v4668, 4294901760
    %4670 = vmatpush1.msra.mxu0 %v4669
    %4671 = vmatprep.subr.mxu0 0.0
    %v4672 = vand.u32 %v3322, 4294901760
    %v4673 = vsub.f32 %v3322, %v4672
    %v4674 = vand.u32 %v4673, 4294901760
    %v4675 = vsub.f32 %v4673, %v4674
    %v4676 = vand.u32 %v4675, 4294901760
    %4677 = vmatpush1.msra.mxu0 %v4676
    %4678 = vmatprep.subr.mxu0 0.0
    %v4679 = vand.u32 %v3323, 4294901760
    %v4680 = vsub.f32 %v3323, %v4679
    %v4681 = vand.u32 %v4680, 4294901760
    %v4682 = vsub.f32 %v4680, %v4681
    %v4683 = vand.u32 %v4682, 4294901760
    %4684 = vmatpush1.msra.mxu0 %v4683
    %4685 = vmatprep.subr.mxu0 0.0
    %v4686 = vand.u32 %v3324, 4294901760
    %v4687 = vsub.f32 %v3324, %v4686
    %v4688 = vand.u32 %v4687, 4294901760
    %v4689 = vsub.f32 %v4687, %v4688
    %v4690 = vand.u32 %v4689, 4294901760
    %4691 = vmatpush1.msra.mxu0 %v4690
    %4692 = vmatprep.subr.mxu0 0.0
    %v4693 = vand.u32 %v3325, 4294901760
    %v4694 = vsub.f32 %v3325, %v4693
    %v4695 = vand.u32 %v4694, 4294901760
    %v4696 = vsub.f32 %v4694, %v4695
    %v4697 = vand.u32 %v4696, 4294901760
    %4698 = vmatpush1.msra.mxu0 %v4697
    %4699 = vmatprep.subr.mxu0 0.0
    %v4700 = vand.u32 %v3326, 4294901760
    %v4701 = vsub.f32 %v3326, %v4700
    %v4702 = vand.u32 %v4701, 4294901760
    %v4703 = vsub.f32 %v4701, %v4702
    %v4704 = vand.u32 %v4703, 4294901760
    %4705 = vmatpush1.msra.mxu0 %v4704
    %4706 = vmatprep.subr.mxu0 0.0
    %v4707 = vand.u32 %v3327, 4294901760
    %v4708 = vsub.f32 %v3327, %v4707
    %v4709 = vand.u32 %v4708, 4294901760
    %v4710 = vsub.f32 %v4708, %v4709
    %v4711 = vand.u32 %v4710, 4294901760
    %4712 = vmatpush1.msra.mxu0 %v4711
    %4713 = vmatprep.subr.mxu0 0.0
    %v4714 = vand.u32 %v3328, 4294901760
    %v4715 = vsub.f32 %v3328, %v4714
    %v4716 = vand.u32 %v4715, 4294901760
    %v4717 = vsub.f32 %v4715, %v4716
    %v4718 = vand.u32 %v4717, 4294901760
    %4719 = vmatpush1.msra.mxu0 %v4718
    %4720 = vmatprep.subr.mxu0 0.0
    %v4721 = vand.u32 %v3329, 4294901760
    %v4722 = vsub.f32 %v3329, %v4721
    %v4723 = vand.u32 %v4722, 4294901760
    %v4724 = vsub.f32 %v4722, %v4723
    %v4725 = vand.u32 %v4724, 4294901760
    %4726 = vmatpush1.msra.mxu0 %v4725
    %4727 = vmatprep.subr.mxu0 0.0
    %v4728 = vand.u32 %v3330, 4294901760
    %v4729 = vsub.f32 %v3330, %v4728
    %v4730 = vand.u32 %v4729, 4294901760
    %v4731 = vsub.f32 %v4729, %v4730
    %v4732 = vand.u32 %v4731, 4294901760
    %4733 = vmatpush1.msra.mxu0 %v4732
    %4734 = vmatprep.subr.mxu0 0.0
    %v4735 = vand.u32 %v3331, 4294901760
    %v4736 = vsub.f32 %v3331, %v4735
    %v4737 = vand.u32 %v4736, 4294901760
    %v4738 = vsub.f32 %v4736, %v4737
    %v4739 = vand.u32 %v4738, 4294901760
    %4740 = vmatpush1.msra.mxu0 %v4739
    %4741 = vmatprep.subr.mxu0 0.0
    %v4742 = vand.u32 %v3332, 4294901760
    %v4743 = vsub.f32 %v3332, %v4742
    %v4744 = vand.u32 %v4743, 4294901760
    %v4745 = vsub.f32 %v4743, %v4744
    %v4746 = vand.u32 %v4745, 4294901760
    %4747 = vmatpush1.msra.mxu0 %v4746
    %4748 = vmatprep.subr.mxu0 0.0
    %v4749 = vand.u32 %v3333, 4294901760
    %v4750 = vsub.f32 %v3333, %v4749
    %v4751 = vand.u32 %v4750, 4294901760
    %v4752 = vsub.f32 %v4750, %v4751
    %v4753 = vand.u32 %v4752, 4294901760
    %4754 = vmatpush1.msra.mxu0 %v4753
    %4755 = vmatprep.subr.mxu0 0.0
    %v4756 = vand.u32 %v3334, 4294901760
    %v4757 = vsub.f32 %v3334, %v4756
    %v4758 = vand.u32 %v4757, 4294901760
    %v4759 = vsub.f32 %v4757, %v4758
    %v4760 = vand.u32 %v4759, 4294901760
    %4761 = vmatpush1.msra.mxu0 %v4760
    %4762 = vmatprep.subr.mxu0 0.0
    %v4763 = vand.u32 %v3335, 4294901760
    %v4764 = vsub.f32 %v3335, %v4763
    %v4765 = vand.u32 %v4764, 4294901760
    %v4766 = vsub.f32 %v4764, %v4765
    %v4767 = vand.u32 %v4766, 4294901760
    %4768 = vmatpush1.msra.mxu0 %v4767
    %4769 = vmatprep.subr.mxu0 0.0
    %v4770 = vand.u32 %v3336, 4294901760
    %v4771 = vsub.f32 %v3336, %v4770
    %v4772 = vand.u32 %v4771, 4294901760
    %v4773 = vsub.f32 %v4771, %v4772
    %v4774 = vand.u32 %v4773, 4294901760
    %4775 = vmatpush1.msra.mxu0 %v4774
    %4776 = vmatprep.subr.mxu0 0.0
    %v4777 = vand.u32 %v3337, 4294901760
    %v4778 = vsub.f32 %v3337, %v4777
    %v4779 = vand.u32 %v4778, 4294901760
    %v4780 = vsub.f32 %v4778, %v4779
    %v4781 = vand.u32 %v4780, 4294901760
    %4782 = vmatpush1.msra.mxu0 %v4781
    %4783 = vmatprep.subr.mxu0 0.0
    %v4784 = vand.u32 %v3338, 4294901760
    %v4785 = vsub.f32 %v3338, %v4784
    %v4786 = vand.u32 %v4785, 4294901760
    %v4787 = vsub.f32 %v4785, %v4786
    %v4788 = vand.u32 %v4787, 4294901760
    %4789 = vmatpush1.msra.mxu0 %v4788
    %4790 = vmatprep.subr.mxu0 0.0
    %v4791 = vand.u32 %v3339, 4294901760
    %v4792 = vsub.f32 %v3339, %v4791
    %v4793 = vand.u32 %v4792, 4294901760
    %v4794 = vsub.f32 %v4792, %v4793
    %v4795 = vand.u32 %v4794, 4294901760
    %4796 = vmatpush1.msra.mxu0 %v4795
    %4797 = vmatprep.subr.mxu0 0.0
    %v4798 = vand.u32 %v3340, 4294901760
    %v4799 = vsub.f32 %v3340, %v4798
    %v4800 = vand.u32 %v4799, 4294901760
    %v4801 = vsub.f32 %v4799, %v4800
    %v4802 = vand.u32 %v4801, 4294901760
    %4803 = vmatpush1.msra.mxu0 %v4802
    %4804 = vmatprep.subr.mxu0 0.0
    %v4805 = vand.u32 %v3341, 4294901760
    %v4806 = vsub.f32 %v3341, %v4805
    %v4807 = vand.u32 %v4806, 4294901760
    %v4808 = vsub.f32 %v4806, %v4807
    %v4809 = vand.u32 %v4808, 4294901760
    %4810 = vmatpush1.msra.mxu0 %v4809
    %4811 = vmatprep.subr.mxu0 0.0
    %v4812 = vand.u32 %v3342, 4294901760
    %v4813 = vsub.f32 %v3342, %v4812
    %v4814 = vand.u32 %v4813, 4294901760
    %v4815 = vsub.f32 %v4813, %v4814
    %v4816 = vand.u32 %v4815, 4294901760
    %4817 = vmatpush1.msra.mxu0 %v4816
    %4818 = vmatprep.subr.mxu0 0.0
    %v4819 = vand.u32 %v3343, 4294901760
    %v4820 = vsub.f32 %v3343, %v4819
    %v4821 = vand.u32 %v4820, 4294901760
    %v4822 = vsub.f32 %v4820, %v4821
    %v4823 = vand.u32 %v4822, 4294901760
    %4824 = vmatpush1.msra.mxu0 %v4823
    %4825 = vmatprep.subr.mxu0 0.0
    %v4826 = vand.u32 %v3344, 4294901760
    %v4827 = vsub.f32 %v3344, %v4826
    %v4828 = vand.u32 %v4827, 4294901760
    %v4829 = vsub.f32 %v4827, %v4828
    %v4830 = vand.u32 %v4829, 4294901760
    %4831 = vmatpush1.msra.mxu0 %v4830
    %4832 = vmatprep.subr.mxu0 0.0
    %v4833 = vand.u32 %v3345, 4294901760
    %v4834 = vsub.f32 %v3345, %v4833
    %v4835 = vand.u32 %v4834, 4294901760
    %v4836 = vsub.f32 %v4834, %v4835
    %v4837 = vand.u32 %v4836, 4294901760
    %4838 = vmatpush1.msra.mxu0 %v4837
    %4839 = vmatprep.subr.mxu0 0.0
    %v4840 = vand.u32 %v3346, 4294901760
    %v4841 = vsub.f32 %v3346, %v4840
    %v4842 = vand.u32 %v4841, 4294901760
    %v4843 = vsub.f32 %v4841, %v4842
    %v4844 = vand.u32 %v4843, 4294901760
    %4845 = vmatpush1.msra.mxu0 %v4844
    %4846 = vmatprep.subr.mxu0 0.0
    %v4847 = vand.u32 %v3347, 4294901760
    %v4848 = vsub.f32 %v3347, %v4847
    %v4849 = vand.u32 %v4848, 4294901760
    %v4850 = vsub.f32 %v4848, %v4849
    %v4851 = vand.u32 %v4850, 4294901760
    %4852 = vmatpush1.msra.mxu0 %v4851
    %4853 = vmatprep.subr.mxu0 0.0
    %v4854 = vand.u32 %v3348, 4294901760
    %v4855 = vsub.f32 %v3348, %v4854
    %v4856 = vand.u32 %v4855, 4294901760
    %v4857 = vsub.f32 %v4855, %v4856
    %v4858 = vand.u32 %v4857, 4294901760
    %4859 = vmatpush1.msra.mxu0 %v4858
    %v4860 = vand.u32 %v4472, 4294901760
    %4861 = vmatprep.mubr.f32.mxu0 %v4860
    %v4862 = vand.u32 %v4471, 4294901760
    %4863 = vmatmul.mubr.f32.gmra.mrb[0].mxu0 %v4862
    %v4864 = vpop.f32.mrb[0].mxu0
    %v4865 = vadd.f32 %v4588, %v4864
    %v4866 = vpop.f32.mrb[0].mxu0
    %v4867 = vand.u32 %v4474, 4294901760
    %4868 = vmatprep.mubr.f32.mxu0 %v4867
    %v4869 = vand.u32 %v4473, 4294901760
    %4870 = vmatmul.mubr.f32.gmra.mrb[0].mxu0 %v4869
    %v4871 = vpop.f32.mrb[0].mxu0
    %v4872 = vadd.f32 %v4603, %v4871
    %v4873 = vpop.f32.mrb[0].mxu0
    %v4874 = vand.u32 %v4476, 4294901760
    %4875 = vmatprep.mubr.f32.mxu0 %v4874
    %v4876 = vand.u32 %v4475, 4294901760
    %4877 = vmatmul.mubr.f32.gmra.mrb[0].mxu0 %v4876
    %v4878 = vpop.f32.mrb[0].mxu0
    %v4879 = vadd.f32 %v4618, %v4878
    %v4880 = vpop.f32.mrb[0].mxu0
    %v4881 = vand.u32 %v4478, 4294901760
    %4882 = vmatprep.mubr.f32.mxu0 %v4881
    %v4883 = vand.u32 %v4477, 4294901760
    %4884 = vmatmul.mubr.f32.gmra.mrb[0].mxu0 %v4883
    %v4885 = vpop.f32.mrb[0].mxu0
    %v4886 = vadd.f32 %v4633, %v4885
    %v4887 = vpop.f32.mrb[0].mxu0
    %4888 = vdwg.mxu0
    %4889 = vmatprep.subr.mxu0 0.0
    %v4890 = vand.u32 %v3317, 4294901760
    %v4891 = vsub.f32 %v3317, %v4890
    %4892 = vmatpush1.msra.mxu0 %v4891
    %4893 = vmatprep.subr.mxu0 0.0
    %v4894 = vand.u32 %v3318, 4294901760
    %v4895 = vsub.f32 %v3318, %v4894
    %4896 = vmatpush1.msra.mxu0 %v4895
    %4897 = vmatprep.subr.mxu0 0.0
    %v4898 = vand.u32 %v3319, 4294901760
    %v4899 = vsub.f32 %v3319, %v4898
    %4900 = vmatpush1.msra.mxu0 %v4899
    %4901 = vmatprep.subr.mxu0 0.0
    %v4902 = vand.u32 %v3320, 4294901760
    %v4903 = vsub.f32 %v3320, %v4902
    %4904 = vmatpush1.msra.mxu0 %v4903
    %4905 = vmatprep.subr.mxu0 0.0
    %v4906 = vand.u32 %v3321, 4294901760
    %v4907 = vsub.f32 %v3321, %v4906
    %4908 = vmatpush1.msra.mxu0 %v4907
    %4909 = vmatprep.subr.mxu0 0.0
    %v4910 = vand.u32 %v3322, 4294901760
    %v4911 = vsub.f32 %v3322, %v4910
    %4912 = vmatpush1.msra.mxu0 %v4911
    %4913 = vmatprep.subr.mxu0 0.0
    %v4914 = vand.u32 %v3323, 4294901760
    %v4915 = vsub.f32 %v3323, %v4914
    %4916 = vmatpush1.msra.mxu0 %v4915
    %4917 = vmatprep.subr.mxu0 0.0
    %v4918 = vand.u32 %v3324, 4294901760
    %v4919 = vsub.f32 %v3324, %v4918
    %4920 = vmatpush1.msra.mxu0 %v4919
    %4921 = vmatprep.subr.mxu0 0.0
    %v4922 = vand.u32 %v3325, 4294901760
    %v4923 = vsub.f32 %v3325, %v4922
    %4924 = vmatpush1.msra.mxu0 %v4923
    %4925 = vmatprep.subr.mxu0 0.0
    %v4926 = vand.u32 %v3326, 4294901760
    %v4927 = vsub.f32 %v3326, %v4926
    %4928 = vmatpush1.msra.mxu0 %v4927
    %4929 = vmatprep.subr.mxu0 0.0
    %v4930 = vand.u32 %v3327, 4294901760
    %v4931 = vsub.f32 %v3327, %v4930
    %4932 = vmatpush1.msra.mxu0 %v4931
    %4933 = vmatprep.subr.mxu0 0.0
    %v4934 = vand.u32 %v3328, 4294901760
    %v4935 = vsub.f32 %v3328, %v4934
    %4936 = vmatpush1.msra.mxu0 %v4935
    %4937 = vmatprep.subr.mxu0 0.0
    %v4938 = vand.u32 %v3329, 4294901760
    %v4939 = vsub.f32 %v3329, %v4938
    %4940 = vmatpush1.msra.mxu0 %v4939
    %4941 = vmatprep.subr.mxu0 0.0
    %v4942 = vand.u32 %v3330, 4294901760
    %v4943 = vsub.f32 %v3330, %v4942
    %4944 = vmatpush1.msra.mxu0 %v4943
    %4945 = vmatprep.subr.mxu0 0.0
    %v4946 = vand.u32 %v3331, 4294901760
    %v4947 = vsub.f32 %v3331, %v4946
    %4948 = vmatpush1.msra.mxu0 %v4947
    %4949 = vmatprep.subr.mxu0 0.0
    %v4950 = vand.u32 %v3332, 4294901760
    %v4951 = vsub.f32 %v3332, %v4950
    %4952 = vmatpush1.msra.mxu0 %v4951
    %4953 = vmatprep.subr.mxu0 0.0
    %v4954 = vand.u32 %v3333, 4294901760
    %v4955 = vsub.f32 %v3333, %v4954
    %4956 = vmatpush1.msra.mxu0 %v4955
    %4957 = vmatprep.subr.mxu0 0.0
    %v4958 = vand.u32 %v3334, 4294901760
    %v4959 = vsub.f32 %v3334, %v4958
    %4960 = vmatpush1.msra.mxu0 %v4959
    %4961 = vmatprep.subr.mxu0 0.0
    %v4962 = vand.u32 %v3335, 4294901760
    %v4963 = vsub.f32 %v3335, %v4962
    %4964 = vmatpush1.msra.mxu0 %v4963
    %4965 = vmatprep.subr.mxu0 0.0
    %v4966 = vand.u32 %v3336, 4294901760
    %v4967 = vsub.f32 %v3336, %v4966
    %4968 = vmatpush1.msra.mxu0 %v4967
    %4969 = vmatprep.subr.mxu0 0.0
    %v4970 = vand.u32 %v3337, 4294901760
    %v4971 = vsub.f32 %v3337, %v4970
    %4972 = vmatpush1.msra.mxu0 %v4971
    %4973 = vmatprep.subr.mxu0 0.0
    %v4974 = vand.u32 %v3338, 4294901760
    %v4975 = vsub.f32 %v3338, %v4974
    %4976 = vmatpush1.msra.mxu0 %v4975
    %4977 = vmatprep.subr.mxu0 0.0
    %v4978 = vand.u32 %v3339, 4294901760
    %v4979 = vsub.f32 %v3339, %v4978
    %4980 = vmatpush1.msra.mxu0 %v4979
    %4981 = vmatprep.subr.mxu0 0.0
    %v4982 = vand.u32 %v3340, 4294901760
    %v4983 = vsub.f32 %v3340, %v4982
    %4984 = vmatpush1.msra.mxu0 %v4983
    %4985 = vmatprep.subr.mxu0 0.0
    %v4986 = vand.u32 %v3341, 4294901760
    %v4987 = vsub.f32 %v3341, %v4986
    %4988 = vmatpush1.msra.mxu0 %v4987
    %4989 = vmatprep.subr.mxu0 0.0
    %v4990 = vand.u32 %v3342, 4294901760
    %v4991 = vsub.f32 %v3342, %v4990
    %4992 = vmatpush1.msra.mxu0 %v4991
    %4993 = vmatprep.subr.mxu0 0.0
    %v4994 = vand.u32 %v3343, 4294901760
    %v4995 = vsub.f32 %v3343, %v4994
    %4996 = vmatpush1.msra.mxu0 %v4995
    %4997 = vmatprep.subr.mxu0 0.0
    %v4998 = vand.u32 %v3344, 4294901760
    %v4999 = vsub.f32 %v3344, %v4998
    %5000 = vmatpush1.msra.mxu0 %v4999
    %5001 = vmatprep.subr.mxu0 0.0
    %v5002 = vand.u32 %v3345, 4294901760
    %v5003 = vsub.f32 %v3345, %v5002
    %5004 = vmatpush1.msra.mxu0 %v5003
    %5005 = vmatprep.subr.mxu0 0.0
    %v5006 = vand.u32 %v3346, 4294901760
    %v5007 = vsub.f32 %v3346, %v5006
    %5008 = vmatpush1.msra.mxu0 %v5007
    %5009 = vmatprep.subr.mxu0 0.0
    %v5010 = vand.u32 %v3347, 4294901760
    %v5011 = vsub.f32 %v3347, %v5010
    %5012 = vmatpush1.msra.mxu0 %v5011
    %5013 = vmatprep.subr.mxu0 0.0
    %v5014 = vand.u32 %v3348, 4294901760
    %v5015 = vsub.f32 %v3348, %v5014
    %5016 = vmatpush1.msra.mxu0 %v5015
    %v5017 = vand.u32 %v4472, 4294901760
    %v5018 = vsub.f32 %v4472, %v5017
    %5019 = vmatprep.mubr.f32.mxu0 %v5018
    %v5020 = vand.u32 %v4471, 4294901760
    %v5021 = vsub.f32 %v4471, %v5020
    %5022 = vmatmul.mubr.f32.gmra.mrb[0].mxu0 %v5021
    %v5023 = vpop.f32.mrb[0].mxu0
    %v5024 = vadd.f32 %v4865, %v5023
    %v5025 = vpop.f32.mrb[0].mxu0
    %v5026 = vand.u32 %v4474, 4294901760
    %v5027 = vsub.f32 %v4474, %v5026
    %5028 = vmatprep.mubr.f32.mxu0 %v5027
    %v5029 = vand.u32 %v4473, 4294901760
    %v5030 = vsub.f32 %v4473, %v5029
    %5031 = vmatmul.mubr.f32.gmra.mrb[0].mxu0 %v5030
    %v5032 = vpop.f32.mrb[0].mxu0
    %v5033 = vadd.f32 %v4872, %v5032
    %v5034 = vpop.f32.mrb[0].mxu0
    %v5035 = vand.u32 %v4476, 4294901760
    %v5036 = vsub.f32 %v4476, %v5035
    %5037 = vmatprep.mubr.f32.mxu0 %v5036
    %v5038 = vand.u32 %v4475, 4294901760
    %v5039 = vsub.f32 %v4475, %v5038
    %5040 = vmatmul.mubr.f32.gmra.mrb[0].mxu0 %v5039
    %v5041 = vpop.f32.mrb[0].mxu0
    %v5042 = vadd.f32 %v4879, %v5041
    %v5043 = vpop.f32.mrb[0].mxu0
    %v5044 = vand.u32 %v4478, 4294901760
    %v5045 = vsub.f32 %v4478, %v5044
    %5046 = vmatprep.mubr.f32.mxu0 %v5045
    %v5047 = vand.u32 %v4477, 4294901760
    %v5048 = vsub.f32 %v4477, %v5047
    %5049 = vmatmul.mubr.f32.gmra.mrb[0].mxu0 %v5048
    %v5050 = vpop.f32.mrb[0].mxu0
    %v5051 = vadd.f32 %v4886, %v5050
    %v5052 = vpop.f32.mrb[0].mxu0
    %5053 = vdwg.mxu0
    %5054 = vmatprep.subr.mxu0 0.0
    %v5055 = vand.u32 %v3317, 4294901760
    %5056 = vmatpush1.msra.mxu0 %v5055
    %5057 = vmatprep.subr.mxu0 0.0
    %v5058 = vand.u32 %v3318, 4294901760
    %5059 = vmatpush1.msra.mxu0 %v5058
    %5060 = vmatprep.subr.mxu0 0.0
    %v5061 = vand.u32 %v3319, 4294901760
    %5062 = vmatpush1.msra.mxu0 %v5061
    %5063 = vmatprep.subr.mxu0 0.0
    %v5064 = vand.u32 %v3320, 4294901760
    %5065 = vmatpush1.msra.mxu0 %v5064
    %5066 = vmatprep.subr.mxu0 0.0
    %v5067 = vand.u32 %v3321, 4294901760
    %5068 = vmatpush1.msra.mxu0 %v5067
    %5069 = vmatprep.subr.mxu0 0.0
    %v5070 = vand.u32 %v3322, 4294901760
    %5071 = vmatpush1.msra.mxu0 %v5070
    %5072 = vmatprep.subr.mxu0 0.0
    %v5073 = vand.u32 %v3323, 4294901760
    %5074 = vmatpush1.msra.mxu0 %v5073
    %5075 = vmatprep.subr.mxu0 0.0
    %v5076 = vand.u32 %v3324, 4294901760
    %5077 = vmatpush1.msra.mxu0 %v5076
    %5078 = vmatprep.subr.mxu0 0.0
    %v5079 = vand.u32 %v3325, 4294901760
    %5080 = vmatpush1.msra.mxu0 %v5079
    %5081 = vmatprep.subr.mxu0 0.0
    %v5082 = vand.u32 %v3326, 4294901760
    %5083 = vmatpush1.msra.mxu0 %v5082
    %5084 = vmatprep.subr.mxu0 0.0
    %v5085 = vand.u32 %v3327, 4294901760
    %5086 = vmatpush1.msra.mxu0 %v5085
    %5087 = vmatprep.subr.mxu0 0.0
    %v5088 = vand.u32 %v3328, 4294901760
    %5089 = vmatpush1.msra.mxu0 %v5088
    %5090 = vmatprep.subr.mxu0 0.0
    %v5091 = vand.u32 %v3329, 4294901760
    %5092 = vmatpush1.msra.mxu0 %v5091
    %5093 = vmatprep.subr.mxu0 0.0
    %v5094 = vand.u32 %v3330, 4294901760
    %5095 = vmatpush1.msra.mxu0 %v5094
    %5096 = vmatprep.subr.mxu0 0.0
    %v5097 = vand.u32 %v3331, 4294901760
    %5098 = vmatpush1.msra.mxu0 %v5097
    %5099 = vmatprep.subr.mxu0 0.0
    %v5100 = vand.u32 %v3332, 4294901760
    %5101 = vmatpush1.msra.mxu0 %v5100
    %5102 = vmatprep.subr.mxu0 0.0
    %v5103 = vand.u32 %v3333, 4294901760
    %5104 = vmatpush1.msra.mxu0 %v5103
    %5105 = vmatprep.subr.mxu0 0.0
    %v5106 = vand.u32 %v3334, 4294901760
    %5107 = vmatpush1.msra.mxu0 %v5106
    %5108 = vmatprep.subr.mxu0 0.0
    %v5109 = vand.u32 %v3335, 4294901760
    %5110 = vmatpush1.msra.mxu0 %v5109
    %5111 = vmatprep.subr.mxu0 0.0
    %v5112 = vand.u32 %v3336, 4294901760
    %5113 = vmatpush1.msra.mxu0 %v5112
    %5114 = vmatprep.subr.mxu0 0.0
    %v5115 = vand.u32 %v3337, 4294901760
    %5116 = vmatpush1.msra.mxu0 %v5115
    %5117 = vmatprep.subr.mxu0 0.0
    %v5118 = vand.u32 %v3338, 4294901760
    %5119 = vmatpush1.msra.mxu0 %v5118
    %5120 = vmatprep.subr.mxu0 0.0
    %v5121 = vand.u32 %v3339, 4294901760
    %5122 = vmatpush1.msra.mxu0 %v5121
    %5123 = vmatprep.subr.mxu0 0.0
    %v5124 = vand.u32 %v3340, 4294901760
    %5125 = vmatpush1.msra.mxu0 %v5124
    %5126 = vmatprep.subr.mxu0 0.0
    %v5127 = vand.u32 %v3341, 4294901760
    %5128 = vmatpush1.msra.mxu0 %v5127
    %5129 = vmatprep.subr.mxu0 0.0
    %v5130 = vand.u32 %v3342, 4294901760
    %5131 = vmatpush1.msra.mxu0 %v5130
    %5132 = vmatprep.subr.mxu0 0.0
    %v5133 = vand.u32 %v3343, 4294901760
    %5134 = vmatpush1.msra.mxu0 %v5133
    %5135 = vmatprep.subr.mxu0 0.0
    %v5136 = vand.u32 %v3344, 4294901760
    %5137 = vmatpush1.msra.mxu0 %v5136
    %5138 = vmatprep.subr.mxu0 0.0
    %v5139 = vand.u32 %v3345, 4294901760
    %5140 = vmatpush1.msra.mxu0 %v5139
    %5141 = vmatprep.subr.mxu0 0.0
    %v5142 = vand.u32 %v3346, 4294901760
    %5143 = vmatpush1.msra.mxu0 %v5142
    %5144 = vmatprep.subr.mxu0 0.0
    %v5145 = vand.u32 %v3347, 4294901760
    %5146 = vmatpush1.msra.mxu0 %v5145
    %5147 = vmatprep.subr.mxu0 0.0
    %v5148 = vand.u32 %v3348, 4294901760
    %5149 = vmatpush1.msra.mxu0 %v5148
    %v5150 = vand.u32 %v4472, 4294901760
    %v5151 = vsub.f32 %v4472, %v5150
    %v5152 = vand.u32 %v5151, 4294901760
    %5153 = vmatprep.mubr.f32.mxu0 %v5152
    %v5154 = vand.u32 %v4471, 4294901760
    %v5155 = vsub.f32 %v4471, %v5154
    %v5156 = vand.u32 %v5155, 4294901760
    %5157 = vmatmul.mubr.f32.gmra.mrb[0].mxu0 %v5156
    %v5158 = vpop.f32.mrb[0].mxu0
    %v5159 = vadd.f32 %v5024, %v5158
    %v5160 = vpop.f32.mrb[0].mxu0
    %v5161 = vand.u32 %v4474, 4294901760
    %v5162 = vsub.f32 %v4474, %v5161
    %v5163 = vand.u32 %v5162, 4294901760
    %5164 = vmatprep.mubr.f32.mxu0 %v5163
    %v5165 = vand.u32 %v4473, 4294901760
    %v5166 = vsub.f32 %v4473, %v5165
    %v5167 = vand.u32 %v5166, 4294901760
    %5168 = vmatmul.mubr.f32.gmra.mrb[0].mxu0 %v5167
    %v5169 = vpop.f32.mrb[0].mxu0
    %v5170 = vadd.f32 %v5033, %v5169
    %v5171 = vpop.f32.mrb[0].mxu0
    %v5172 = vand.u32 %v4476, 4294901760
    %v5173 = vsub.f32 %v4476, %v5172
    %v5174 = vand.u32 %v5173, 4294901760
    %5175 = vmatprep.mubr.f32.mxu0 %v5174
    %v5176 = vand.u32 %v4475, 4294901760
    %v5177 = vsub.f32 %v4475, %v5176
    %v5178 = vand.u32 %v5177, 4294901760
    %5179 = vmatmul.mubr.f32.gmra.mrb[0].mxu0 %v5178
    %v5180 = vpop.f32.mrb[0].mxu0
    %v5181 = vadd.f32 %v5042, %v5180
    %v5182 = vpop.f32.mrb[0].mxu0
    %v5183 = vand.u32 %v4478, 4294901760
    %v5184 = vsub.f32 %v4478, %v5183
    %v5185 = vand.u32 %v5184, 4294901760
    %5186 = vmatprep.mubr.f32.mxu0 %v5185
    %v5187 = vand.u32 %v4477, 4294901760
    %v5188 = vsub.f32 %v4477, %v5187
    %v5189 = vand.u32 %v5188, 4294901760
    %5190 = vmatmul.mubr.f32.gmra.mrb[0].mxu0 %v5189
    %v5191 = vpop.f32.mrb[0].mxu0
    %v5192 = vadd.f32 %v5051, %v5191
    %v5193 = vpop.f32.mrb[0].mxu0
    %5194 = vdwg.mxu0
    %5195 = vmatprep.subr.mxu0 0.0
    %v5196 = vand.u32 %v3317, 4294901760
    %v5197 = vsub.f32 %v3317, %v5196
    %v5198 = vand.u32 %v5197, 4294901760
    %5199 = vmatpush1.msra.mxu0 %v5198
    %5200 = vmatprep.subr.mxu0 0.0
    %v5201 = vand.u32 %v3318, 4294901760
    %v5202 = vsub.f32 %v3318, %v5201
    %v5203 = vand.u32 %v5202, 4294901760
    %5204 = vmatpush1.msra.mxu0 %v5203
    %5205 = vmatprep.subr.mxu0 0.0
    %v5206 = vand.u32 %v3319, 4294901760
    %v5207 = vsub.f32 %v3319, %v5206
    %v5208 = vand.u32 %v5207, 4294901760
    %5209 = vmatpush1.msra.mxu0 %v5208
    %5210 = vmatprep.subr.mxu0 0.0
    %v5211 = vand.u32 %v3320, 4294901760
    %v5212 = vsub.f32 %v3320, %v5211
    %v5213 = vand.u32 %v5212, 4294901760
    %5214 = vmatpush1.msra.mxu0 %v5213
    %5215 = vmatprep.subr.mxu0 0.0
    %v5216 = vand.u32 %v3321, 4294901760
    %v5217 = vsub.f32 %v3321, %v5216
    %v5218 = vand.u32 %v5217, 4294901760
    %5219 = vmatpush1.msra.mxu0 %v5218
    %5220 = vmatprep.subr.mxu0 0.0
    %v5221 = vand.u32 %v3322, 4294901760
    %v5222 = vsub.f32 %v3322, %v5221
    %v5223 = vand.u32 %v5222, 4294901760
    %5224 = vmatpush1.msra.mxu0 %v5223
    %5225 = vmatprep.subr.mxu0 0.0
    %v5226 = vand.u32 %v3323, 4294901760
    %v5227 = vsub.f32 %v3323, %v5226
    %v5228 = vand.u32 %v5227, 4294901760
    %5229 = vmatpush1.msra.mxu0 %v5228
    %5230 = vmatprep.subr.mxu0 0.0
    %v5231 = vand.u32 %v3324, 4294901760
    %v5232 = vsub.f32 %v3324, %v5231
    %v5233 = vand.u32 %v5232, 4294901760
    %5234 = vmatpush1.msra.mxu0 %v5233
    %5235 = vmatprep.subr.mxu0 0.0
    %v5236 = vand.u32 %v3325, 4294901760
    %v5237 = vsub.f32 %v3325, %v5236
    %v5238 = vand.u32 %v5237, 4294901760
    %5239 = vmatpush1.msra.mxu0 %v5238
    %5240 = vmatprep.subr.mxu0 0.0
    %v5241 = vand.u32 %v3326, 4294901760
    %v5242 = vsub.f32 %v3326, %v5241
    %v5243 = vand.u32 %v5242, 4294901760
    %5244 = vmatpush1.msra.mxu0 %v5243
    %5245 = vmatprep.subr.mxu0 0.0
    %v5246 = vand.u32 %v3327, 4294901760
    %v5247 = vsub.f32 %v3327, %v5246
    %v5248 = vand.u32 %v5247, 4294901760
    %5249 = vmatpush1.msra.mxu0 %v5248
    %5250 = vmatprep.subr.mxu0 0.0
    %v5251 = vand.u32 %v3328, 4294901760
    %v5252 = vsub.f32 %v3328, %v5251
    %v5253 = vand.u32 %v5252, 4294901760
    %5254 = vmatpush1.msra.mxu0 %v5253
    %5255 = vmatprep.subr.mxu0 0.0
    %v5256 = vand.u32 %v3329, 4294901760
    %v5257 = vsub.f32 %v3329, %v5256
    %v5258 = vand.u32 %v5257, 4294901760
    %5259 = vmatpush1.msra.mxu0 %v5258
    %5260 = vmatprep.subr.mxu0 0.0
    %v5261 = vand.u32 %v3330, 4294901760
    %v5262 = vsub.f32 %v3330, %v5261
    %v5263 = vand.u32 %v5262, 4294901760
    %5264 = vmatpush1.msra.mxu0 %v5263
    %5265 = vmatprep.subr.mxu0 0.0
    %v5266 = vand.u32 %v3331, 4294901760
    %v5267 = vsub.f32 %v3331, %v5266
    %v5268 = vand.u32 %v5267, 4294901760
    %5269 = vmatpush1.msra.mxu0 %v5268
    %5270 = vmatprep.subr.mxu0 0.0
    %v5271 = vand.u32 %v3332, 4294901760
    %v5272 = vsub.f32 %v3332, %v5271
    %v5273 = vand.u32 %v5272, 4294901760
    %5274 = vmatpush1.msra.mxu0 %v5273
    %5275 = vmatprep.subr.mxu0 0.0
    %v5276 = vand.u32 %v3333, 4294901760
    %v5277 = vsub.f32 %v3333, %v5276
    %v5278 = vand.u32 %v5277, 4294901760
    %5279 = vmatpush1.msra.mxu0 %v5278
    %5280 = vmatprep.subr.mxu0 0.0
    %v5281 = vand.u32 %v3334, 4294901760
    %v5282 = vsub.f32 %v3334, %v5281
    %v5283 = vand.u32 %v5282, 4294901760
    %5284 = vmatpush1.msra.mxu0 %v5283
    %5285 = vmatprep.subr.mxu0 0.0
    %v5286 = vand.u32 %v3335, 4294901760
    %v5287 = vsub.f32 %v3335, %v5286
    %v5288 = vand.u32 %v5287, 4294901760
    %5289 = vmatpush1.msra.mxu0 %v5288
    %5290 = vmatprep.subr.mxu0 0.0
    %v5291 = vand.u32 %v3336, 4294901760
    %v5292 = vsub.f32 %v3336, %v5291
    %v5293 = vand.u32 %v5292, 4294901760
    %5294 = vmatpush1.msra.mxu0 %v5293
    %5295 = vmatprep.subr.mxu0 0.0
    %v5296 = vand.u32 %v3337, 4294901760
    %v5297 = vsub.f32 %v3337, %v5296
    %v5298 = vand.u32 %v5297, 4294901760
    %5299 = vmatpush1.msra.mxu0 %v5298
    %5300 = vmatprep.subr.mxu0 0.0
    %v5301 = vand.u32 %v3338, 4294901760
    %v5302 = vsub.f32 %v3338, %v5301
    %v5303 = vand.u32 %v5302, 4294901760
    %5304 = vmatpush1.msra.mxu0 %v5303
    %5305 = vmatprep.subr.mxu0 0.0
    %v5306 = vand.u32 %v3339, 4294901760
    %v5307 = vsub.f32 %v3339, %v5306
    %v5308 = vand.u32 %v5307, 4294901760
    %5309 = vmatpush1.msra.mxu0 %v5308
    %5310 = vmatprep.subr.mxu0 0.0
    %v5311 = vand.u32 %v3340, 4294901760
    %v5312 = vsub.f32 %v3340, %v5311
    %v5313 = vand.u32 %v5312, 4294901760
    %5314 = vmatpush1.msra.mxu0 %v5313
    %5315 = vmatprep.subr.mxu0 0.0
    %v5316 = vand.u32 %v3341, 4294901760
    %v5317 = vsub.f32 %v3341, %v5316
    %v5318 = vand.u32 %v5317, 4294901760
    %5319 = vmatpush1.msra.mxu0 %v5318
    %5320 = vmatprep.subr.mxu0 0.0
    %v5321 = vand.u32 %v3342, 4294901760
    %v5322 = vsub.f32 %v3342, %v5321
    %v5323 = vand.u32 %v5322, 4294901760
    %5324 = vmatpush1.msra.mxu0 %v5323
    %5325 = vmatprep.subr.mxu0 0.0
    %v5326 = vand.u32 %v3343, 4294901760
    %v5327 = vsub.f32 %v3343, %v5326
    %v5328 = vand.u32 %v5327, 4294901760
    %5329 = vmatpush1.msra.mxu0 %v5328
    %5330 = vmatprep.subr.mxu0 0.0
    %v5331 = vand.u32 %v3344, 4294901760
    %v5332 = vsub.f32 %v3344, %v5331
    %v5333 = vand.u32 %v5332, 4294901760
    %5334 = vmatpush1.msra.mxu0 %v5333
    %5335 = vmatprep.subr.mxu0 0.0
    %v5336 = vand.u32 %v3345, 4294901760
    %v5337 = vsub.f32 %v3345, %v5336
    %v5338 = vand.u32 %v5337, 4294901760
    %5339 = vmatpush1.msra.mxu0 %v5338
    %5340 = vmatprep.subr.mxu0 0.0
    %v5341 = vand.u32 %v3346, 4294901760
    %v5342 = vsub.f32 %v3346, %v5341
    %v5343 = vand.u32 %v5342, 4294901760
    %5344 = vmatpush1.msra.mxu0 %v5343
    %5345 = vmatprep.subr.mxu0 0.0
    %v5346 = vand.u32 %v3347, 4294901760
    %v5347 = vsub.f32 %v3347, %v5346
    %v5348 = vand.u32 %v5347, 4294901760
    %5349 = vmatpush1.msra.mxu0 %v5348
    %5350 = vmatprep.subr.mxu0 0.0
    %v5351 = vand.u32 %v3348, 4294901760
    %v5352 = vsub.f32 %v3348, %v5351
    %v5353 = vand.u32 %v5352, 4294901760
    %5354 = vmatpush1.msra.mxu0 %v5353
    %v5355 = vand.u32 %v4472, 4294901760
    %5356 = vmatprep.mubr.f32.mxu0 %v5355
    %v5357 = vand.u32 %v4471, 4294901760
    %5358 = vmatmul.mubr.f32.gmra.mrb[0].mxu0 %v5357
    %v5359 = vpop.f32.mrb[0].mxu0
    %v5360 = vadd.f32 %v5159, %v5359
    %v5361 = vpop.f32.mrb[0].mxu0
    %v5362 = vand.u32 %v4474, 4294901760
    %5363 = vmatprep.mubr.f32.mxu0 %v5362
    %v5364 = vand.u32 %v4473, 4294901760
    %5365 = vmatmul.mubr.f32.gmra.mrb[0].mxu0 %v5364
    %v5366 = vpop.f32.mrb[0].mxu0
    %v5367 = vadd.f32 %v5170, %v5366
    %v5368 = vpop.f32.mrb[0].mxu0
    %v5369 = vand.u32 %v4476, 4294901760
    %5370 = vmatprep.mubr.f32.mxu0 %v5369
    %v5371 = vand.u32 %v4475, 4294901760
    %5372 = vmatmul.mubr.f32.gmra.mrb[0].mxu0 %v5371
    %v5373 = vpop.f32.mrb[0].mxu0
    %v5374 = vadd.f32 %v5181, %v5373
    %v5375 = vpop.f32.mrb[0].mxu0
    %v5376 = vand.u32 %v4478, 4294901760
    %5377 = vmatprep.mubr.f32.mxu0 %v5376
    %v5378 = vand.u32 %v4477, 4294901760
    %5379 = vmatmul.mubr.f32.gmra.mrb[0].mxu0 %v5378
    %v5380 = vpop.f32.mrb[0].mxu0
    %v5381 = vadd.f32 %v5192, %v5380
    %v5382 = vpop.f32.mrb[0].mxu0
    %5383 = vdwg.mxu0
    %5384 = vmatprep.subr.mxu0 0.0
    %v5385 = vand.u32 %v3317, 4294901760
    %5386 = vmatpush1.msra.mxu0 %v5385
    %5387 = vmatprep.subr.mxu0 0.0
    %v5388 = vand.u32 %v3318, 4294901760
    %5389 = vmatpush1.msra.mxu0 %v5388
    %5390 = vmatprep.subr.mxu0 0.0
    %v5391 = vand.u32 %v3319, 4294901760
    %5392 = vmatpush1.msra.mxu0 %v5391
    %5393 = vmatprep.subr.mxu0 0.0
    %v5394 = vand.u32 %v3320, 4294901760
    %5395 = vmatpush1.msra.mxu0 %v5394
    %5396 = vmatprep.subr.mxu0 0.0
    %v5397 = vand.u32 %v3321, 4294901760
    %5398 = vmatpush1.msra.mxu0 %v5397
    %5399 = vmatprep.subr.mxu0 0.0
    %v5400 = vand.u32 %v3322, 4294901760
    %5401 = vmatpush1.msra.mxu0 %v5400
    %5402 = vmatprep.subr.mxu0 0.0
    %v5403 = vand.u32 %v3323, 4294901760
    %5404 = vmatpush1.msra.mxu0 %v5403
    %5405 = vmatprep.subr.mxu0 0.0
    %v5406 = vand.u32 %v3324, 4294901760
    %5407 = vmatpush1.msra.mxu0 %v5406
    %5408 = vmatprep.subr.mxu0 0.0
    %v5409 = vand.u32 %v3325, 4294901760
    %5410 = vmatpush1.msra.mxu0 %v5409
    %5411 = vmatprep.subr.mxu0 0.0
    %v5412 = vand.u32 %v3326, 4294901760
    %5413 = vmatpush1.msra.mxu0 %v5412
    %5414 = vmatprep.subr.mxu0 0.0
    %v5415 = vand.u32 %v3327, 4294901760
    %5416 = vmatpush1.msra.mxu0 %v5415
    %5417 = vmatprep.subr.mxu0 0.0
    %v5418 = vand.u32 %v3328, 4294901760
    %5419 = vmatpush1.msra.mxu0 %v5418
    %5420 = vmatprep.subr.mxu0 0.0
    %v5421 = vand.u32 %v3329, 4294901760
    %5422 = vmatpush1.msra.mxu0 %v5421
    %5423 = vmatprep.subr.mxu0 0.0
    %v5424 = vand.u32 %v3330, 4294901760
    %5425 = vmatpush1.msra.mxu0 %v5424
    %5426 = vmatprep.subr.mxu0 0.0
    %v5427 = vand.u32 %v3331, 4294901760
    %5428 = vmatpush1.msra.mxu0 %v5427
    %5429 = vmatprep.subr.mxu0 0.0
    %v5430 = vand.u32 %v3332, 4294901760
    %5431 = vmatpush1.msra.mxu0 %v5430
    %5432 = vmatprep.subr.mxu0 0.0
    %v5433 = vand.u32 %v3333, 4294901760
    %5434 = vmatpush1.msra.mxu0 %v5433
    %5435 = vmatprep.subr.mxu0 0.0
    %v5436 = vand.u32 %v3334, 4294901760
    %5437 = vmatpush1.msra.mxu0 %v5436
    %5438 = vmatprep.subr.mxu0 0.0
    %v5439 = vand.u32 %v3335, 4294901760
    %5440 = vmatpush1.msra.mxu0 %v5439
    %5441 = vmatprep.subr.mxu0 0.0
    %v5442 = vand.u32 %v3336, 4294901760
    %5443 = vmatpush1.msra.mxu0 %v5442
    %5444 = vmatprep.subr.mxu0 0.0
    %v5445 = vand.u32 %v3337, 4294901760
    %5446 = vmatpush1.msra.mxu0 %v5445
    %5447 = vmatprep.subr.mxu0 0.0
    %v5448 = vand.u32 %v3338, 4294901760
    %5449 = vmatpush1.msra.mxu0 %v5448
    %5450 = vmatprep.subr.mxu0 0.0
    %v5451 = vand.u32 %v3339, 4294901760
    %5452 = vmatpush1.msra.mxu0 %v5451
    %5453 = vmatprep.subr.mxu0 0.0
    %v5454 = vand.u32 %v3340, 4294901760
    %5455 = vmatpush1.msra.mxu0 %v5454
    %5456 = vmatprep.subr.mxu0 0.0
    %v5457 = vand.u32 %v3341, 4294901760
    %5458 = vmatpush1.msra.mxu0 %v5457
    %5459 = vmatprep.subr.mxu0 0.0
    %v5460 = vand.u32 %v3342, 4294901760
    %5461 = vmatpush1.msra.mxu0 %v5460
    %5462 = vmatprep.subr.mxu0 0.0
    %v5463 = vand.u32 %v3343, 4294901760
    %5464 = vmatpush1.msra.mxu0 %v5463
    %5465 = vmatprep.subr.mxu0 0.0
    %v5466 = vand.u32 %v3344, 4294901760
    %5467 = vmatpush1.msra.mxu0 %v5466
    %5468 = vmatprep.subr.mxu0 0.0
    %v5469 = vand.u32 %v3345, 4294901760
    %5470 = vmatpush1.msra.mxu0 %v5469
    %5471 = vmatprep.subr.mxu0 0.0
    %v5472 = vand.u32 %v3346, 4294901760
    %5473 = vmatpush1.msra.mxu0 %v5472
    %5474 = vmatprep.subr.mxu0 0.0
    %v5475 = vand.u32 %v3347, 4294901760
    %5476 = vmatpush1.msra.mxu0 %v5475
    %5477 = vmatprep.subr.mxu0 0.0
    %v5478 = vand.u32 %v3348, 4294901760
    %5479 = vmatpush1.msra.mxu0 %v5478
    %v5480 = vand.u32 %v4472, 4294901760
    %5481 = vmatprep.mubr.f32.mxu0 %v5480
    %v5482 = vand.u32 %v4471, 4294901760
    %5483 = vmatmul.mubr.f32.gmra.mrb[0].mxu0 %v5482
    %v5484 = vpop.f32.mrb[0].mxu0
    %v5485 = vadd.f32 %v5360, %v5484
    %v5486 = vpop.f32.mrb[0].mxu0
    %v5487 = vand.u32 %v4474, 4294901760
    %5488 = vmatprep.mubr.f32.mxu0 %v5487
    %v5489 = vand.u32 %v4473, 4294901760
    %5490 = vmatmul.mubr.f32.gmra.mrb[0].mxu0 %v5489
    %v5491 = vpop.f32.mrb[0].mxu0
    %v5492 = vadd.f32 %v5367, %v5491
    %v5493 = vpop.f32.mrb[0].mxu0
    %v5494 = vand.u32 %v4476, 4294901760
    %5495 = vmatprep.mubr.f32.mxu0 %v5494
    %v5496 = vand.u32 %v4475, 4294901760
    %5497 = vmatmul.mubr.f32.gmra.mrb[0].mxu0 %v5496
    %v5498 = vpop.f32.mrb[0].mxu0
    %v5499 = vadd.f32 %v5374, %v5498
    %v5500 = vpop.f32.mrb[0].mxu0
    %v5501 = vand.u32 %v4478, 4294901760
    %5502 = vmatprep.mubr.f32.mxu0 %v5501
    %v5503 = vand.u32 %v4477, 4294901760
    %5504 = vmatmul.mubr.f32.gmra.mrb[0].mxu0 %v5503
    %v5505 = vpop.f32.mrb[0].mxu0
    %v5506 = vadd.f32 %v5381, %v5505
    %v5507 = vpop.f32.mrb[0].mxu0
    %5508 = vdwg.mxu0
    %v5509 = vsel %vm65, %v5485, 0.0
    %5510 = vadd.xlane.f32.xlu0 %v5509
    %v5511 = vpop.xlane.xlu0 %5510
    %v5512 = vsel %vm65, %v5492, 0.0
    %5513 = vadd.xlane.f32.xlu0 %v5512
    %v5514 = vpop.xlane.xlu0 %5513
    %v5515 = vsel %vm65, %v5499, 0.0
    %5516 = vadd.xlane.f32.xlu0 %v5515
    %v5517 = vpop.xlane.xlu0 %5516
    %v5518 = vsel %vm65, %v5506, 0.0
    %5519 = vadd.xlane.f32.xlu0 %v5518
    %v5520 = vpop.xlane.xlu0 %5519
    %v5521 = vrcp.pop 32.0
    %v5522 = vmul.f32 %v5511, %v5521
    %v5523 = vmul.f32 %v5514, %v5521
    %v5524 = vmul.f32 %v5517, %v5521
    %v5525 = vmul.f32 %v5520, %v5521
    %v5526 = vsub.f32 %v5485, %v5522
    %v5527 = vsub.f32 %v5492, %v5523
    %v5528 = vsub.f32 %v5499, %v5524
    %v5529 = vsub.f32 %v5506, %v5525
    %v5530 = vmul.f32 %v5526, %v5526
    %v5531 = vmul.f32 %v5527, %v5527
    %v5532 = vmul.f32 %v5528, %v5528
    %v5533 = vmul.f32 %v5529, %v5529
    %v5534 = vsel %vm65, %v5530, 0.0
    %5535 = vadd.xlane.f32.xlu0 %v5534
    %v5536 = vpop.xlane.xlu0 %5535
    %v5537 = vsel %vm65, %v5531, 0.0
    %5538 = vadd.xlane.f32.xlu0 %v5537
    %v5539 = vpop.xlane.xlu0 %5538
    %v5540 = vsel %vm65, %v5532, 0.0
    %5541 = vadd.xlane.f32.xlu0 %v5540
    %v5542 = vpop.xlane.xlu0 %5541
    %v5543 = vsel %vm65, %v5533, 0.0
    %5544 = vadd.xlane.f32.xlu0 %v5543
    %v5545 = vpop.xlane.xlu0 %5544
    %v5546 = vmul.f32 %v5536, %v5521
    %v5547 = vmul.f32 %v5539, %v5521
    %v5548 = vmul.f32 %v5542, %v5521
    %v5549 = vmul.f32 %v5545, %v5521
    %v5550 = vadd.f32 %v5546, 0.001
    %v5551 = vadd.f32 %v5547, 0.001
    %v5552 = vadd.f32 %v5548, 0.001
    %v5553 = vadd.f32 %v5549, 0.001
    %v5554 = vrsqrt.pop %v5550
    %v5555 = vrsqrt.pop %v5551
    %v5556 = vrsqrt.pop %v5552
    %v5557 = vrsqrt.pop %v5553
    %v5558 = vmul.f32 %v5526, %v5554
    %v5559 = vmul.f32 %v5527, %v5555
    %v5560 = vmul.f32 %v5528, %v5556
    %v5561 = vmul.f32 %v5529, %v5557
    %v5562 = vld [vmem:[%s8] sm:$0x1]
    %v5564 = vlaneseq
    %v5565 = vshrl.u32 %v5564, 7
    %v5566 = vsub.s32 0, %v5565
    %v5567 = vrot.slane %v5562, %v5566
    %v5569 = vmul.f32 %v5558, %v5567
    %v5570 = vmul.f32 %v5559, %v5567
    %v5571 = vmul.f32 %v5560, %v5567
    %v5572 = vmul.f32 %v5561, %v5567
    %v5573 = vld [vmem:[%s9] sm:$0x1]
    %v5575 = vlaneseq
    %v5576 = vshrl.u32 %v5575, 7
    %v5577 = vsub.s32 0, %v5576
    %v5578 = vrot.slane %v5573, %v5577
    %v5580 = vadd.f32 %v5569, %v5578
    %v5581 = vadd.f32 %v5570, %v5578
    %v5582 = vadd.f32 %v5571, %v5578
    %v5583 = vadd.f32 %v5572, %v5578
    %5584 = vst.msk [vmem:[#allocation5] sm:$0xff] %vm65, %v5580
    %5585 = vst.msk [vmem:[#allocation5 + $0x8] sm:$0xff] %vm65, %v5581
    %5586 = vst.msk [vmem:[#allocation5 + $0x10] sm:$0xff] %vm65, %v5582
    %5587 = vst.msk [vmem:[#allocation5 + $0x18] sm:$0xff] %vm65, %v5583
    // Predicated region
    $region46: #{many_body_attn.1} parent=1 // pred_check
      _
    $region47: #{many_body_attn.1} parent=1 // pred_check_branch
      %5589 = sbr.rel (0) target = $region49
    $region48: #{many_body_attn.1} parent=1 // pred_region
      %s5591 = ssub.s32 512, 512
      %5592 = vsyncadd [#allocation4], %s5591
      %s5593 = sshll.u32 [#allocation5], 4
      %s5594 = int_to_ptr.vmem [resolvable:$true] %s5593
      %5599 = dma.vmem_to_hbm [thread:$0]  %s5594, 512, %s10, [#allocation4], 128, 128, 8
    $region49: #{many_body_attn.1} parent=1 // pred_fallthru
      _
    // Predicated region
    $region50: #{many_body_attn.1} parent=1 // pred_check
      _
    $region51: #{many_body_attn.1} parent=1 // pred_check_branch
      %5601 = sbr.rel (0) target = $region53
    $region52: #{many_body_attn.1} parent=1 // pred_region
      %5602 = dma.done [#allocation4], 512
    $region53: #{many_body_attn.1} parent=1 // pred_fallthru
      _
    %5603 = vsyncpa [#allocation3], 1
    %5604 = vsyncpa [#allocation4], 1

</llo_original>
